<compile_context>
chip_gen: v7x
topology: tpu7x:2x2x1
jax: 0.10.0
libtpu: 0.0.40
codegen_flags: <defaults>
</compile_context>

<pallas_src>
import math
import functools

import numpy as np
import jax
import jax.numpy as jnp
from jax import lax
from jax.experimental import pallas as pl
from jax.experimental.pallas import tpu as pltpu

LANE = 128  # pad channel / nk axes up to this for lane-dense (unmasked) stores


# ------------------- fused conv3x3 kernel (one matmul per conv) -------------------

def _conv3_kernel(pq_ref, pz_ref, pk_ref,
                  wq_ref, wz_ref, wk_ref,
                  bq_ref, bz_ref, bk_ref,
                  oq_ref, oz_ref, ok_ref):
    # p*_ref: (1, rows, 9*Cin) im2col patches for one batch element
    # w*_ref: (9*Cin, 128) zero-padded weights   b*_ref: (1, 128)
    # o*_ref: (1, rows, 128) lane-dense outputs
    oq_ref[0] = (jnp.dot(pq_ref[0], wq_ref[...],
                         preferred_element_type=jnp.float32) + bq_ref[...])
    oz_ref[0] = (jnp.dot(pz_ref[0], wz_ref[...],
                         preferred_element_type=jnp.float32) + bz_ref[...])
    ok_ref[0] = (jnp.dot(pk_ref[0], wk_ref[...],
                         preferred_element_type=jnp.float32) + bk_ref[...])


def conv3_pallas(pq, pz, pk, wq, wz, wk, bq, bz, bk):
    B, rq, kq = pq.shape
    _, rz, kz = pz.shape
    _, rk, kk = pk.shape
    return pl.pallas_call(
        _conv3_kernel,
        out_shape=(jax.ShapeDtypeStruct((B, rq, LANE), jnp.float32),
                   jax.ShapeDtypeStruct((B, rz, LANE), jnp.float32),
                   jax.ShapeDtypeStruct((B, rk, LANE), jnp.float32)),
        grid_spec=pltpu.PrefetchScalarGridSpec(
            num_scalar_prefetch=0,
            grid=(B,),
            in_specs=[
                pl.BlockSpec((1, rq, kq), lambda b: (b, 0, 0)),
                pl.BlockSpec((1, rz, kz), lambda b: (b, 0, 0)),
                pl.BlockSpec((1, rk, kk), lambda b: (b, 0, 0)),
                pl.BlockSpec((kq, LANE), lambda b: (0, 0)),
                pl.BlockSpec((kz, LANE), lambda b: (0, 0)),
                pl.BlockSpec((kk, LANE), lambda b: (0, 0)),
                pl.BlockSpec((1, LANE), lambda b: (0, 0)),
                pl.BlockSpec((1, LANE), lambda b: (0, 0)),
                pl.BlockSpec((1, LANE), lambda b: (0, 0)),
            ],
            out_specs=(pl.BlockSpec((1, rq, LANE), lambda b: (b, 0, 0)),
                       pl.BlockSpec((1, rz, LANE), lambda b: (b, 0, 0)),
                       pl.BlockSpec((1, rk, LANE), lambda b: (b, 0, 0))),
        ),
        compiler_params=pltpu.CompilerParams(dimension_semantics=("parallel",)),
    )(pq, pz, pk, wq, wz, wk, bq, bz, bk)


# --------- A = relu(sum_{v,m} tanh(Q (tanh(Z^T Z)+I) K^T)), one step / batch ---------

def _attn_kernel(lc_ref, q_ref, z_ref, k_ref, o_ref):
    # lc: (d,d)  q: (1,nq,d)  z: (1,m,nz,d)  k: (1,cv,nkp,d)  o: (1,nq,nkp)
    m = z_ref.shape[1]
    cv = k_ref.shape[1]
    nq, nkp = o_ref.shape[1], o_ref.shape[2]
    q = q_ref[0]                      # (nq, d)
    lc = lc_ref[...]                  # (d, d)
    acc = jnp.zeros((nq, nkp), jnp.float32)
    for mm in range(m):               # heads: G / Q@G hoisted out of the view loop
        z = z_ref[0, mm]              # (nz, d)
        zz = lax.dot_general(z, z, (((0,), (0,)), ((), ())),
                             preferred_element_type=jnp.float32)       # Z^T Z (d,d)
        g = jnp.tanh(zz) + lc
        qg = jnp.dot(q, g, preferred_element_type=jnp.float32)         # (nq, d)
        for vv in range(cv):          # cross views: a single matmul + tanh each
            k = k_ref[0, vv]          # (nkp, d)
            a = lax.dot_general(qg, k, (((1,), (1,)), ((), ())),
                                preferred_element_type=jnp.float32)    # (nq, nkp)
            acc = acc + jnp.tanh(a)
    o_ref[0] = jnp.maximum(acc, 0.0)


def attn_pallas(Q, Z, K, label_coef):
    # Q: (B,nq,d)  Z: (B,m,nz,d)  K: (B,cv,nk,d) -- untiled; replication is implicit.
    B, nq, d = Q.shape
    m, nz = Z.shape[1], Z.shape[2]
    cv, nk = K.shape[1], K.shape[2]
    nkp = max(LANE, ((nk + LANE - 1) // LANE) * LANE)   # lane-dense output columns
    Kp = jnp.pad(K, ((0, 0), (0, 0), (0, nkp - nk), (0, 0)))
    out = pl.pallas_call(
        _attn_kernel,
        out_shape=jax.ShapeDtypeStruct((B, nq, nkp), jnp.float32),
        grid_spec=pltpu.PrefetchScalarGridSpec(
            num_scalar_prefetch=0,
            grid=(B,),
            in_specs=[
                pl.BlockSpec((d, d), lambda b: (0, 0)),
                pl.BlockSpec((1, nq, d), lambda b: (b, 0, 0)),
                pl.BlockSpec((1, m, nz, d), lambda b: (b, 0, 0, 0)),
                pl.BlockSpec((1, cv, nkp, d), lambda b: (b, 0, 0, 0)),
            ],
            out_specs=pl.BlockSpec((1, nq, nkp), lambda b: (b, 0, 0)),
        ),
        compiler_params=pltpu.CompilerParams(dimension_semantics=("parallel",)),
    )(label_coef, Q, Z, Kp)
    return out[:, :, :nk]


# ------------------------------------ glue ------------------------------------

def view_aug(x, v):
    assert 0 <= v <= 2
    if v == 1:
        return x[:, :, :, ::-1]                  # flip(3)
    elif v == 2:
        return jnp.transpose(x, (0, 1, 3, 2))    # permute(0,1,3,2)
    return x


def _im2col(x_nchw):
    # TODO(synk): im2col patch extraction stays in XLA glue (a clean in-kernel
    # im2col needs lane/sublane reshapes of strided slices); matmuls are Pallas.
    B, Cin, H, W = x_nchw.shape
    x = jnp.transpose(x_nchw, (0, 2, 3, 1))
    xp = jnp.pad(x, ((0, 0), (1, 1), (1, 1), (0, 0)))
    cols = [xp[:, ky:ky + H, kx:kx + W, :] for ky in range(3) for kx in range(3)]
    return jnp.stack(cols, axis=3).reshape(B, H * W, 9 * Cin)


def _pad_wb(w_hwio, bias):
    kh_, kw_, cin, cout = w_hwio.shape
    wmat = jnp.pad(w_hwio.reshape(kh_ * kw_ * cin, cout), ((0, 0), (0, LANE - cout)))
    b2 = jnp.pad(bias.reshape(1, cout), ((0, 0), (0, LANE - cout)))
    return wmat, b2


def _interp_matrix(out_size, in_size):
    # PyTorch F.interpolate(mode='bilinear', align_corners=False) weights,
    # built with numpy at trace time (no scatter ops in the jitted graph).
    i = np.arange(out_size, dtype=np.float32)
    src = np.clip((i + 0.5) * (in_size / out_size) - 0.5, 0.0, in_size - 1.0)
    i0 = np.clip(np.floor(src).astype(np.int32), 0, in_size - 1)
    i1 = np.minimum(i0 + 1, in_size - 1)
    w1 = (src - i0).astype(np.float32)
    w0 = (1.0 - w1).astype(np.float32)
    M = np.zeros((out_size, in_size), np.float32)
    M[np.arange(out_size), i0] += w0
    M[np.arange(out_size), i1] += w1
    return jnp.asarray(M)


def bilinear_resize_nchw(x, oh, ow):
    # TODO(synk): bilinear resize kept as plain-JAX glue (separable interp matrices).
    Rh = _interp_matrix(oh, x.shape[2])
    Rw = _interp_matrix(ow, x.shape[3])
    return jnp.einsum('ih,bchw,jw->bcij', Rh, x, Rw)


def encoder_ae_forward(params, xq, xz, xk, *, heads, cross_views):
    b, _, kh, kw = xk.shape
    _, _, zh, zw = xz.shape
    _, _, qh, qw = xq.shape
    m = heads
    cv = int(cross_views)
    d = params['label_coef'].shape[0]
    cq = params['q_w'].shape[-1]          # d
    cz = params['z_w'].shape[-1]          # d * m
    ck = params['k_w'].shape[-1]          # d

    # ---- im2col patches (glue); all cv K-views folded into the row dimension ----
    pq = _im2col(xq)                                             # (b, qh*qw, 9*Cin_q)
    pz = _im2col(xz)                                             # (b, zh*zw, 9*Cin_z)
    view_hw = [(kw, kh) if i == 2 else (kh, kw) for i in range(cv)]
    pk = jnp.concatenate([_im2col(view_aug(xk, i)) for i in range(cv)], axis=1)

    wq, bq = _pad_wb(params['q_w'], params['q_b'])
    wz, bz = _pad_wb(params['z_w'], params['z_b'])
    wk, bk = _pad_wb(params['k_w'], params['k_b'])

    oq, oz, ok = conv3_pallas(pq, pz, pk, wq, wz, wk, bq, bz, bk)

    # back to NCHW (and undo the view augmentation for the K views)
    Q = jnp.transpose(oq[:, :, :cq].reshape(b, qh, qw, cq), (0, 3, 1, 2))
    Z = jnp.transpose(oz[:, :, :cz].reshape(b, zh, zw, cz), (0, 3, 1, 2))
    K_views = []
    for i in range(cv):
        hv, wv = view_hw[i]
        ci = ok[:, i * kh * kw:(i + 1) * kh * kw, :ck].reshape(b, hv, wv, ck)
        ci = view_aug(jnp.transpose(ci, (0, 3, 1, 2)), i)        # (b, d, kh, kw)
        K_views.append(ci)

    # ---- attention inputs: raw C-order reshapes, exactly like the torch .reshape ----
    Qa = Q.reshape(b, qh * qw, d)                                # (b, nq, d)
    Za = Z.reshape(b, m, zh * zw, d)                             # (b, m, nz, d)
    Ka = jnp.stack([c.reshape(b, kh * kw, d) for c in K_views], axis=1)  # (b, cv, nk, d)

    A = attn_pallas(Qa, Za, Ka, params['label_coef'])

    # ---- QZK branch (glue) ----
    n = kh * kw
    K5 = jnp.broadcast_to(Ka[:, :, None, :, :], (b, cv, m, n, d))
    Ks = K5.reshape(b, n, cv, m * d).reshape(b, cv * m * d, kh, kw)
    Zs = bilinear_resize_nchw(Z, qh, qw)
    Ksr = bilinear_resize_nchw(Ks, qh, qw)
    QZK = jnp.concatenate((Q, Zs, Ksr), axis=1)
    return A, QZK


# ------------------------------------ main ------------------------------------

if __name__ == "__main__":
    in_dim = {'q': 8, 'z': 12, 'k': 16}   # small synthetic channel counts
    out_dim = 16
    heads = 2
    mv = 3
    B = 2
    qh = qw = 8
    zh = zw = 6
    kh = kw = 10

    key = jax.random.PRNGKey(0)
    k_kw, k_kb, z_kw, z_kb, q_kw, q_kb, key_xq, key_xz, key_xk = jax.random.split(key, 9)

    def conv_init(wkey, bkey, cin, cout):
        bound = 1.0 / math.sqrt(cin * 9)
        w = jax.random.uniform(wkey, (3, 3, cin, cout), jnp.float32, -bound, bound)
        bvec = jax.random.uniform(bkey, (cout,), jnp.float32, -bound, bound)
        return w, bvec

    kW, kB = conv_init(k_kw, k_kb, in_dim['k'], out_dim)
    zW, zB = conv_init(z_kw, z_kb, in_dim['z'], out_dim * heads)
    qW, qB = conv_init(q_kw, q_kb, in_dim['q'], out_dim)

    params = {
        'label_coef': jnp.eye(out_dim, dtype=jnp.float32),   # nn.Parameter(torch.eye(out_dim))
        'k_w': kW, 'k_b': kB,
        'z_w': zW, 'z_b': zB,
        'q_w': qW, 'q_b': qB,
    }

    xq = jax.random.normal(key_xq, (B, in_dim['q'], qh, qw), jnp.float32)
    xz = jax.random.normal(key_xz, (B, in_dim['z'], zh, zw), jnp.float32)
    xk = jax.random.normal(key_xk, (B, in_dim['k'], kh, kw), jnp.float32)

    fwd = jax.jit(functools.partial(encoder_ae_forward, heads=heads, cross_views=mv))
    A, QZK = fwd(params, xq, xz, xk)
    jax.block_until_ready((A, QZK))

    assert A.shape == (B, qh * qw, kh * kw), A.shape
    assert QZK.shape == (B, out_dim + out_dim * heads + mv * heads * out_dim, qh, qw), QZK.shape
    assert bool(jnp.all(jnp.isfinite(A))) and bool(jnp.all(jnp.isfinite(QZK)))
    print("KERNEL_OK")
</pallas_src>

<mosaic_0001>
module attributes {stable_mosaic.version = 11 : i64} {
  func.func @_conv3_kernel(%arg0: i32, %arg1: memref<1x64x72xf32, #tpu.memory_space<vmem>>, %arg2: memref<1x36x108xf32, #tpu.memory_space<vmem>>, %arg3: memref<1x300x144xf32, #tpu.memory_space<vmem>>, %arg4: memref<72x128xf32, #tpu.memory_space<vmem>>, %arg5: memref<108x128xf32, #tpu.memory_space<vmem>>, %arg6: memref<144x128xf32, #tpu.memory_space<vmem>>, %arg7: memref<1x128xf32, #tpu.memory_space<vmem>>, %arg8: memref<1x128xf32, #tpu.memory_space<vmem>>, %arg9: memref<1x128xf32, #tpu.memory_space<vmem>>, %arg10: memref<1x64x128xf32, #tpu.memory_space<vmem>>, %arg11: memref<1x36x128xf32, #tpu.memory_space<vmem>>, %arg12: memref<1x300x128xf32, #tpu.memory_space<vmem>>) attributes {dimension_semantics = [#tpu.dimension_semantics<parallel>], iteration_bounds = array<i64: 2>, scalar_prefetch = 0 : i64, scratch_operands = 0 : i64, tpu.core_type = #tpu.core_type<tc>, window_params = [{transform_indices = @transform_0, window_bounds = array<i64: 1, 64, 72>}, {transform_indices = @transform_1, window_bounds = array<i64: 1, 36, 108>}, {transform_indices = @transform_2, window_bounds = array<i64: 1, 300, 144>}, {pipeline_mode = #tpu.pipeline_mode<synchronous>, transform_indices = @transform_3, window_bounds = array<i64: 72, 128>}, {pipeline_mode = #tpu.pipeline_mode<synchronous>, transform_indices = @transform_4, window_bounds = array<i64: 108, 128>}, {pipeline_mode = #tpu.pipeline_mode<synchronous>, transform_indices = @transform_5, window_bounds = array<i64: 144, 128>}, {pipeline_mode = #tpu.pipeline_mode<synchronous>, transform_indices = @transform_6, window_bounds = array<i64: 1, 128>}, {pipeline_mode = #tpu.pipeline_mode<synchronous>, transform_indices = @transform_7, window_bounds = array<i64: 1, 128>}, {pipeline_mode = #tpu.pipeline_mode<synchronous>, transform_indices = @transform_8, window_bounds = array<i64: 1, 128>}, {transform_indices = @transform_9, window_bounds = array<i64: 1, 64, 128>}, {transform_indices = @transform_10, window_bounds = array<i64: 1, 36, 128>}, {transform_indices = @transform_11, window_bounds = array<i64: 1, 300, 128>}]} {
    %c0 = arith.constant 0 : index
    %c0_0 = arith.constant 0 : index
    %c0_1 = arith.constant 0 : index
    %0 = vector.load %arg1[%c0, %c0_0, %c0_1] : memref<1x64x72xf32, #tpu.memory_space<vmem>>, vector<1x64x72xf32>
    %1 = vector.shape_cast %0 : vector<1x64x72xf32> to vector<64x72xf32>
    %c0_2 = arith.constant 0 : index
    %c0_3 = arith.constant 0 : index
    %2 = vector.load %arg4[%c0_2, %c0_3] : memref<72x128xf32, #tpu.memory_space<vmem>>, vector<72x128xf32>
    %cst = arith.constant dense<0.000000e+00> : vector<64x128xf32>
    %3 = tpu.matmul %1, %2, %cst {dimension_numbers = #tpu.dot_dimension_numbers<[1], [0], [0], [1], [0, 0, 1, 1], [], []>} : vector<64x72xf32>, vector<72x128xf32>, vector<64x128xf32> -> vector<64x128xf32>
    %c0_4 = arith.constant 0 : index
    %c0_5 = arith.constant 0 : index
    %4 = vector.load %arg7[%c0_4, %c0_5] : memref<1x128xf32, #tpu.memory_space<vmem>>, vector<1x128xf32>
    %5 = vector.broadcast %4 : vector<1x128xf32> to vector<64x128xf32>
    %6 = arith.addf %3, %5 : vector<64x128xf32>
    %c0_6 = arith.constant 0 : index
    %c0_7 = arith.constant 0 : index
    %c0_8 = arith.constant 0 : index
    %7 = vector.load %arg10[%c0_6, %c0_7, %c0_8] : memref<1x64x128xf32, #tpu.memory_space<vmem>>, vector<1x64x128xf32>
    %8 = vector.shape_cast %7 : vector<1x64x128xf32> to vector<64x128xf32>
    %9 = vector.shape_cast %6 : vector<64x128xf32> to vector<1x64x128xf32>
    tpu.vector_store %arg10[%c0_6, %c0_7, %c0_8], %9 {strides = array<i32>} : memref<1x64x128xf32, #tpu.memory_space<vmem>>, vector<1x64x128xf32>,
    %c0_9 = arith.constant 0 : index
    %c0_10 = arith.constant 0 : index
    %c0_11 = arith.constant 0 : index
    %10 = vector.load %arg2[%c0_9, %c0_10, %c0_11] : memref<1x36x108xf32, #tpu.memory_space<vmem>>, vector<1x36x108xf32>
    %11 = vector.shape_cast %10 : vector<1x36x108xf32> to vector<36x108xf32>
    %c0_12 = arith.constant 0 : index
    %c0_13 = arith.constant 0 : index
    %12 = vector.load %arg5[%c0_12, %c0_13] : memref<108x128xf32, #tpu.memory_space<vmem>>, vector<108x128xf32>
    %cst_14 = arith.constant dense<0.000000e+00> : vector<36x128xf32>
    %13 = tpu.matmul %11, %12, %cst_14 {dimension_numbers = #tpu.dot_dimension_numbers<[1], [0], [0], [1], [0, 0, 1, 1], [], []>} : vector<36x108xf32>, vector<108x128xf32>, vector<36x128xf32> -> vector<36x128xf32>
    %c0_15 = arith.constant 0 : index
    %c0_16 = arith.constant 0 : index
    %14 = vector.load %arg8[%c0_15, %c0_16] : memref<1x128xf32, #tpu.memory_space<vmem>>, vector<1x128xf32>
    %15 = vector.broadcast %14 : vector<1x128xf32> to vector<36x128xf32>
    %16 = arith.addf %13, %15 : vector<36x128xf32>
    %c0_17 = arith.constant 0 : index
    %c0_18 = arith.constant 0 : index
    %c0_19 = arith.constant 0 : index
    %17 = vector.load %arg11[%c0_17, %c0_18, %c0_19] : memref<1x36x128xf32, #tpu.memory_space<vmem>>, vector<1x36x128xf32>
    %18 = vector.shape_cast %17 : vector<1x36x128xf32> to vector<36x128xf32>
    %19 = vector.shape_cast %16 : vector<36x128xf32> to vector<1x36x128xf32>
    tpu.vector_store %arg11[%c0_17, %c0_18, %c0_19], %19 {strides = array<i32>} : memref<1x36x128xf32, #tpu.memory_space<vmem>>, vector<1x36x128xf32>,
    %c0_20 = arith.constant 0 : index
    %c0_21 = arith.constant 0 : index
    %c0_22 = arith.constant 0 : index
    %20 = vector.load %arg3[%c0_20, %c0_21, %c0_22] : memref<1x300x144xf32, #tpu.memory_space<vmem>>, vector<1x300x144xf32>
    %21 = vector.shape_cast %20 : vector<1x300x144xf32> to vector<300x144xf32>
    %c0_23 = arith.constant 0 : index
    %c0_24 = arith.constant 0 : index
    %22 = vector.load %arg6[%c0_23, %c0_24] : memref<144x128xf32, #tpu.memory_space<vmem>>, vector<144x128xf32>
    %cst_25 = arith.constant dense<0.000000e+00> : vector<300x128xf32>
    %23 = tpu.matmul %21, %22, %cst_25 {dimension_numbers = #tpu.dot_dimension_numbers<[1], [0], [0], [1], [0, 0, 1, 1], [], []>} : vector<300x144xf32>, vector<144x128xf32>, vector<300x128xf32> -> vector<300x128xf32>
    %c0_26 = arith.constant 0 : index
    %c0_27 = arith.constant 0 : index
    %24 = vector.load %arg9[%c0_26, %c0_27] : memref<1x128xf32, #tpu.memory_space<vmem>>, vector<1x128xf32>
    %25 = vector.broadcast %24 : vector<1x128xf32> to vector<300x128xf32>
    %26 = arith.addf %23, %25 : vector<300x128xf32>
    %c0_28 = arith.constant 0 : index
    %c0_29 = arith.constant 0 : index
    %c0_30 = arith.constant 0 : index
    %27 = vector.load %arg12[%c0_28, %c0_29, %c0_30] : memref<1x300x128xf32, #tpu.memory_space<vmem>>, vector<1x300x128xf32>
    %28 = vector.shape_cast %27 : vector<1x300x128xf32> to vector<300x128xf32>
    %29 = vector.shape_cast %26 : vector<300x128xf32> to vector<1x300x128xf32>
    tpu.vector_store %arg12[%c0_28, %c0_29, %c0_30], %29 {strides = array<i32>} : memref<1x300x128xf32, #tpu.memory_space<vmem>>, vector<1x300x128xf32>,
    return
  }
  func.func @transform_0(%arg0: i32) -> (i32, i32, i32) {
    %c0_i32 = arith.constant 0 : i32
    %c0_i32_0 = arith.constant 0 : i32
    %c0_i32_1 = arith.constant 0 : i32
    return %arg0, %c0_i32, %c0_i32_0 : i32, i32, i32
  }
  func.func @transform_1(%arg0: i32) -> (i32, i32, i32) {
    %c0_i32 = arith.constant 0 : i32
    %c0_i32_0 = arith.constant 0 : i32
    %c0_i32_1 = arith.constant 0 : i32
    return %arg0, %c0_i32, %c0_i32_0 : i32, i32, i32
  }
  func.func @transform_2(%arg0: i32) -> (i32, i32, i32) {
    %c0_i32 = arith.constant 0 : i32
    %c0_i32_0 = arith.constant 0 : i32
    %c0_i32_1 = arith.constant 0 : i32
    return %arg0, %c0_i32, %c0_i32_0 : i32, i32, i32
  }
  func.func @transform_3(%arg0: i32) -> (i32, i32) {
    %c0_i32 = arith.constant 0 : i32
    %c0_i32_0 = arith.constant 0 : i32
    %c0_i32_1 = arith.constant 0 : i32
    return %c0_i32, %c0_i32_0 : i32, i32
  }
  func.func @transform_4(%arg0: i32) -> (i32, i32) {
    %c0_i32 = arith.constant 0 : i32
    %c0_i32_0 = arith.constant 0 : i32
    %c0_i32_1 = arith.constant 0 : i32
    return %c0_i32, %c0_i32_0 : i32, i32
  }
  func.func @transform_5(%arg0: i32) -> (i32, i32) {
    %c0_i32 = arith.constant 0 : i32
    %c0_i32_0 = arith.constant 0 : i32
    %c0_i32_1 = arith.constant 0 : i32
    return %c0_i32, %c0_i32_0 : i32, i32
  }
  func.func @transform_6(%arg0: i32) -> (i32, i32) {
    %c0_i32 = arith.constant 0 : i32
    %c0_i32_0 = arith.constant 0 : i32
    %c0_i32_1 = arith.constant 0 : i32
    return %c0_i32, %c0_i32_0 : i32, i32
  }
  func.func @transform_7(%arg0: i32) -> (i32, i32) {
    %c0_i32 = arith.constant 0 : i32
    %c0_i32_0 = arith.constant 0 : i32
    %c0_i32_1 = arith.constant 0 : i32
    return %c0_i32, %c0_i32_0 : i32, i32
  }
  func.func @transform_8(%arg0: i32) -> (i32, i32) {
    %c0_i32 = arith.constant 0 : i32
    %c0_i32_0 = arith.constant 0 : i32
    %c0_i32_1 = arith.constant 0 : i32
    return %c0_i32, %c0_i32_0 : i32, i32
  }
  func.func @transform_9(%arg0: i32) -> (i32, i32, i32) {
    %c0_i32 = arith.constant 0 : i32
    %c0_i32_0 = arith.constant 0 : i32
    %c0_i32_1 = arith.constant 0 : i32
    return %arg0, %c0_i32, %c0_i32_0 : i32, i32, i32
  }
  func.func @transform_10(%arg0: i32) -> (i32, i32, i32) {
    %c0_i32 = arith.constant 0 : i32
    %c0_i32_0 = arith.constant 0 : i32
    %c0_i32_1 = arith.constant 0 : i32
    return %arg0, %c0_i32, %c0_i32_0 : i32, i32, i32
  }
  func.func @transform_11(%arg0: i32) -> (i32, i32, i32) {
    %c0_i32 = arith.constant 0 : i32
    %c0_i32_0 = arith.constant 0 : i32
    %c0_i32_1 = arith.constant 0 : i32
    return %arg0, %c0_i32, %c0_i32_0 : i32, i32, i32
  }
}

module attributes {stable_mosaic.version = 11 : i64} {
  func.func @_attn_kernel(%arg0: i32, %arg1: memref<16x16xf32, #tpu.memory_space<vmem>>, %arg2: memref<1x64x16xf32, #tpu.memory_space<vmem>>, %arg3: memref<1x2x36x16xf32, #tpu.memory_space<vmem>>, %arg4: memref<1x3x128x16xf32, #tpu.memory_space<vmem>>, %arg5: memref<1x64x128xf32, #tpu.memory_space<vmem>>) attributes {dimension_semantics = [#tpu.dimension_semantics<parallel>], iteration_bounds = array<i64: 2>, scalar_prefetch = 0 : i64, scratch_operands = 0 : i64, tpu.core_type = #tpu.core_type<tc>, window_params = [{pipeline_mode = #tpu.pipeline_mode<synchronous>, transform_indices = @transform_0, window_bounds = array<i64: 16, 16>}, {transform_indices = @transform_1, window_bounds = array<i64: 1, 64, 16>}, {transform_indices = @transform_2, window_bounds = array<i64: 1, 2, 36, 16>}, {transform_indices = @transform_3, window_bounds = array<i64: 1, 3, 128, 16>}, {transform_indices = @transform_4, window_bounds = array<i64: 1, 64, 128>}]} {
    %c0 = arith.constant 0 : index
    %c0_0 = arith.constant 0 : index
    %c0_1 = arith.constant 0 : index
    %0 = vector.load %arg2[%c0, %c0_0, %c0_1] : memref<1x64x16xf32, #tpu.memory_space<vmem>>, vector<1x64x16xf32>
    %1 = vector.shape_cast %0 : vector<1x64x16xf32> to vector<64x16xf32>
    %c0_2 = arith.constant 0 : index
    %c0_3 = arith.constant 0 : index
    %2 = vector.load %arg1[%c0_2, %c0_3] : memref<16x16xf32, #tpu.memory_space<vmem>>, vector<16x16xf32>
    %cst = arith.constant 0.000000e+00 : f32
    %3 = vector.broadcast %cst : f32 to vector<64x128xf32>
    %c0_4 = arith.constant 0 : index
    %c0_5 = arith.constant 0 : index
    %c0_6 = arith.constant 0 : index
    %c0_7 = arith.constant 0 : index
    %4 = vector.load %arg3[%c0_4, %c0_5, %c0_6, %c0_7] : memref<1x2x36x16xf32, #tpu.memory_space<vmem>>, vector<1x1x36x16xf32>
    %5 = vector.shape_cast %4 : vector<1x1x36x16xf32> to vector<36x16xf32>
    %cst_8 = arith.constant dense<0.000000e+00> : vector<16x16xf32>
    %6 = tpu.matmul %5, %5, %cst_8 {dimension_numbers = #tpu.dot_dimension_numbers<[0], [0], [1], [1], [0, 1, 1, 1], [], []>} : vector<36x16xf32>, vector<36x16xf32>, vector<16x16xf32> -> vector<16x16xf32>
    %7 = math.tanh %6 : vector<16x16xf32>
    %8 = arith.addf %7, %2 : vector<16x16xf32>
    %cst_9 = arith.constant dense<0.000000e+00> : vector<64x16xf32>
    %9 = tpu.matmul %1, %8, %cst_9 {dimension_numbers = #tpu.dot_dimension_numbers<[1], [0], [0], [1], [0, 0, 1, 1], [], []>} : vector<64x16xf32>, vector<16x16xf32>, vector<64x16xf32> -> vector<64x16xf32>
    %c0_10 = arith.constant 0 : index
    %c0_11 = arith.constant 0 : index
    %c0_12 = arith.constant 0 : index
    %c0_13 = arith.constant 0 : index
    %10 = vector.load %arg4[%c0_10, %c0_11, %c0_12, %c0_13] : memref<1x3x128x16xf32, #tpu.memory_space<vmem>>, vector<1x1x128x16xf32>
    %11 = vector.shape_cast %10 : vector<1x1x128x16xf32> to vector<128x16xf32>
    %cst_14 = arith.constant dense<0.000000e+00> : vector<64x128xf32>
    %12 = tpu.matmul %9, %11, %cst_14 {dimension_numbers = #tpu.dot_dimension_numbers<[1], [1], [0], [0], [0, 0, 1, 0], [], []>} : vector<64x16xf32>, vector<128x16xf32>, vector<64x128xf32> -> vector<64x128xf32>
    %13 = math.tanh %12 : vector<64x128xf32>
    %14 = arith.addf %3, %13 : vector<64x128xf32>
    %c0_15 = arith.constant 0 : index
    %c1 = arith.constant 1 : index
    %c0_16 = arith.constant 0 : index
    %c0_17 = arith.constant 0 : index
    %15 = vector.load %arg4[%c0_15, %c1, %c0_16, %c0_17] : memref<1x3x128x16xf32, #tpu.memory_space<vmem>>, vector<1x1x128x16xf32>
    %16 = vector.shape_cast %15 : vector<1x1x128x16xf32> to vector<128x16xf32>
    %cst_18 = arith.constant dense<0.000000e+00> : vector<64x128xf32>
    %17 = tpu.matmul %9, %16, %cst_18 {dimension_numbers = #tpu.dot_dimension_numbers<[1], [1], [0], [0], [0, 0, 1, 0], [], []>} : vector<64x16xf32>, vector<128x16xf32>, vector<64x128xf32> -> vector<64x128xf32>
    %18 = math.tanh %17 : vector<64x128xf32>
    %19 = arith.addf %14, %18 : vector<64x128xf32>
    %c0_19 = arith.constant 0 : index
    %c2 = arith.constant 2 : index
    %c0_20 = arith.constant 0 : index
    %c0_21 = arith.constant 0 : index
    %20 = vector.load %arg4[%c0_19, %c2, %c0_20, %c0_21] : memref<1x3x128x16xf32, #tpu.memory_space<vmem>>, vector<1x1x128x16xf32>
    %21 = vector.shape_cast %20 : vector<1x1x128x16xf32> to vector<128x16xf32>
    %cst_22 = arith.constant dense<0.000000e+00> : vector<64x128xf32>
    %22 = tpu.matmul %9, %21, %cst_22 {dimension_numbers = #tpu.dot_dimension_numbers<[1], [1], [0], [0], [0, 0, 1, 0], [], []>} : vector<64x16xf32>, vector<128x16xf32>, vector<64x128xf32> -> vector<64x128xf32>
    %23 = math.tanh %22 : vector<64x128xf32>
    %24 = arith.addf %19, %23 : vector<64x128xf32>
    %c0_23 = arith.constant 0 : index
    %c1_24 = arith.constant 1 : index
    %c0_25 = arith.constant 0 : index
    %c0_26 = arith.constant 0 : index
    %25 = vector.load %arg3[%c0_23, %c1_24, %c0_25, %c0_26] : memref<1x2x36x16xf32, #tpu.memory_space<vmem>>, vector<1x1x36x16xf32>
    %26 = vector.shape_cast %25 : vector<1x1x36x16xf32> to vector<36x16xf32>
    %cst_27 = arith.constant dense<0.000000e+00> : vector<16x16xf32>
    %27 = tpu.matmul %26, %26, %cst_27 {dimension_numbers = #tpu.dot_dimension_numbers<[0], [0], [1], [1], [0, 1, 1, 1], [], []>} : vector<36x16xf32>, vector<36x16xf32>, vector<16x16xf32> -> vector<16x16xf32>
    %28 = math.tanh %27 : vector<16x16xf32>
    %29 = arith.addf %28, %2 : vector<16x16xf32>
    %cst_28 = arith.constant dense<0.000000e+00> : vector<64x16xf32>
    %30 = tpu.matmul %1, %29, %cst_28 {dimension_numbers = #tpu.dot_dimension_numbers<[1], [0], [0], [1], [0, 0, 1, 1], [], []>} : vector<64x16xf32>, vector<16x16xf32>, vector<64x16xf32> -> vector<64x16xf32>
    %c0_29 = arith.constant 0 : index
    %c0_30 = arith.constant 0 : index
    %c0_31 = arith.constant 0 : index
    %c0_32 = arith.constant 0 : index
    %31 = vector.load %arg4[%c0_29, %c0_30, %c0_31, %c0_32] : memref<1x3x128x16xf32, #tpu.memory_space<vmem>>, vector<1x1x128x16xf32>
    %32 = vector.shape_cast %31 : vector<1x1x128x16xf32> to vector<128x16xf32>
    %cst_33 = arith.constant dense<0.000000e+00> : vector<64x128xf32>
    %33 = tpu.matmul %30, %32, %cst_33 {dimension_numbers = #tpu.dot_dimension_numbers<[1], [1], [0], [0], [0, 0, 1, 0], [], []>} : vector<64x16xf32>, vector<128x16xf32>, vector<64x128xf32> -> vector<64x128xf32>
    %34 = math.tanh %33 : vector<64x128xf32>
    %35 = arith.addf %24, %34 : vector<64x128xf32>
    %c0_34 = arith.constant 0 : index
    %c1_35 = arith.constant 1 : index
    %c0_36 = arith.constant 0 : index
    %c0_37 = arith.constant 0 : index
    %36 = vector.load %arg4[%c0_34, %c1_35, %c0_36, %c0_37] : memref<1x3x128x16xf32, #tpu.memory_space<vmem>>, vector<1x1x128x16xf32>
    %37 = vector.shape_cast %36 : vector<1x1x128x16xf32> to vector<128x16xf32>
    %cst_38 = arith.constant dense<0.000000e+00> : vector<64x128xf32>
    %38 = tpu.matmul %30, %37, %cst_38 {dimension_numbers = #tpu.dot_dimension_numbers<[1], [1], [0], [0], [0, 0, 1, 0], [], []>} : vector<64x16xf32>, vector<128x16xf32>, vector<64x128xf32> -> vector<64x128xf32>
    %39 = math.tanh %38 : vector<64x128xf32>
    %40 = arith.addf %35, %39 : vector<64x128xf32>
    %c0_39 = arith.constant 0 : index
    %c2_40 = arith.constant 2 : index
    %c0_41 = arith.constant 0 : index
    %c0_42 = arith.constant 0 : index
    %41 = vector.load %arg4[%c0_39, %c2_40, %c0_41, %c0_42] : memref<1x3x128x16xf32, #tpu.memory_space<vmem>>, vector<1x1x128x16xf32>
    %42 = vector.shape_cast %41 : vector<1x1x128x16xf32> to vector<128x16xf32>
    %cst_43 = arith.constant dense<0.000000e+00> : vector<64x128xf32>
    %43 = tpu.matmul %30, %42, %cst_43 {dimension_numbers = #tpu.dot_dimension_numbers<[1], [1], [0], [0], [0, 0, 1, 0], [], []>} : vector<64x16xf32>, vector<128x16xf32>, vector<64x128xf32> -> vector<64x128xf32>
    %44 = math.tanh %43 : vector<64x128xf32>
    %45 = arith.addf %40, %44 : vector<64x128xf32>
    %cst_44 = arith.constant 0.000000e+00 : f32
    %46 = vector.broadcast %cst_44 : f32 to vector<64x128xf32>
    %47 = arith.maximumf %45, %46 : vector<64x128xf32>
    %c0_45 = arith.constant 0 : index
    %c0_46 = arith.constant 0 : index
    %c0_47 = arith.constant 0 : index
    %48 = vector.load %arg5[%c0_45, %c0_46, %c0_47] : memref<1x64x128xf32, #tpu.memory_space<vmem>>, vector<1x64x128xf32>
    %49 = vector.shape_cast %48 : vector<1x64x128xf32> to vector<64x128xf32>
    %50 = vector.shape_cast %47 : vector<64x128xf32> to vector<1x64x128xf32>
    tpu.vector_store %arg5[%c0_45, %c0_46, %c0_47], %50 {strides = array<i32>} : memref<1x64x128xf32, #tpu.memory_space<vmem>>, vector<1x64x128xf32>,
    return
  }
  func.func @transform_0(%arg0: i32) -> (i32, i32) {
    %c0_i32 = arith.constant 0 : i32
    %c0_i32_0 = arith.constant 0 : i32
    %c0_i32_1 = arith.constant 0 : i32
    return %c0_i32, %c0_i32_0 : i32, i32
  }
  func.func @transform_1(%arg0: i32) -> (i32, i32, i32) {
    %c0_i32 = arith.constant 0 : i32
    %c0_i32_0 = arith.constant 0 : i32
    %c0_i32_1 = arith.constant 0 : i32
    return %arg0, %c0_i32, %c0_i32_0 : i32, i32, i32
  }
  func.func @transform_2(%arg0: i32) -> (i32, i32, i32, i32) {
    %c0_i32 = arith.constant 0 : i32
    %c0_i32_0 = arith.constant 0 : i32
    %c0_i32_1 = arith.constant 0 : i32
    %c0_i32_2 = arith.constant 0 : i32
    return %arg0, %c0_i32, %c0_i32_0, %c0_i32_1 : i32, i32, i32, i32
  }
  func.func @transform_3(%arg0: i32) -> (i32, i32, i32, i32) {
    %c0_i32 = arith.constant 0 : i32
    %c0_i32_0 = arith.constant 0 : i32
    %c0_i32_1 = arith.constant 0 : i32
    %c0_i32_2 = arith.constant 0 : i32
    return %arg0, %c0_i32, %c0_i32_0, %c0_i32_1 : i32, i32, i32, i32
  }
  func.func @transform_4(%arg0: i32) -> (i32, i32, i32) {
    %c0_i32 = arith.constant 0 : i32
    %c0_i32_0 = arith.constant 0 : i32
    %c0_i32_1 = arith.constant 0 : i32
    return %arg0, %c0_i32, %c0_i32_0 : i32, i32, i32
  }
}

</mosaic_0001>

<llo_original>
// kernel: encoder_ae_forward.2
$region0: #{encoder_ae_forward.2}
  #allocation0 [shape = 'u32[]', space=smem, size = 0x4, offset = 0x4, fixed_abs, tag = 'smem constant byte address 0x4 - core index']
  #allocation1 [shape = 'u32[144,128]{1,0:T(1,128)}', space=vmem, size = 0x12000, scoped, tag = 'internal scratch']
  %s0 = inlined_call_operand.vmem [shape: f32[2,64,72], index: 0, kind: input, shape index: {}]
  %s1 = inlined_call_operand.vmem [shape: f32[2,36,108], index: 1, kind: input, shape index: {}]
  %s2 = inlined_call_operand.vmem [shape: f32[2,300,144], index: 2, kind: input, shape index: {}]
  %s3 = inlined_call_operand.vmem [shape: f32[72,128], index: 3, kind: input, shape index: {}]
  %s4 = inlined_call_operand.vmem [shape: f32[108,128], index: 4, kind: input, shape index: {}]
  %s5 = inlined_call_operand.vmem [shape: f32[144,128], index: 5, kind: input, shape index: {}]
  %s6 = inlined_call_operand.vmem [shape: f32[1,128], index: 6, kind: input, shape index: {}]
  %s7 = inlined_call_operand.vmem [shape: f32[1,128], index: 7, kind: input, shape index: {}]
  %s8 = inlined_call_operand.vmem [shape: f32[1,128], index: 8, kind: input, shape index: {}]
  %s9 = inlined_call_operand.vmem [shape: f32[2,64,128], index: 9, kind: output, shape index: {0}]
  %s10 = inlined_call_operand.vmem [shape: f32[2,36,128], index: 10, kind: output, shape index: {1}]
  %s11 = inlined_call_operand.vmem [shape: f32[2,300,128], index: 11, kind: output, shape index: {2}]
  %12 = xla_tuple %s9, %s10, %s11
  %s13 = sld [smem:[#allocation0]]
  $region85: #{encoder_ae_forward.2} parent=0
    _
  %s15 = ssub.s32 1, %s13
  %s16 = scalar_select 0, %s15, %s13
  loop: start=0, step=1, limit=4
  $region2: #{encoder_ae_forward.2} parent=0 // loop_pre_header
    _
  $region3: #{encoder_ae_forward.2} parent=0 // loop_header
    %s18 = sphi 0, %s22
    %p19 = scmp.ge.s32.totalorder %s18, 4
    %s28 = sphi 0, %s30
    %s31 = sphi 0, %s28
    %s32 = sphi 0, %s31
    %s48 = sphi 0, %s32
    %s54 = sphi 0, %s56
    %s57 = sphi 0, %s54
    %s58 = sphi 0, %s57
    %s74 = sphi 0, %s58
    %s80 = sphi 0, %s82
    %s83 = sphi 0, %s80
    %s84 = sphi 0, %s83
    %s100 = sphi 0, %s84
    %s104 = sphi 0, %s104
    %s106 = sphi 0, %s104
    %s107 = sphi 0, %s106
    %s121 = sphi 0, %s107
    %s125 = sphi 0, %s125
    %s127 = sphi 0, %s125
    %s128 = sphi 0, %s127
    %s142 = sphi 0, %s128
    %s146 = sphi 0, %s146
    %s148 = sphi 0, %s146
    %s149 = sphi 0, %s148
    %s163 = sphi 0, %s149
    %s167 = sphi 0, %s167
    %s169 = sphi 0, %s167
    %s170 = sphi 0, %s169
    %s184 = sphi 0, %s170
    %s188 = sphi 0, %s188
    %s190 = sphi 0, %s188
    %s191 = sphi 0, %s190
    %s205 = sphi 0, %s191
    %s209 = sphi 0, %s209
    %s211 = sphi 0, %s209
    %s212 = sphi 0, %s211
    %s226 = sphi 0, %s212
    %s232 = sphi 0, %s234
    %s235 = sphi 0, %s232
    %s236 = sphi 0, %s235
    %s252 = sphi 0, %s236
    %s258 = sphi 0, %s260
    %s261 = sphi 0, %s258
    %s262 = sphi 0, %s261
    %s278 = sphi 0, %s262
    %s284 = sphi 0, %s286
    %s287 = sphi 0, %s284
    %s288 = sphi 0, %s287
    %s304 = sphi 0, %s288
  $region4: #{encoder_ae_forward.2} parent=0 // loop_header_branch
    %21 = sbr.rel (%p19) target = $region8
  $region5: #{encoder_ae_forward.2} parent=0 // loop_body
    %s23 = ssub.s32 %s18, 1
    %s24 = ssub.s32 %s18, 2
    %s25 = sadd.s32 %s18, 1
    %s26 = ssub.s32 %s18, %s25
    %p27 = scmp.eq.s32.totalorder %s26, 0
    %s29 = sadd.s32 %s28, 1
    %s30 = scalar_select %p27, %s28, %s29
    %p33 = pneg %p27
    %p34 = scmp.eq.s32.totalorder %s18, 1
    %p35 = por %p33, %p34
    %p36 = scmp.ne.s32.totalorder %s28, %s31
    %p37 = scmp.eq.s32.totalorder %s18, 0
    %p38 = por %p36, %p37
    %p39 = scmp.ne.s32.totalorder %s28, %s31
    %p40 = scmp.eq.s32.totalorder %s23, 1
    %p41 = por %p39, %p40
    %p42 = scmp.ne.s32.totalorder %s31, %s32
    %p43 = scmp.eq.s32.totalorder %s23, 0
    %p44 = por %p42, %p43
    %p45 = scmp.ne.s32.totalorder %s31, %s32
    %p46 = scmp.eq.s32.totalorder %s24, 1
    %p47 = por %p45, %p46
    %p49 = scmp.ne.s32.totalorder %s32, %s48
    %p50 = scmp.eq.s32.totalorder %s24, 0
    %p51 = por %p49, %p50
    %s52 = ssub.s32 %s18, %s25
    %p53 = scmp.eq.s32.totalorder %s52, 0
    %s55 = sadd.s32 %s54, 1
    %s56 = scalar_select %p53, %s54, %s55
    %p59 = pneg %p53
    %p60 = scmp.eq.s32.totalorder %s18, 1
    %p61 = por %p59, %p60
    %p62 = scmp.ne.s32.totalorder %s54, %s57
    %p63 = scmp.eq.s32.totalorder %s18, 0
    %p64 = por %p62, %p63
    %p65 = scmp.ne.s32.totalorder %s54, %s57
    %p66 = scmp.eq.s32.totalorder %s23, 1
    %p67 = por %p65, %p66
    %p68 = scmp.ne.s32.totalorder %s57, %s58
    %p69 = scmp.eq.s32.totalorder %s23, 0
    %p70 = por %p68, %p69
    %p71 = scmp.ne.s32.totalorder %s57, %s58
    %p72 = scmp.eq.s32.totalorder %s24, 1
    %p73 = por %p71, %p72
    %p75 = scmp.ne.s32.totalorder %s58, %s74
    %p76 = scmp.eq.s32.totalorder %s24, 0
    %p77 = por %p75, %p76
    %s78 = ssub.s32 %s18, %s25
    %p79 = scmp.eq.s32.totalorder %s78, 0
    %s81 = sadd.s32 %s80, 1
    %s82 = scalar_select %p79, %s80, %s81
    %p85 = pneg %p79
    %p86 = scmp.eq.s32.totalorder %s18, 1
    %p87 = por %p85, %p86
    %p88 = scmp.ne.s32.totalorder %s80, %s83
    %p89 = scmp.eq.s32.totalorder %s18, 0
    %p90 = por %p88, %p89
    %p91 = scmp.ne.s32.totalorder %s80, %s83
    %p92 = scmp.eq.s32.totalorder %s23, 1
    %p93 = por %p91, %p92
    %p94 = scmp.ne.s32.totalorder %s83, %s84
    %p95 = scmp.eq.s32.totalorder %s23, 0
    %p96 = por %p94, %p95
    %p97 = scmp.ne.s32.totalorder %s83, %s84
    %p98 = scmp.eq.s32.totalorder %s24, 1
    %p99 = por %p97, %p98
    %p101 = scmp.ne.s32.totalorder %s84, %s100
    %p102 = scmp.eq.s32.totalorder %s24, 0
    %p103 = por %p101, %p102
    %s105 = sadd.s32 %s104, 1
    %p108 = scmp.eq.s32.totalorder %s18, 1
    %p109 = scmp.ne.s32.totalorder %s104, %s106
    %p110 = scmp.eq.s32.totalorder %s18, 0
    %p111 = por %p109, %p110
    %p112 = scmp.ne.s32.totalorder %s104, %s106
    %p113 = scmp.eq.s32.totalorder %s23, 1
    %p114 = por %p112, %p113
    %p115 = scmp.ne.s32.totalorder %s106, %s107
    %p116 = scmp.eq.s32.totalorder %s23, 0
    %p117 = por %p115, %p116
    %p118 = scmp.ne.s32.totalorder %s106, %s107
    %p119 = scmp.eq.s32.totalorder %s24, 1
    %p120 = por %p118, %p119
    %p122 = scmp.ne.s32.totalorder %s107, %s121
    %p123 = scmp.eq.s32.totalorder %s24, 0
    %p124 = por %p122, %p123
    %s126 = sadd.s32 %s125, 1
    %p129 = scmp.eq.s32.totalorder %s18, 1
    %p130 = scmp.ne.s32.totalorder %s125, %s127
    %p131 = scmp.eq.s32.totalorder %s18, 0
    %p132 = por %p130, %p131
    %p133 = scmp.ne.s32.totalorder %s125, %s127
    %p134 = scmp.eq.s32.totalorder %s23, 1
    %p135 = por %p133, %p134
    %p136 = scmp.ne.s32.totalorder %s127, %s128
    %p137 = scmp.eq.s32.totalorder %s23, 0
    %p138 = por %p136, %p137
    %p139 = scmp.ne.s32.totalorder %s127, %s128
    %p140 = scmp.eq.s32.totalorder %s24, 1
    %p141 = por %p139, %p140
    %p143 = scmp.ne.s32.totalorder %s128, %s142
    %p144 = scmp.eq.s32.totalorder %s24, 0
    %p145 = por %p143, %p144
    %s147 = sadd.s32 %s146, 1
    %p150 = scmp.eq.s32.totalorder %s18, 1
    %p151 = scmp.ne.s32.totalorder %s146, %s148
    %p152 = scmp.eq.s32.totalorder %s18, 0
    %p153 = por %p151, %p152
    %p154 = scmp.ne.s32.totalorder %s146, %s148
    %p155 = scmp.eq.s32.totalorder %s23, 1
    %p156 = por %p154, %p155
    %p157 = scmp.ne.s32.totalorder %s148, %s149
    %p158 = scmp.eq.s32.totalorder %s23, 0
    %p159 = por %p157, %p158
    %p160 = scmp.ne.s32.totalorder %s148, %s149
    %p161 = scmp.eq.s32.totalorder %s24, 1
    %p162 = por %p160, %p161
    %p164 = scmp.ne.s32.totalorder %s149, %s163
    %p165 = scmp.eq.s32.totalorder %s24, 0
    %p166 = por %p164, %p165
    %s168 = sadd.s32 %s167, 1
    %p171 = scmp.eq.s32.totalorder %s18, 1
    %p172 = scmp.ne.s32.totalorder %s167, %s169
    %p173 = scmp.eq.s32.totalorder %s18, 0
    %p174 = por %p172, %p173
    %p175 = scmp.ne.s32.totalorder %s167, %s169
    %p176 = scmp.eq.s32.totalorder %s23, 1
    %p177 = por %p175, %p176
    %p178 = scmp.ne.s32.totalorder %s169, %s170
    %p179 = scmp.eq.s32.totalorder %s23, 0
    %p180 = por %p178, %p179
    %p181 = scmp.ne.s32.totalorder %s169, %s170
    %p182 = scmp.eq.s32.totalorder %s24, 1
    %p183 = por %p181, %p182
    %p185 = scmp.ne.s32.totalorder %s170, %s184
    %p186 = scmp.eq.s32.totalorder %s24, 0
    %p187 = por %p185, %p186
    %s189 = sadd.s32 %s188, 1
    %p192 = scmp.eq.s32.totalorder %s18, 1
    %p193 = scmp.ne.s32.totalorder %s188, %s190
    %p194 = scmp.eq.s32.totalorder %s18, 0
    %p195 = por %p193, %p194
    %p196 = scmp.ne.s32.totalorder %s188, %s190
    %p197 = scmp.eq.s32.totalorder %s23, 1
    %p198 = por %p196, %p197
    %p199 = scmp.ne.s32.totalorder %s190, %s191
    %p200 = scmp.eq.s32.totalorder %s23, 0
    %p201 = por %p199, %p200
    %p202 = scmp.ne.s32.totalorder %s190, %s191
    %p203 = scmp.eq.s32.totalorder %s24, 1
    %p204 = por %p202, %p203
    %p206 = scmp.ne.s32.totalorder %s191, %s205
    %p207 = scmp.eq.s32.totalorder %s24, 0
    %p208 = por %p206, %p207
    %s210 = sadd.s32 %s209, 1
    %p213 = scmp.eq.s32.totalorder %s18, 1
    %p214 = scmp.ne.s32.totalorder %s209, %s211
    %p215 = scmp.eq.s32.totalorder %s18, 0
    %p216 = por %p214, %p215
    %p217 = scmp.ne.s32.totalorder %s209, %s211
    %p218 = scmp.eq.s32.totalorder %s23, 1
    %p219 = por %p217, %p218
    %p220 = scmp.ne.s32.totalorder %s211, %s212
    %p221 = scmp.eq.s32.totalorder %s23, 0
    %p222 = por %p220, %p221
    %p223 = scmp.ne.s32.totalorder %s211, %s212
    %p224 = scmp.eq.s32.totalorder %s24, 1
    %p225 = por %p223, %p224
    %p227 = scmp.ne.s32.totalorder %s212, %s226
    %p228 = scmp.eq.s32.totalorder %s24, 0
    %p229 = por %p227, %p228
    %s230 = ssub.s32 %s18, %s25
    %p231 = scmp.eq.s32.totalorder %s230, 0
    %s233 = sadd.s32 %s232, 1
    %s234 = scalar_select %p231, %s232, %s233
    %p237 = pneg %p231
    %p238 = scmp.eq.s32.totalorder %s18, 1
    %p239 = por %p237, %p238
    %p240 = scmp.ne.s32.totalorder %s232, %s235
    %p241 = scmp.eq.s32.totalorder %s18, 0
    %p242 = por %p240, %p241
    %p243 = scmp.ne.s32.totalorder %s232, %s235
    %p244 = scmp.eq.s32.totalorder %s23, 1
    %p245 = por %p243, %p244
    %p246 = scmp.ne.s32.totalorder %s235, %s236
    %p247 = scmp.eq.s32.totalorder %s23, 0
    %p248 = por %p246, %p247
    %p249 = scmp.ne.s32.totalorder %s235, %s236
    %p250 = scmp.eq.s32.totalorder %s24, 1
    %p251 = por %p249, %p250
    %p253 = scmp.ne.s32.totalorder %s236, %s252
    %p254 = scmp.eq.s32.totalorder %s24, 0
    %p255 = por %p253, %p254
    %s256 = ssub.s32 %s18, %s25
    %p257 = scmp.eq.s32.totalorder %s256, 0
    %s259 = sadd.s32 %s258, 1
    %s260 = scalar_select %p257, %s258, %s259
    %p263 = pneg %p257
    %p264 = scmp.eq.s32.totalorder %s18, 1
    %p265 = por %p263, %p264
    %p266 = scmp.ne.s32.totalorder %s258, %s261
    %p267 = scmp.eq.s32.totalorder %s18, 0
    %p268 = por %p266, %p267
    %p269 = scmp.ne.s32.totalorder %s258, %s261
    %p270 = scmp.eq.s32.totalorder %s23, 1
    %p271 = por %p269, %p270
    %p272 = scmp.ne.s32.totalorder %s261, %s262
    %p273 = scmp.eq.s32.totalorder %s23, 0
    %p274 = por %p272, %p273
    %p275 = scmp.ne.s32.totalorder %s261, %s262
    %p276 = scmp.eq.s32.totalorder %s24, 1
    %p277 = por %p275, %p276
    %p279 = scmp.ne.s32.totalorder %s262, %s278
    %p280 = scmp.eq.s32.totalorder %s24, 0
    %p281 = por %p279, %p280
    %s282 = ssub.s32 %s18, %s25
    %p283 = scmp.eq.s32.totalorder %s282, 0
    %s285 = sadd.s32 %s284, 1
    %s286 = scalar_select %p283, %s284, %s285
    %p289 = pneg %p283
    %p290 = scmp.eq.s32.totalorder %s18, 1
    %p291 = por %p289, %p290
    %p292 = scmp.ne.s32.totalorder %s284, %s287
    %p293 = scmp.eq.s32.totalorder %s18, 0
    %p294 = por %p292, %p293
    %p295 = scmp.ne.s32.totalorder %s284, %s287
    %p296 = scmp.eq.s32.totalorder %s23, 1
    %p297 = por %p295, %p296
    %p298 = scmp.ne.s32.totalorder %s287, %s288
    %p299 = scmp.eq.s32.totalorder %s23, 0
    %p300 = por %p298, %p299
    %p301 = scmp.ne.s32.totalorder %s287, %s288
    %p302 = scmp.eq.s32.totalorder %s24, 1
    %p303 = por %p301, %p302
    %p305 = scmp.ne.s32.totalorder %s288, %s304
    %p306 = scmp.eq.s32.totalorder %s24, 0
    %p307 = por %p305, %p306
    %p308 = scmp.le.s32.totalorder 1, %s18
    %p309 = scmp.lt.s32.totalorder %s18, 3
    %p310 = pnand %p308, %p309
    %p311 = pneg %p310
    // Predicated region
    $region9: #{encoder_ae_forward.2} parent=5 // pred_check
      _
    $region10: #{encoder_ae_forward.2} parent=5 // pred_check_branch
      %313 = sbr.rel (%p310) target = $region12
    $region11: #{encoder_ae_forward.2} parent=5 // pred_region
      %s314 = ssub.s32 %s18, 1
      // Predicated region
      $region13: #{encoder_ae_forward.2} parent=11 // pred_check
        %p315 = pneg %p117
      $region14: #{encoder_ae_forward.2} parent=11 // pred_check_branch
        %317 = sbr.rel (%p315) target = $region16
      $region15: #{encoder_ae_forward.2} parent=11 // pred_region
        _
      $region16: #{encoder_ae_forward.2} parent=11 // pred_fallthru
        _
      // Predicated region
      $region17: #{encoder_ae_forward.2} parent=11 // pred_check
        %p318 = pneg %p138
      $region18: #{encoder_ae_forward.2} parent=11 // pred_check_branch
        %320 = sbr.rel (%p318) target = $region20
      $region19: #{encoder_ae_forward.2} parent=11 // pred_region
        _
      $region20: #{encoder_ae_forward.2} parent=11 // pred_fallthru
        _
      // Predicated region
      $region21: #{encoder_ae_forward.2} parent=11 // pred_check
        %p321 = pneg %p159
      $region22: #{encoder_ae_forward.2} parent=11 // pred_check_branch
        %323 = sbr.rel (%p321) target = $region24
      $region23: #{encoder_ae_forward.2} parent=11 // pred_region
        _
      $region24: #{encoder_ae_forward.2} parent=11 // pred_fallthru
        _
      // Predicated region
      $region25: #{encoder_ae_forward.2} parent=11 // pred_check
        %p324 = pneg %p180
      $region26: #{encoder_ae_forward.2} parent=11 // pred_check_branch
        %326 = sbr.rel (%p324) target = $region28
      $region27: #{encoder_ae_forward.2} parent=11 // pred_region
        _
      $region28: #{encoder_ae_forward.2} parent=11 // pred_fallthru
        _
      // Predicated region
      $region29: #{encoder_ae_forward.2} parent=11 // pred_check
        %p327 = pneg %p201
      $region30: #{encoder_ae_forward.2} parent=11 // pred_check_branch
        %329 = sbr.rel (%p327) target = $region32
      $region31: #{encoder_ae_forward.2} parent=11 // pred_region
        _
      $region32: #{encoder_ae_forward.2} parent=11 // pred_fallthru
        _
      // Predicated region
      $region33: #{encoder_ae_forward.2} parent=11 // pred_check
        %p330 = pneg %p222
      $region34: #{encoder_ae_forward.2} parent=11 // pred_check_branch
        %332 = sbr.rel (%p330) target = $region36
      $region35: #{encoder_ae_forward.2} parent=11 // pred_region
        _
      $region36: #{encoder_ae_forward.2} parent=11 // pred_fallthru
        _
    $region12: #{encoder_ae_forward.2} parent=5 // pred_fallthru
      _
    %p333 = scmp.lt.s32.totalorder %s18, 2
    // Predicated region
    $region37: #{encoder_ae_forward.2} parent=5 // pred_check
      %p334 = pneg %p333
    $region38: #{encoder_ae_forward.2} parent=5 // pred_check_branch
      %336 = sbr.rel (%p334) target = $region40
    $region39: #{encoder_ae_forward.2} parent=5 // pred_region
      // Predicated region
      $region41: #{encoder_ae_forward.2} parent=39 // pred_check
        %p337 = pneg %p38
      $region42: #{encoder_ae_forward.2} parent=39 // pred_check_branch
        %339 = sbr.rel (%p337) target = $region44
      $region43: #{encoder_ae_forward.2} parent=39 // pred_region
        %p340 = scmp.lt.s32.totalorder %s18, 1
        %s341 = scalar_select %p340, %s18, 1
        %s342 = smul.addr %s341, 8
        %s343 = smul.addr %s342, 8
        %s344 = scalar_lea.vmem %s0, %s343
      $region44: #{encoder_ae_forward.2} parent=39 // pred_fallthru
        _
      // Predicated region
      $region45: #{encoder_ae_forward.2} parent=39 // pred_check
        %p345 = pneg %p64
      $region46: #{encoder_ae_forward.2} parent=39 // pred_check_branch
        %347 = sbr.rel (%p345) target = $region48
      $region47: #{encoder_ae_forward.2} parent=39 // pred_region
        %p348 = scmp.lt.s32.totalorder %s18, 1
        %s349 = scalar_select %p348, %s18, 1
        %s350 = smul.addr %s349, 5
        %s351 = smul.addr %s350, 8
        %s352 = scalar_lea.vmem %s1, %s351
      $region48: #{encoder_ae_forward.2} parent=39 // pred_fallthru
        _
      // Predicated region
      $region49: #{encoder_ae_forward.2} parent=39 // pred_check
        %p353 = pneg %p90
      $region50: #{encoder_ae_forward.2} parent=39 // pred_check_branch
        %355 = sbr.rel (%p353) target = $region52
      $region51: #{encoder_ae_forward.2} parent=39 // pred_region
        %p356 = scmp.lt.s32.totalorder %s18, 1
        %s357 = scalar_select %p356, %s18, 1
        %s358 = smul.addr %s357, 76
        %s359 = smul.addr %s358, 8
        %s360 = scalar_lea.vmem %s2, %s359
      $region52: #{encoder_ae_forward.2} parent=39 // pred_fallthru
        _
    $region40: #{encoder_ae_forward.2} parent=5 // pred_fallthru
      _
    %p361 = scmp.le.s32.totalorder 1, %s18
    %p362 = scmp.lt.s32.totalorder %s18, 3
    %p363 = pnand %p361, %p362
    %p364 = pneg %p363
    // Predicated region
    $region53: #{encoder_ae_forward.2} parent=5 // pred_check
      _
    $region54: #{encoder_ae_forward.2} parent=5 // pred_check_branch
      %366 = sbr.rel (%p363) target = $region56
    $region55: #{encoder_ae_forward.2} parent=5 // pred_region
      %s367 = ssub.s32 %s18, 1
      %p368 = scmp.lt.s32.totalorder %s23, 1
      %s369 = scalar_select %p368, %s23, 1
      %s370 = smul.addr %s369, 8
      %s371 = smul.addr %s370, 8
      %s372 = scalar_lea.vmem %s0, %s371
      %p373 = pneg %p44
      %p374 = pneg %p41
      %p375 = scmp.lt.s32.totalorder %s23, 1
      %s376 = scalar_select %p375, %s23, 1
      %s377 = smul.addr %s376, 5
      %s378 = smul.addr %s377, 8
      %s379 = scalar_lea.vmem %s1, %s378
      %p380 = pneg %p70
      %p381 = pneg %p67
      %p382 = scmp.lt.s32.totalorder %s23, 1
      %s383 = scalar_select %p382, %s23, 1
      %s384 = smul.addr %s383, 76
      %s385 = smul.addr %s384, 8
      %s386 = scalar_lea.vmem %s2, %s385
      %p387 = pneg %p96
      %p388 = pneg %p93
      %p389 = pneg %p117
      %p390 = pneg %p114
      %p391 = pneg %p138
      %p392 = pneg %p135
      %p393 = pneg %p159
      %p394 = pneg %p156
      %p395 = pneg %p180
      %p396 = pneg %p177
      %p397 = pneg %p201
      %p398 = pneg %p198
      %p399 = pneg %p222
      %p400 = pneg %p219
      %p401 = pneg %p248
      %p402 = pneg %p245
      %p403 = scmp.lt.s32.totalorder %s23, 1
      %s404 = scalar_select %p403, %s23, 1
      %s405 = smul.addr %s404, 8
      %s406 = smul.addr %s405, 8
      %s407 = scalar_lea.vmem %s9, %s406
      %p408 = pneg %p274
      %p409 = pneg %p271
      %p410 = scmp.lt.s32.totalorder %s23, 1
      %s411 = scalar_select %p410, %s23, 1
      %s412 = smul.addr %s411, 5
      %s413 = smul.addr %s412, 8
      %s414 = scalar_lea.vmem %s10, %s413
      %p415 = pneg %p300
      %p416 = pneg %p297
      %p417 = scmp.lt.s32.totalorder %s23, 1
      %s418 = scalar_select %p417, %s23, 1
      %s419 = smul.addr %s418, 38
      %s420 = smul.addr %s419, 8
      %s421 = scalar_lea.vmem %s11, %s420
      %p422 = scmp.lt.s32.totalorder %s23, 1
      %s423 = scalar_select %p422, %s23, 1
      %s424 = smul.addr %s423, 8
      %s425 = smul.addr %s424, 8
      %s426 = scalar_lea.vmem %s0, %s425
      %p427 = scmp.lt.s32.totalorder %s23, 1
      %s428 = scalar_select %p427, %s23, 1
      %s429 = smul.addr %s428, 5
      %s430 = smul.addr %s429, 8
      %s431 = scalar_lea.vmem %s1, %s430
      %p432 = scmp.lt.s32.totalorder %s23, 1
      %s433 = scalar_select %p432, %s23, 1
      %s434 = smul.addr %s433, 76
      %s435 = smul.addr %s434, 8
      %s436 = scalar_lea.vmem %s2, %s435
      %p437 = scmp.lt.s32.totalorder %s23, 1
      %s438 = scalar_select %p437, %s23, 1
      %s439 = smul.addr %s438, 8
      %s440 = smul.addr %s439, 8
      %s441 = scalar_lea.vmem %s9, %s440
      %p442 = scmp.lt.s32.totalorder %s23, 1
      %s443 = scalar_select %p442, %s23, 1
      %s444 = smul.addr %s443, 5
      %s445 = smul.addr %s444, 8
      %s446 = scalar_lea.vmem %s10, %s445
      %p447 = scmp.lt.s32.totalorder %s23, 1
      %s448 = scalar_select %p447, %s23, 1
      %s449 = smul.addr %s448, 38
      %s450 = smul.addr %s449, 8
      %s451 = scalar_lea.vmem %s11, %s450
      %v452 = vld [vmem:[%s426] sm:$0xff]
      %v453 = vld [vmem:[%s426 + $0x8] sm:$0xff]
      %v454 = vld [vmem:[%s426 + $0x10] sm:$0xff]
      %v455 = vld [vmem:[%s426 + $0x18] sm:$0xff]
      %v456 = vld [vmem:[%s426 + $0x20] sm:$0xff]
      %v457 = vld [vmem:[%s426 + $0x28] sm:$0xff]
      %v458 = vld [vmem:[%s426 + $0x30] sm:$0xff]
      %v459 = vld [vmem:[%s426 + $0x38] sm:$0xff]
      %v460 = vld [vmem:[%s3] sm:$0xff]
      %v461 = vld [vmem:[%s3 + $0x8] sm:$0xff]
      %v462 = vld [vmem:[%s3 + $0x10] sm:$0xff]
      %v463 = vld [vmem:[%s3 + $0x18] sm:$0xff]
      %v464 = vld [vmem:[%s3 + $0x20] sm:$0xff]
      %v465 = vld [vmem:[%s3 + $0x28] sm:$0xff]
      %v466 = vld [vmem:[%s3 + $0x30] sm:$0xff]
      %v467 = vld [vmem:[%s3 + $0x38] sm:$0xff]
      %v468 = vld [vmem:[%s3 + $0x40] sm:$0xff]
      %v469 = vld [vmem:[%s6] sm:$0x1]
      %v471 = vlaneseq
      %v472 = vshrl.u32 %v471, 7
      %v473 = vsub.s32 0, %v472
      %v474 = vrot.slane %v469, %v473
      %vm476 = vcmask 588800
      %v478 = vsel %vm476, %v452, 0
      %v481 = vsel %vm476, %v453, 0
      %v484 = vsel %vm476, %v454, 0
      %v487 = vsel %vm476, %v455, 0
      %v490 = vsel %vm476, %v456, 0
      %v493 = vsel %vm476, %v457, 0
      %v496 = vsel %vm476, %v458, 0
      %v499 = vsel %vm476, %v459, 0
      %501 = vmatprep.subr.mxu0 0.0
      %502 = vmatpush1.msra.mxu0 %v460
      %503 = vmatprep.subr.mxu0 0.0
      %504 = vmatpush1.msra.mxu0 %v461
      %505 = vmatprep.subr.mxu0 0.0
      %506 = vmatpush1.msra.mxu0 %v462
      %507 = vmatprep.subr.mxu0 0.0
      %508 = vmatpush1.msra.mxu0 %v463
      %509 = vmatprep.subr.mxu0 0.0
      %510 = vmatpush1.msra.mxu0 %v464
      %511 = vmatprep.subr.mxu0 0.0
      %512 = vmatpush1.msra.mxu0 %v465
      %513 = vmatprep.subr.mxu0 0.0
      %514 = vmatpush1.msra.mxu0 %v466
      %515 = vmatprep.subr.mxu0 0.0
      %516 = vmatpush1.msra.mxu0 %v467
      %517 = vmatprep.subr.mxu0 0.0
      %518 = vmatpush1.msra.mxu0 %v468
      %519 = vmatprep.subr.mxu0 0.0
      %520 = vmatpush1.msra.mxu0 0.0
      %521 = vmatprep.subr.mxu0 0.0
      %522 = vmatpush1.msra.mxu0 0.0
      %523 = vmatprep.subr.mxu0 0.0
      %524 = vmatpush1.msra.mxu0 0.0
      %525 = vmatprep.subr.mxu0 0.0
      %526 = vmatpush1.msra.mxu0 0.0
      %527 = vmatprep.subr.mxu0 0.0
      %528 = vmatpush1.msra.mxu0 0.0
      %529 = vmatprep.subr.mxu0 0.0
      %530 = vmatpush1.msra.mxu0 0.0
      %531 = vmatprep.subr.mxu0 0.0
      %532 = vmatpush1.msra.mxu0 0.0
      %533 = vmatprep.subr.mxu0 0.0
      %534 = vmatpush1.msra.mxu0 0.0
      %535 = vmatprep.subr.mxu0 0.0
      %536 = vmatpush1.msra.mxu0 0.0
      %537 = vmatprep.subr.mxu0 0.0
      %538 = vmatpush1.msra.mxu0 0.0
      %539 = vmatprep.subr.mxu0 0.0
      %540 = vmatpush1.msra.mxu0 0.0
      %541 = vmatprep.subr.mxu0 0.0
      %542 = vmatpush1.msra.mxu0 0.0
      %543 = vmatprep.subr.mxu0 0.0
      %544 = vmatpush1.msra.mxu0 0.0
      %545 = vmatprep.subr.mxu0 0.0
      %546 = vmatpush1.msra.mxu0 0.0
      %547 = vmatprep.subr.mxu0 0.0
      %548 = vmatpush1.msra.mxu0 0.0
      %549 = vmatprep.subr.mxu0 0.0
      %550 = vmatpush1.msra.mxu0 0.0
      %551 = vmatprep.subr.mxu0 0.0
      %552 = vmatpush1.msra.mxu0 0.0
      %553 = vmatprep.subr.mxu0 0.0
      %554 = vmatpush1.msra.mxu0 0.0
      %555 = vmatprep.subr.mxu0 0.0
      %556 = vmatpush1.msra.mxu0 0.0
      %557 = vmatprep.subr.mxu0 0.0
      %558 = vmatpush1.msra.mxu0 0.0
      %559 = vmatprep.subr.mxu0 0.0
      %560 = vmatpush1.msra.mxu0 0.0
      %561 = vmatprep.subr.mxu0 0.0
      %562 = vmatpush1.msra.mxu0 0.0
      %563 = vmatprep.subr.mxu0 0.0
      %564 = vmatpush1.msra.mxu0 0.0
      %565 = vmatprep.mubr.f32.mxu0 0.0
      %566 = vmatmul.mubr.f32.gmra.mrb[0].mxu0 %v478
      %v567 = vpop.f32.mrb[0].mxu0
      %v568 = vadd.f32 %v474, %v567
      %v569 = vpop.f32.mrb[0].mxu0
      %570 = vmatprep.mubr.f32.mxu0 0.0
      %571 = vmatmul.mubr.f32.gmra.mrb[0].mxu0 %v481
      %v572 = vpop.f32.mrb[0].mxu0
      %v573 = vadd.f32 %v474, %v572
      %v574 = vpop.f32.mrb[0].mxu0
      %575 = vmatprep.mubr.f32.mxu0 0.0
      %576 = vmatmul.mubr.f32.gmra.mrb[0].mxu0 %v484
      %v577 = vpop.f32.mrb[0].mxu0
      %v578 = vadd.f32 %v474, %v577
      %v579 = vpop.f32.mrb[0].mxu0
      %580 = vmatprep.mubr.f32.mxu0 0.0
      %581 = vmatmul.mubr.f32.gmra.mrb[0].mxu0 %v487
      %v582 = vpop.f32.mrb[0].mxu0
      %v583 = vadd.f32 %v474, %v582
      %v584 = vpop.f32.mrb[0].mxu0
      %585 = vmatprep.mubr.f32.mxu0 0.0
      %586 = vmatmul.mubr.f32.gmra.mrb[0].mxu0 %v490
      %v587 = vpop.f32.mrb[0].mxu0
      %v588 = vadd.f32 %v474, %v587
      %v589 = vpop.f32.mrb[0].mxu0
      %590 = vmatprep.mubr.f32.mxu0 0.0
      %591 = vmatmul.mubr.f32.gmra.mrb[0].mxu0 %v493
      %v592 = vpop.f32.mrb[0].mxu0
      %v593 = vadd.f32 %v474, %v592
      %v594 = vpop.f32.mrb[0].mxu0
      %595 = vmatprep.mubr.f32.mxu0 0.0
      %596 = vmatmul.mubr.f32.gmra.mrb[0].mxu0 %v496
      %v597 = vpop.f32.mrb[0].mxu0
      %v598 = vadd.f32 %v474, %v597
      %v599 = vpop.f32.mrb[0].mxu0
      %600 = vmatprep.mubr.f32.mxu0 0.0
      %601 = vmatmul.mubr.f32.gmra.mrb[0].mxu0 %v499
      %v602 = vpop.f32.mrb[0].mxu0
      %v603 = vadd.f32 %v474, %v602
      %v604 = vpop.f32.mrb[0].mxu0
      %605 = vdwg.mxu0
      %606 = vst [vmem:[%s441] sm:$0xff] %v568
      %607 = vst [vmem:[%s441 + $0x8] sm:$0xff] %v573
      %608 = vst [vmem:[%s441 + $0x10] sm:$0xff] %v578
      %609 = vst [vmem:[%s441 + $0x18] sm:$0xff] %v583
      %610 = vst [vmem:[%s441 + $0x20] sm:$0xff] %v588
      %611 = vst [vmem:[%s441 + $0x28] sm:$0xff] %v593
      %612 = vst [vmem:[%s441 + $0x30] sm:$0xff] %v598
      %613 = vst [vmem:[%s441 + $0x38] sm:$0xff] %v603
      %v614 = vld [vmem:[%s431] sm:$0xff]
      %v615 = vld [vmem:[%s431 + $0x8] sm:$0xff]
      %v616 = vld [vmem:[%s431 + $0x10] sm:$0xff]
      %v617 = vld [vmem:[%s431 + $0x18] sm:$0xff]
      %v618 = vld [vmem:[%s431 + $0x20] sm:$0xf]
      %v619 = vld [vmem:[%s4] sm:$0xff]
      %v620 = vld [vmem:[%s4 + $0x8] sm:$0xff]
      %v621 = vld [vmem:[%s4 + $0x10] sm:$0xff]
      %v622 = vld [vmem:[%s4 + $0x18] sm:$0xff]
      %v623 = vld [vmem:[%s4 + $0x20] sm:$0xff]
      %v624 = vld [vmem:[%s4 + $0x28] sm:$0xff]
      %v625 = vld [vmem:[%s4 + $0x30] sm:$0xff]
      %v626 = vld [vmem:[%s4 + $0x38] sm:$0xff]
      %v627 = vld [vmem:[%s4 + $0x40] sm:$0xff]
      %v628 = vld [vmem:[%s4 + $0x48] sm:$0xff]
      %v629 = vld [vmem:[%s4 + $0x50] sm:$0xff]
      %v630 = vld [vmem:[%s4 + $0x58] sm:$0xff]
      %v631 = vld [vmem:[%s4 + $0x60] sm:$0xff]
      %v632 = vld [vmem:[%s4 + $0x68] sm:$0xf]
      %v633 = vld [vmem:[%s7] sm:$0x1]
      %v635 = vlaneseq
      %v636 = vshrl.u32 %v635, 7
      %v637 = vsub.s32 0, %v636
      %v638 = vrot.slane %v633, %v637
      %vm640 = vcmask 883712
      %v642 = vsel %vm640, %v614, 0
      %v645 = vsel %vm640, %v615, 0
      %v648 = vsel %vm640, %v616, 0
      %v651 = vsel %vm640, %v617, 0
      %v654 = vsel %vm640, %v618, 0
      %vm656 = vcmask 1043456
      %v658 = vsel %vm656, %v632, 0
      %660 = vmatprep.subr.mxu0 0.0
      %661 = vmatpush1.msra.mxu0 %v619
      %662 = vmatprep.subr.mxu0 0.0
      %663 = vmatpush1.msra.mxu0 %v620
      %664 = vmatprep.subr.mxu0 0.0
      %665 = vmatpush1.msra.mxu0 %v621
      %666 = vmatprep.subr.mxu0 0.0
      %667 = vmatpush1.msra.mxu0 %v622
      %668 = vmatprep.subr.mxu0 0.0
      %669 = vmatpush1.msra.mxu0 %v623
      %670 = vmatprep.subr.mxu0 0.0
      %671 = vmatpush1.msra.mxu0 %v624
      %672 = vmatprep.subr.mxu0 0.0
      %673 = vmatpush1.msra.mxu0 %v625
      %674 = vmatprep.subr.mxu0 0.0
      %675 = vmatpush1.msra.mxu0 %v626
      %676 = vmatprep.subr.mxu0 0.0
      %677 = vmatpush1.msra.mxu0 %v627
      %678 = vmatprep.subr.mxu0 0.0
      %679 = vmatpush1.msra.mxu0 %v628
      %680 = vmatprep.subr.mxu0 0.0
      %681 = vmatpush1.msra.mxu0 %v629
      %682 = vmatprep.subr.mxu0 0.0
      %683 = vmatpush1.msra.mxu0 %v630
      %684 = vmatprep.subr.mxu0 0.0
      %685 = vmatpush1.msra.mxu0 %v631
      %686 = vmatprep.subr.mxu0 0.0
      %687 = vmatpush1.msra.mxu0 %v658
      %688 = vmatprep.subr.mxu0 0.0
      %689 = vmatpush1.msra.mxu0 0.0
      %690 = vmatprep.subr.mxu0 0.0
      %691 = vmatpush1.msra.mxu0 0.0
      %692 = vmatprep.subr.mxu0 0.0
      %693 = vmatpush1.msra.mxu0 0.0
      %694 = vmatprep.subr.mxu0 0.0
      %695 = vmatpush1.msra.mxu0 0.0
      %696 = vmatprep.subr.mxu0 0.0
      %697 = vmatpush1.msra.mxu0 0.0
      %698 = vmatprep.subr.mxu0 0.0
      %699 = vmatpush1.msra.mxu0 0.0
      %700 = vmatprep.subr.mxu0 0.0
      %701 = vmatpush1.msra.mxu0 0.0
      %702 = vmatprep.subr.mxu0 0.0
      %703 = vmatpush1.msra.mxu0 0.0
      %704 = vmatprep.subr.mxu0 0.0
      %705 = vmatpush1.msra.mxu0 0.0
      %706 = vmatprep.subr.mxu0 0.0
      %707 = vmatpush1.msra.mxu0 0.0
      %708 = vmatprep.subr.mxu0 0.0
      %709 = vmatpush1.msra.mxu0 0.0
      %710 = vmatprep.subr.mxu0 0.0
      %711 = vmatpush1.msra.mxu0 0.0
      %712 = vmatprep.subr.mxu0 0.0
      %713 = vmatpush1.msra.mxu0 0.0
      %714 = vmatprep.subr.mxu0 0.0
      %715 = vmatpush1.msra.mxu0 0.0
      %716 = vmatprep.subr.mxu0 0.0
      %717 = vmatpush1.msra.mxu0 0.0
      %718 = vmatprep.subr.mxu0 0.0
      %719 = vmatpush1.msra.mxu0 0.0
      %720 = vmatprep.subr.mxu0 0.0
      %721 = vmatpush1.msra.mxu0 0.0
      %722 = vmatprep.subr.mxu0 0.0
      %723 = vmatpush1.msra.mxu0 0.0
      %724 = vmatprep.mubr.f32.mxu0 0.0
      %725 = vmatmul.mubr.f32.gmra.mrb[0].mxu0 %v642
      %v726 = vpop.f32.mrb[0].mxu0
      %v727 = vadd.f32 %v638, %v726
      %v728 = vpop.f32.mrb[0].mxu0
      %729 = vmatprep.mubr.f32.mxu0 0.0
      %730 = vmatmul.mubr.f32.gmra.mrb[0].mxu0 %v645
      %v731 = vpop.f32.mrb[0].mxu0
      %v732 = vadd.f32 %v638, %v731
      %v733 = vpop.f32.mrb[0].mxu0
      %734 = vmatprep.mubr.f32.mxu0 0.0
      %735 = vmatmul.mubr.f32.gmra.mrb[0].mxu0 %v648
      %v736 = vpop.f32.mrb[0].mxu0
      %v737 = vadd.f32 %v638, %v736
      %v738 = vpop.f32.mrb[0].mxu0
      %739 = vmatprep.mubr.f32.mxu0 0.0
      %740 = vmatmul.mubr.f32.gmra.mrb[0].mxu0 %v651
      %v741 = vpop.f32.mrb[0].mxu0
      %v742 = vadd.f32 %v638, %v741
      %v743 = vpop.f32.mrb[0].mxu0
      %744 = vmatprep.mubr.f32.mxu0 0.0
      %745 = vmatmul.mubr.f32.gmra.mrb[0].mxu0 %v654
      %v746 = vpop.f32.mrb[0].mxu0
      %v747 = vadd.f32 %v638, %v746
      %v748 = vpop.f32.mrb[0].mxu0
      %749 = vdwg.mxu0
      %750 = vst [vmem:[%s446] sm:$0xff] %v727
      %751 = vst [vmem:[%s446 + $0x8] sm:$0xff] %v732
      %752 = vst [vmem:[%s446 + $0x10] sm:$0xff] %v737
      %753 = vst [vmem:[%s446 + $0x18] sm:$0xff] %v742
      %754 = vst [vmem:[%s446 + $0x20] sm:$0xf] %v747
      %v755 = vld [vmem:[%s436] sm:$0xff]
      %v756 = vld [vmem:[%s436 + $0x8] sm:$0xff]
      %v757 = vld [vmem:[%s436 + $0x10] sm:$0xff]
      %v758 = vld [vmem:[%s436 + $0x18] sm:$0xff]
      %v759 = vld [vmem:[%s436 + $0x20] sm:$0xff]
      %v760 = vld [vmem:[%s436 + $0x28] sm:$0xff]
      %v761 = vld [vmem:[%s436 + $0x30] sm:$0xff]
      %v762 = vld [vmem:[%s436 + $0x38] sm:$0xff]
      %v763 = vld [vmem:[%s436 + $0x40] sm:$0xff]
      %v764 = vld [vmem:[%s436 + $0x48] sm:$0xff]
      %v765 = vld [vmem:[%s436 + $0x50] sm:$0xff]
      %v766 = vld [vmem:[%s436 + $0x58] sm:$0xff]
      %v767 = vld [vmem:[%s436 + $0x60] sm:$0xff]
      %v768 = vld [vmem:[%s436 + $0x68] sm:$0xff]
      %v769 = vld [vmem:[%s436 + $0x70] sm:$0xff]
      %v770 = vld [vmem:[%s436 + $0x78] sm:$0xff]
      %v771 = vld [vmem:[%s436 + $0x80] sm:$0xff]
      %v772 = vld [vmem:[%s436 + $0x88] sm:$0xff]
      %v773 = vld [vmem:[%s436 + $0x90] sm:$0xff]
      %v774 = vld [vmem:[%s436 + $0x98] sm:$0xff]
      %v775 = vld [vmem:[%s436 + $0xa0] sm:$0xff]
      %v776 = vld [vmem:[%s436 + $0xa8] sm:$0xff]
      %v777 = vld [vmem:[%s436 + $0xb0] sm:$0xff]
      %v778 = vld [vmem:[%s436 + $0xb8] sm:$0xff]
      %v779 = vld [vmem:[%s436 + $0xc0] sm:$0xff]
      %v780 = vld [vmem:[%s436 + $0xc8] sm:$0xff]
      %v781 = vld [vmem:[%s436 + $0xd0] sm:$0xff]
      %v782 = vld [vmem:[%s436 + $0xd8] sm:$0xff]
      %v783 = vld [vmem:[%s436 + $0xe0] sm:$0xff]
      %v784 = vld [vmem:[%s436 + $0xe8] sm:$0xff]
      %v785 = vld [vmem:[%s436 + $0xf0] sm:$0xff]
      %v786 = vld [vmem:[%s436 + $0xf8] sm:$0xff]
      %v787 = vld [vmem:[%s436 + $0x100] sm:$0xff]
      %v788 = vld [vmem:[%s436 + $0x108] sm:$0xff]
      %v789 = vld [vmem:[%s436 + $0x110] sm:$0xff]
      %v790 = vld [vmem:[%s436 + $0x118] sm:$0xff]
      %v791 = vld [vmem:[%s436 + $0x120] sm:$0xff]
      %v792 = vld [vmem:[%s436 + $0x128] sm:$0xff]
      %v793 = vld [vmem:[%s436 + $0x130] sm:$0xff]
      %v794 = vld [vmem:[%s436 + $0x138] sm:$0xff]
      %v795 = vld [vmem:[%s436 + $0x140] sm:$0xff]
      %v796 = vld [vmem:[%s436 + $0x148] sm:$0xff]
      %v797 = vld [vmem:[%s436 + $0x150] sm:$0xff]
      %v798 = vld [vmem:[%s436 + $0x158] sm:$0xff]
      %v799 = vld [vmem:[%s436 + $0x160] sm:$0xff]
      %v800 = vld [vmem:[%s436 + $0x168] sm:$0xff]
      %v801 = vld [vmem:[%s436 + $0x170] sm:$0xff]
      %v802 = vld [vmem:[%s436 + $0x178] sm:$0xff]
      %v803 = vld [vmem:[%s436 + $0x180] sm:$0xff]
      %v804 = vld [vmem:[%s436 + $0x188] sm:$0xff]
      %v805 = vld [vmem:[%s436 + $0x190] sm:$0xff]
      %v806 = vld [vmem:[%s436 + $0x198] sm:$0xff]
      %v807 = vld [vmem:[%s436 + $0x1a0] sm:$0xff]
      %v808 = vld [vmem:[%s436 + $0x1a8] sm:$0xff]
      %v809 = vld [vmem:[%s436 + $0x1b0] sm:$0xff]
      %v810 = vld [vmem:[%s436 + $0x1b8] sm:$0xff]
      %v811 = vld [vmem:[%s436 + $0x1c0] sm:$0xff]
      %v812 = vld [vmem:[%s436 + $0x1c8] sm:$0xff]
      %v813 = vld [vmem:[%s436 + $0x1d0] sm:$0xff]
      %v814 = vld [vmem:[%s436 + $0x1d8] sm:$0xff]
      %v815 = vld [vmem:[%s436 + $0x1e0] sm:$0xff]
      %v816 = vld [vmem:[%s436 + $0x1e8] sm:$0xff]
      %v817 = vld [vmem:[%s436 + $0x1f0] sm:$0xff]
      %v818 = vld [vmem:[%s436 + $0x1f8] sm:$0xff]
      %v819 = vld [vmem:[%s436 + $0x200] sm:$0xff]
      %v820 = vld [vmem:[%s436 + $0x208] sm:$0xff]
      %v821 = vld [vmem:[%s436 + $0x210] sm:$0xff]
      %v822 = vld [vmem:[%s436 + $0x218] sm:$0xff]
      %v823 = vld [vmem:[%s436 + $0x220] sm:$0xff]
      %v824 = vld [vmem:[%s436 + $0x228] sm:$0xff]
      %v825 = vld [vmem:[%s436 + $0x230] sm:$0xff]
      %v826 = vld [vmem:[%s436 + $0x238] sm:$0xff]
      %v827 = vld [vmem:[%s436 + $0x240] sm:$0xff]
      %v828 = vld [vmem:[%s436 + $0x248] sm:$0xff]
      %v829 = vld [vmem:[%s436 + $0x250] sm:$0xf]
      %v830 = vld [vmem:[%s436 + $0x258] sm:$0xf]
      %v831 = vld [vmem:[%s5] sm:$0xff]
      %v832 = vld [vmem:[%s5 + $0x8] sm:$0xff]
      %v833 = vld [vmem:[%s5 + $0x10] sm:$0xff]
      %v834 = vld [vmem:[%s5 + $0x18] sm:$0xff]
      %v835 = vld [vmem:[%s5 + $0x20] sm:$0xff]
      %v836 = vld [vmem:[%s5 + $0x28] sm:$0xff]
      %v837 = vld [vmem:[%s5 + $0x30] sm:$0xff]
      %v838 = vld [vmem:[%s5 + $0x38] sm:$0xff]
      %v839 = vld [vmem:[%s5 + $0x40] sm:$0xff]
      %v840 = vld [vmem:[%s5 + $0x48] sm:$0xff]
      %v841 = vld [vmem:[%s5 + $0x50] sm:$0xff]
      %v842 = vld [vmem:[%s5 + $0x58] sm:$0xff]
      %v843 = vld [vmem:[%s5 + $0x60] sm:$0xff]
      %v844 = vld [vmem:[%s5 + $0x68] sm:$0xff]
      %v845 = vld [vmem:[%s5 + $0x70] sm:$0xff]
      %v846 = vld [vmem:[%s5 + $0x78] sm:$0xff]
      %v847 = vld [vmem:[%s5 + $0x80] sm:$0xff]
      %v848 = vld [vmem:[%s5 + $0x88] sm:$0xff]
      %v849 = vld [vmem:[%s8] sm:$0x1]
      %v851 = vlaneseq
      %v852 = vshrl.u32 %v851, 7
      %v853 = vsub.s32 0, %v852
      %v854 = vrot.slane %v849, %v853
      %vm856 = vcmask 130048
      %v858 = vsel %vm856, %v756, 0
      %v861 = vsel %vm856, %v758, 0
      %v864 = vsel %vm856, %v760, 0
      %v867 = vsel %vm856, %v762, 0
      %v870 = vsel %vm856, %v764, 0
      %v873 = vsel %vm856, %v766, 0
      %v876 = vsel %vm856, %v768, 0
      %v879 = vsel %vm856, %v770, 0
      %v882 = vsel %vm856, %v772, 0
      %v885 = vsel %vm856, %v774, 0
      %v888 = vsel %vm856, %v776, 0
      %v891 = vsel %vm856, %v778, 0
      %v894 = vsel %vm856, %v780, 0
      %v897 = vsel %vm856, %v782, 0
      %v900 = vsel %vm856, %v784, 0
      %v903 = vsel %vm856, %v786, 0
      %v906 = vsel %vm856, %v788, 0
      %v909 = vsel %vm856, %v790, 0
      %v912 = vsel %vm856, %v792, 0
      %v915 = vsel %vm856, %v794, 0
      %v918 = vsel %vm856, %v796, 0
      %v921 = vsel %vm856, %v798, 0
      %v924 = vsel %vm856, %v800, 0
      %v927 = vsel %vm856, %v802, 0
      %v930 = vsel %vm856, %v804, 0
      %v933 = vsel %vm856, %v806, 0
      %v936 = vsel %vm856, %v808, 0
      %v939 = vsel %vm856, %v810, 0
      %v942 = vsel %vm856, %v812, 0
      %v945 = vsel %vm856, %v814, 0
      %v948 = vsel %vm856, %v816, 0
      %v951 = vsel %vm856, %v818, 0
      %v954 = vsel %vm856, %v820, 0
      %v957 = vsel %vm856, %v822, 0
      %v960 = vsel %vm856, %v824, 0
      %v963 = vsel %vm856, %v826, 0
      %v966 = vsel %vm856, %v828, 0
      %v969 = vsel %vm856, %v830, 0
      %971 = vmatprep.subr.mxu0 0.0
      %972 = vmatpush1.msra.mxu0 %v831
      %973 = vmatprep.subr.mxu0 0.0
      %974 = vmatpush1.msra.mxu0 %v832
      %975 = vmatprep.subr.mxu0 0.0
      %976 = vmatpush1.msra.mxu0 %v833
      %977 = vmatprep.subr.mxu0 0.0
      %978 = vmatpush1.msra.mxu0 %v834
      %979 = vmatprep.subr.mxu0 0.0
      %980 = vmatpush1.msra.mxu0 %v835
      %981 = vmatprep.subr.mxu0 0.0
      %982 = vmatpush1.msra.mxu0 %v836
      %983 = vmatprep.subr.mxu0 0.0
      %984 = vmatpush1.msra.mxu0 %v837
      %985 = vmatprep.subr.mxu0 0.0
      %986 = vmatpush1.msra.mxu0 %v838
      %987 = vmatprep.subr.mxu0 0.0
      %988 = vmatpush1.msra.mxu0 %v839
      %989 = vmatprep.subr.mxu0 0.0
      %990 = vmatpush1.msra.mxu0 %v840
      %991 = vmatprep.subr.mxu0 0.0
      %992 = vmatpush1.msra.mxu0 %v841
      %993 = vmatprep.subr.mxu0 0.0
      %994 = vmatpush1.msra.mxu0 %v842
      %995 = vmatprep.subr.mxu0 0.0
      %996 = vmatpush1.msra.mxu0 %v843
      %997 = vmatprep.subr.mxu0 0.0
      %998 = vmatpush1.msra.mxu0 %v844
      %999 = vmatprep.subr.mxu0 0.0
      %1000 = vmatpush1.msra.mxu0 %v845
      %1001 = vmatprep.subr.mxu0 0.0
      %1002 = vmatpush1.msra.mxu0 %v846
      %1003 = vmatprep.subr.mxu0 0.0
      %1004 = vmatpush1.msra.mxu0 %v847
      %1005 = vmatprep.subr.mxu0 0.0
      %1006 = vmatpush1.msra.mxu0 %v848
      %1007 = vmatprep.subr.mxu0 0.0
      %1008 = vmatpush1.msra.mxu0 0.0
      %1009 = vmatprep.subr.mxu0 0.0
      %1010 = vmatpush1.msra.mxu0 0.0
      %1011 = vmatprep.subr.mxu0 0.0
      %1012 = vmatpush1.msra.mxu0 0.0
      %1013 = vmatprep.subr.mxu0 0.0
      %1014 = vmatpush1.msra.mxu0 0.0
      %1015 = vmatprep.subr.mxu0 0.0
      %1016 = vmatpush1.msra.mxu0 0.0
      %1017 = vmatprep.subr.mxu0 0.0
      %1018 = vmatpush1.msra.mxu0 0.0
      %1019 = vmatprep.subr.mxu0 0.0
      %1020 = vmatpush1.msra.mxu0 0.0
      %1021 = vmatprep.subr.mxu0 0.0
      %1022 = vmatpush1.msra.mxu0 0.0
      %1023 = vmatprep.subr.mxu0 0.0
      %1024 = vmatpush1.msra.mxu0 0.0
      %1025 = vmatprep.subr.mxu0 0.0
      %1026 = vmatpush1.msra.mxu0 0.0
      %1027 = vmatprep.subr.mxu0 0.0
      %1028 = vmatpush1.msra.mxu0 0.0
      %1029 = vmatprep.subr.mxu0 0.0
      %1030 = vmatpush1.msra.mxu0 0.0
      %1031 = vmatprep.subr.mxu0 0.0
      %1032 = vmatpush1.msra.mxu0 0.0
      %1033 = vmatprep.subr.mxu0 0.0
      %1034 = vmatpush1.msra.mxu0 0.0
      %1035 = vmatprep.mubr.f32.mxu0 %v858
      %1036 = vmatmul.mubr.f32.gmra.mrb[0].mxu0 %v755
      %v1037 = vpop.f32.mrb[0].mxu0
      %v1038 = vadd.f32 %v854, %v1037
      %v1039 = vpop.f32.mrb[0].mxu0
      %1040 = vmatprep.mubr.f32.mxu0 %v861
      %1041 = vmatmul.mubr.f32.gmra.mrb[0].mxu0 %v757
      %v1042 = vpop.f32.mrb[0].mxu0
      %v1043 = vadd.f32 %v854, %v1042
      %v1044 = vpop.f32.mrb[0].mxu0
      %1045 = vmatprep.mubr.f32.mxu0 %v864
      %1046 = vmatmul.mubr.f32.gmra.mrb[0].mxu0 %v759
      %v1047 = vpop.f32.mrb[0].mxu0
      %v1048 = vadd.f32 %v854, %v1047
      %v1049 = vpop.f32.mrb[0].mxu0
      %1050 = vmatprep.mubr.f32.mxu0 %v867
      %1051 = vmatmul.mubr.f32.gmra.mrb[0].mxu0 %v761
      %v1052 = vpop.f32.mrb[0].mxu0
      %v1053 = vadd.f32 %v854, %v1052
      %v1054 = vpop.f32.mrb[0].mxu0
      %1055 = vmatprep.mubr.f32.mxu0 %v870
      %1056 = vmatmul.mubr.f32.gmra.mrb[0].mxu0 %v763
      %v1057 = vpop.f32.mrb[0].mxu0
      %v1058 = vadd.f32 %v854, %v1057
      %v1059 = vpop.f32.mrb[0].mxu0
      %1060 = vmatprep.mubr.f32.mxu0 %v873
      %1061 = vmatmul.mubr.f32.gmra.mrb[0].mxu0 %v765
      %v1062 = vpop.f32.mrb[0].mxu0
      %v1063 = vadd.f32 %v854, %v1062
      %v1064 = vpop.f32.mrb[0].mxu0
      %1065 = vmatprep.mubr.f32.mxu0 %v876
      %1066 = vmatmul.mubr.f32.gmra.mrb[0].mxu0 %v767
      %v1067 = vpop.f32.mrb[0].mxu0
      %v1068 = vadd.f32 %v854, %v1067
      %v1069 = vpop.f32.mrb[0].mxu0
      %1070 = vmatprep.mubr.f32.mxu0 %v879
      %1071 = vmatmul.mubr.f32.gmra.mrb[0].mxu0 %v769
      %v1072 = vpop.f32.mrb[0].mxu0
      %v1073 = vadd.f32 %v854, %v1072
      %v1074 = vpop.f32.mrb[0].mxu0
      %1075 = vmatprep.mubr.f32.mxu0 %v882
      %1076 = vmatmul.mubr.f32.gmra.mrb[0].mxu0 %v771
      %v1077 = vpop.f32.mrb[0].mxu0
      %v1078 = vadd.f32 %v854, %v1077
      %v1079 = vpop.f32.mrb[0].mxu0
      %1080 = vmatprep.mubr.f32.mxu0 %v885
      %1081 = vmatmul.mubr.f32.gmra.mrb[0].mxu0 %v773
      %v1082 = vpop.f32.mrb[0].mxu0
      %v1083 = vadd.f32 %v854, %v1082
      %v1084 = vpop.f32.mrb[0].mxu0
      %1085 = vmatprep.mubr.f32.mxu0 %v888
      %1086 = vmatmul.mubr.f32.gmra.mrb[0].mxu0 %v775
      %v1087 = vpop.f32.mrb[0].mxu0
      %v1088 = vadd.f32 %v854, %v1087
      %v1089 = vpop.f32.mrb[0].mxu0
      %1090 = vmatprep.mubr.f32.mxu0 %v891
      %1091 = vmatmul.mubr.f32.gmra.mrb[0].mxu0 %v777
      %v1092 = vpop.f32.mrb[0].mxu0
      %v1093 = vadd.f32 %v854, %v1092
      %v1094 = vpop.f32.mrb[0].mxu0
      %1095 = vmatprep.mubr.f32.mxu0 %v894
      %1096 = vmatmul.mubr.f32.gmra.mrb[0].mxu0 %v779
      %v1097 = vpop.f32.mrb[0].mxu0
      %v1098 = vadd.f32 %v854, %v1097
      %v1099 = vpop.f32.mrb[0].mxu0
      %1100 = vmatprep.mubr.f32.mxu0 %v897
      %1101 = vmatmul.mubr.f32.gmra.mrb[0].mxu0 %v781
      %v1102 = vpop.f32.mrb[0].mxu0
      %v1103 = vadd.f32 %v854, %v1102
      %v1104 = vpop.f32.mrb[0].mxu0
      %1105 = vmatprep.mubr.f32.mxu0 %v900
      %1106 = vmatmul.mubr.f32.gmra.mrb[0].mxu0 %v783
      %v1107 = vpop.f32.mrb[0].mxu0
      %v1108 = vadd.f32 %v854, %v1107
      %v1109 = vpop.f32.mrb[0].mxu0
      %1110 = vmatprep.mubr.f32.mxu0 %v903
      %1111 = vmatmul.mubr.f32.gmra.mrb[0].mxu0 %v785
      %v1112 = vpop.f32.mrb[0].mxu0
      %v1113 = vadd.f32 %v854, %v1112
      %v1114 = vpop.f32.mrb[0].mxu0
      %1115 = vmatprep.mubr.f32.mxu0 %v906
      %1116 = vmatmul.mubr.f32.gmra.mrb[0].mxu0 %v787
      %v1117 = vpop.f32.mrb[0].mxu0
      %v1118 = vadd.f32 %v854, %v1117
      %v1119 = vpop.f32.mrb[0].mxu0
      %1120 = vmatprep.mubr.f32.mxu0 %v909
      %1121 = vmatmul.mubr.f32.gmra.mrb[0].mxu0 %v789
      %v1122 = vpop.f32.mrb[0].mxu0
      %v1123 = vadd.f32 %v854, %v1122
      %v1124 = vpop.f32.mrb[0].mxu0
      %1125 = vmatprep.mubr.f32.mxu0 %v912
      %1126 = vmatmul.mubr.f32.gmra.mrb[0].mxu0 %v791
      %v1127 = vpop.f32.mrb[0].mxu0
      %v1128 = vadd.f32 %v854, %v1127
      %v1129 = vpop.f32.mrb[0].mxu0
      %1130 = vmatprep.mubr.f32.mxu0 %v915
      %1131 = vmatmul.mubr.f32.gmra.mrb[0].mxu0 %v793
      %v1132 = vpop.f32.mrb[0].mxu0
      %v1133 = vadd.f32 %v854, %v1132
      %v1134 = vpop.f32.mrb[0].mxu0
      %1135 = vmatprep.mubr.f32.mxu0 %v918
      %1136 = vmatmul.mubr.f32.gmra.mrb[0].mxu0 %v795
      %v1137 = vpop.f32.mrb[0].mxu0
      %v1138 = vadd.f32 %v854, %v1137
      %v1139 = vpop.f32.mrb[0].mxu0
      %1140 = vmatprep.mubr.f32.mxu0 %v921
      %1141 = vmatmul.mubr.f32.gmra.mrb[0].mxu0 %v797
      %v1142 = vpop.f32.mrb[0].mxu0
      %v1143 = vadd.f32 %v854, %v1142
      %v1144 = vpop.f32.mrb[0].mxu0
      %1145 = vmatprep.mubr.f32.mxu0 %v924
      %1146 = vmatmul.mubr.f32.gmra.mrb[0].mxu0 %v799
      %v1147 = vpop.f32.mrb[0].mxu0
      %v1148 = vadd.f32 %v854, %v1147
      %v1149 = vpop.f32.mrb[0].mxu0
      %1150 = vmatprep.mubr.f32.mxu0 %v927
      %1151 = vmatmul.mubr.f32.gmra.mrb[0].mxu0 %v801
      %v1152 = vpop.f32.mrb[0].mxu0
      %v1153 = vadd.f32 %v854, %v1152
      %v1154 = vpop.f32.mrb[0].mxu0
      %1155 = vmatprep.mubr.f32.mxu0 %v930
      %1156 = vmatmul.mubr.f32.gmra.mrb[0].mxu0 %v803
      %v1157 = vpop.f32.mrb[0].mxu0
      %v1158 = vadd.f32 %v854, %v1157
      %v1159 = vpop.f32.mrb[0].mxu0
      %1160 = vmatprep.mubr.f32.mxu0 %v933
      %1161 = vmatmul.mubr.f32.gmra.mrb[0].mxu0 %v805
      %v1162 = vpop.f32.mrb[0].mxu0
      %v1163 = vadd.f32 %v854, %v1162
      %v1164 = vpop.f32.mrb[0].mxu0
      %1165 = vmatprep.mubr.f32.mxu0 %v936
      %1166 = vmatmul.mubr.f32.gmra.mrb[0].mxu0 %v807
      %v1167 = vpop.f32.mrb[0].mxu0
      %v1168 = vadd.f32 %v854, %v1167
      %v1169 = vpop.f32.mrb[0].mxu0
      %1170 = vmatprep.mubr.f32.mxu0 %v939
      %1171 = vmatmul.mubr.f32.gmra.mrb[0].mxu0 %v809
      %v1172 = vpop.f32.mrb[0].mxu0
      %v1173 = vadd.f32 %v854, %v1172
      %v1174 = vpop.f32.mrb[0].mxu0
      %1175 = vmatprep.mubr.f32.mxu0 %v942
      %1176 = vmatmul.mubr.f32.gmra.mrb[0].mxu0 %v811
      %v1177 = vpop.f32.mrb[0].mxu0
      %v1178 = vadd.f32 %v854, %v1177
      %v1179 = vpop.f32.mrb[0].mxu0
      %1180 = vmatprep.mubr.f32.mxu0 %v945
      %1181 = vmatmul.mubr.f32.gmra.mrb[0].mxu0 %v813
      %v1182 = vpop.f32.mrb[0].mxu0
      %v1183 = vadd.f32 %v854, %v1182
      %v1184 = vpop.f32.mrb[0].mxu0
      %1185 = vmatprep.mubr.f32.mxu0 %v948
      %1186 = vmatmul.mubr.f32.gmra.mrb[0].mxu0 %v815
      %v1187 = vpop.f32.mrb[0].mxu0
      %v1188 = vadd.f32 %v854, %v1187
      %v1189 = vpop.f32.mrb[0].mxu0
      %1190 = vmatprep.mubr.f32.mxu0 %v951
      %1191 = vmatmul.mubr.f32.gmra.mrb[0].mxu0 %v817
      %v1192 = vpop.f32.mrb[0].mxu0
      %v1193 = vadd.f32 %v854, %v1192
      %v1194 = vpop.f32.mrb[0].mxu0
      %1195 = vmatprep.mubr.f32.mxu0 %v954
      %1196 = vmatmul.mubr.f32.gmra.mrb[0].mxu0 %v819
      %v1197 = vpop.f32.mrb[0].mxu0
      %v1198 = vadd.f32 %v854, %v1197
      %v1199 = vpop.f32.mrb[0].mxu0
      %1200 = vmatprep.mubr.f32.mxu0 %v957
      %1201 = vmatmul.mubr.f32.gmra.mrb[0].mxu0 %v821
      %v1202 = vpop.f32.mrb[0].mxu0
      %v1203 = vadd.f32 %v854, %v1202
      %v1204 = vpop.f32.mrb[0].mxu0
      %1205 = vmatprep.mubr.f32.mxu0 %v960
      %1206 = vmatmul.mubr.f32.gmra.mrb[0].mxu0 %v823
      %v1207 = vpop.f32.mrb[0].mxu0
      %v1208 = vadd.f32 %v854, %v1207
      %v1209 = vpop.f32.mrb[0].mxu0
      %1210 = vmatprep.mubr.f32.mxu0 %v963
      %1211 = vmatmul.mubr.f32.gmra.mrb[0].mxu0 %v825
      %v1212 = vpop.f32.mrb[0].mxu0
      %v1213 = vadd.f32 %v854, %v1212
      %v1214 = vpop.f32.mrb[0].mxu0
      %1215 = vmatprep.mubr.f32.mxu0 %v966
      %1216 = vmatmul.mubr.f32.gmra.mrb[0].mxu0 %v827
      %v1217 = vpop.f32.mrb[0].mxu0
      %v1218 = vadd.f32 %v854, %v1217
      %v1219 = vpop.f32.mrb[0].mxu0
      %1220 = vmatprep.mubr.f32.mxu0 %v969
      %1221 = vmatmul.mubr.f32.gmra.mrb[0].mxu0 %v829
      %v1222 = vpop.f32.mrb[0].mxu0
      %v1223 = vadd.f32 %v854, %v1222
      %v1224 = vpop.f32.mrb[0].mxu0
      %1225 = vdwg.mxu0
      %1226 = vst [vmem:[%s451] sm:$0xff] %v1038
      %1227 = vst [vmem:[%s451 + $0x8] sm:$0xff] %v1043
      %1228 = vst [vmem:[%s451 + $0x10] sm:$0xff] %v1048
      %1229 = vst [vmem:[%s451 + $0x18] sm:$0xff] %v1053
      %1230 = vst [vmem:[%s451 + $0x20] sm:$0xff] %v1058
      %1231 = vst [vmem:[%s451 + $0x28] sm:$0xff] %v1063
      %1232 = vst [vmem:[%s451 + $0x30] sm:$0xff] %v1068
      %1233 = vst [vmem:[%s451 + $0x38] sm:$0xff] %v1073
      %1234 = vst [vmem:[%s451 + $0x40] sm:$0xff] %v1078
      %1235 = vst [vmem:[%s451 + $0x48] sm:$0xff] %v1083
      %1236 = vst [vmem:[%s451 + $0x50] sm:$0xff] %v1088
      %1237 = vst [vmem:[%s451 + $0x58] sm:$0xff] %v1093
      %1238 = vst [vmem:[%s451 + $0x60] sm:$0xff] %v1098
      %1239 = vst [vmem:[%s451 + $0x68] sm:$0xff] %v1103
      %1240 = vst [vmem:[%s451 + $0x70] sm:$0xff] %v1108
      %1241 = vst [vmem:[%s451 + $0x78] sm:$0xff] %v1113
      %1242 = vst [vmem:[%s451 + $0x80] sm:$0xff] %v1118
      %1243 = vst [vmem:[%s451 + $0x88] sm:$0xff] %v1123
      %1244 = vst [vmem:[%s451 + $0x90] sm:$0xff] %v1128
      %1245 = vst [vmem:[%s451 + $0x98] sm:$0xff] %v1133
      %1246 = vst [vmem:[%s451 + $0xa0] sm:$0xff] %v1138
      %1247 = vst [vmem:[%s451 + $0xa8] sm:$0xff] %v1143
      %1248 = vst [vmem:[%s451 + $0xb0] sm:$0xff] %v1148
      %1249 = vst [vmem:[%s451 + $0xb8] sm:$0xff] %v1153
      %1250 = vst [vmem:[%s451 + $0xc0] sm:$0xff] %v1158
      %1251 = vst [vmem:[%s451 + $0xc8] sm:$0xff] %v1163
      %1252 = vst [vmem:[%s451 + $0xd0] sm:$0xff] %v1168
      %1253 = vst [vmem:[%s451 + $0xd8] sm:$0xff] %v1173
      %1254 = vst [vmem:[%s451 + $0xe0] sm:$0xff] %v1178
      %1255 = vst [vmem:[%s451 + $0xe8] sm:$0xff] %v1183
      %1256 = vst [vmem:[%s451 + $0xf0] sm:$0xff] %v1188
      %1257 = vst [vmem:[%s451 + $0xf8] sm:$0xff] %v1193
      %1258 = vst [vmem:[%s451 + $0x100] sm:$0xff] %v1198
      %1259 = vst [vmem:[%s451 + $0x108] sm:$0xff] %v1203
      %1260 = vst [vmem:[%s451 + $0x110] sm:$0xff] %v1208
      %1261 = vst [vmem:[%s451 + $0x118] sm:$0xff] %v1213
      %1262 = vst [vmem:[%s451 + $0x120] sm:$0xff] %v1218
      %1263 = vst [vmem:[%s451 + $0x128] sm:$0xf] %v1223
      %p1264 = scmp.lt.s32.totalorder %s23, 1
      %s1265 = scalar_select %p1264, %s23, 1
      %s1266 = smul.addr %s1265, 8
      %s1267 = smul.addr %s1266, 8
      %s1268 = scalar_lea.vmem %s9, %s1267
      %p1269 = scmp.lt.s32.totalorder %s23, 1
      %s1270 = scalar_select %p1269, %s23, 1
      %s1271 = smul.addr %s1270, 5
      %s1272 = smul.addr %s1271, 8
      %s1273 = scalar_lea.vmem %s10, %s1272
      %p1274 = scmp.lt.s32.totalorder %s23, 1
      %s1275 = scalar_select %p1274, %s23, 1
      %s1276 = smul.addr %s1275, 38
      %s1277 = smul.addr %s1276, 8
      %s1278 = scalar_lea.vmem %s11, %s1277
      // Predicated region
      $region57: #{encoder_ae_forward.2} parent=55 // pred_check
        %p1279 = pneg %p245
      $region58: #{encoder_ae_forward.2} parent=55 // pred_check_branch
        %1281 = sbr.rel (%p1279) target = $region60
      $region59: #{encoder_ae_forward.2} parent=55 // pred_region
        _
      $region60: #{encoder_ae_forward.2} parent=55 // pred_fallthru
        _
      // Predicated region
      $region61: #{encoder_ae_forward.2} parent=55 // pred_check
        %p1282 = pneg %p271
      $region62: #{encoder_ae_forward.2} parent=55 // pred_check_branch
        %1284 = sbr.rel (%p1282) target = $region64
      $region63: #{encoder_ae_forward.2} parent=55 // pred_region
        _
      $region64: #{encoder_ae_forward.2} parent=55 // pred_fallthru
        _
      // Predicated region
      $region65: #{encoder_ae_forward.2} parent=55 // pred_check
        %p1285 = pneg %p297
      $region66: #{encoder_ae_forward.2} parent=55 // pred_check_branch
        %1287 = sbr.rel (%p1285) target = $region68
      $region67: #{encoder_ae_forward.2} parent=55 // pred_region
        _
      $region68: #{encoder_ae_forward.2} parent=55 // pred_fallthru
        _
    $region56: #{encoder_ae_forward.2} parent=5 // pred_fallthru
      _
    %p1288 = scmp.le.s32.totalorder 2, %s18
    // Predicated region
    $region69: #{encoder_ae_forward.2} parent=5 // pred_check
      %p1289 = pneg %p1288
    $region70: #{encoder_ae_forward.2} parent=5 // pred_check_branch
      %1291 = sbr.rel (%p1289) target = $region72
    $region71: #{encoder_ae_forward.2} parent=5 // pred_region
      %s1292 = ssub.s32 %s18, 2
      // Predicated region
      $region73: #{encoder_ae_forward.2} parent=71 // pred_check
        %p1293 = pneg %p251
      $region74: #{encoder_ae_forward.2} parent=71 // pred_check_branch
        %1295 = sbr.rel (%p1293) target = $region76
      $region75: #{encoder_ae_forward.2} parent=71 // pred_region
        %p1296 = scmp.lt.s32.totalorder %s24, 1
        %s1297 = scalar_select %p1296, %s24, 1
        %s1298 = smul.addr %s1297, 8
        %s1299 = smul.addr %s1298, 8
        %s1300 = scalar_lea.vmem %s9, %s1299
      $region76: #{encoder_ae_forward.2} parent=71 // pred_fallthru
        _
      // Predicated region
      $region77: #{encoder_ae_forward.2} parent=71 // pred_check
        %p1301 = pneg %p277
      $region78: #{encoder_ae_forward.2} parent=71 // pred_check_branch
        %1303 = sbr.rel (%p1301) target = $region80
      $region79: #{encoder_ae_forward.2} parent=71 // pred_region
        %p1304 = scmp.lt.s32.totalorder %s24, 1
        %s1305 = scalar_select %p1304, %s24, 1
        %s1306 = smul.addr %s1305, 5
        %s1307 = smul.addr %s1306, 8
        %s1308 = scalar_lea.vmem %s10, %s1307
      $region80: #{encoder_ae_forward.2} parent=71 // pred_fallthru
        _
      // Predicated region
      $region81: #{encoder_ae_forward.2} parent=71 // pred_check
        %p1309 = pneg %p303
      $region82: #{encoder_ae_forward.2} parent=71 // pred_check_branch
        %1311 = sbr.rel (%p1309) target = $region84
      $region83: #{encoder_ae_forward.2} parent=71 // pred_region
        %p1312 = scmp.lt.s32.totalorder %s24, 1
        %s1313 = scalar_select %p1312, %s24, 1
        %s1314 = smul.addr %s1313, 38
        %s1315 = smul.addr %s1314, 8
        %s1316 = scalar_lea.vmem %s11, %s1315
      $region84: #{encoder_ae_forward.2} parent=71 // pred_fallthru
        _
    $region72: #{encoder_ae_forward.2} parent=5 // pred_fallthru
      _
  $region6: #{encoder_ae_forward.2} parent=0 // loop_footer
    %s22 = sadd.s32 1, %s18
  $region7: #{encoder_ae_forward.2} parent=0 // loop_footer_branch
    %17 = sbr.rel target = $region3
  $region8: #{encoder_ae_forward.2} parent=0 // loop_exit
    _

// kernel: encoder_ae_forward.3
$region0: #{encoder_ae_forward.3}
  #allocation0 [shape = 'u32[]', space=smem, size = 0x4, offset = 0x4, fixed_abs, tag = 'smem constant byte address 0x4 - core index']
  #allocation1 [shape = 'u32[144,128]{1,0:T(1,128)}', space=vmem, size = 0x12000, scoped, tag = 'internal scratch']
  %s0 = inlined_call_operand.vmem [shape: f32[16,16], index: 0, kind: input, shape index: {}]
  %s1 = inlined_call_operand.vmem [shape: f32[2,64,16], index: 1, kind: input, shape index: {}]
  %s2 = inlined_call_operand.vmem [shape: f32[2,2,36,16], index: 2, kind: input, shape index: {}]
  %s3 = inlined_call_operand.vmem [shape: f32[2,3,128,16], index: 3, kind: input, shape index: {}]
  %s4 = inlined_call_operand.hbm [shape: f32[2,64,128], index: 4, kind: output, shape index: {}]
  %s5 = sld [smem:[#allocation0]]
  $region49: #{encoder_ae_forward.3} parent=0
    _
  %s7 = ssub.s32 1, %s5
  %s8 = scalar_select 0, %s7, %s5
  $region1: #{encoder_ae_forward.3} parent=0
    #allocation2 [shape = 'u8[65536]{0}', space=vmem, size = 0x10000, scoped, tag = 'output window, operand 0']
    #allocation3 [shape = 's32[2]{0}', space=sflag, size = 0x8, scoped, tag = 'scoped memory for encoder_ae_forward.3']
    %9 = vsyncpa [#allocation3], 0
    %s10 = scalar_lea.sflag [#allocation3], 1
    %11 = vsyncpa %s10, 0
    loop: start=0, step=1, limit=4
    $region2: #{encoder_ae_forward.3} parent=1 // loop_pre_header
      _
    $region3: #{encoder_ae_forward.3} parent=1 // loop_header
      %s13 = sphi 0, %s17
      %p14 = scmp.ge.s32.totalorder %s13, 4
      %s21 = sphi 0, %s21
      %s23 = sphi 0, %s21
      %s24 = sphi 0, %s23
      %s38 = sphi 0, %s24
      %s44 = sphi 0, %s46
      %s47 = sphi 0, %s44
      %s48 = sphi 0, %s47
      %s64 = sphi 0, %s48
      %s70 = sphi 0, %s72
      %s73 = sphi 0, %s70
      %s74 = sphi 0, %s73
      %s90 = sphi 0, %s74
      %s96 = sphi 0, %s98
      %s99 = sphi 0, %s96
      %s100 = sphi 0, %s99
      %s116 = sphi 0, %s100
      %s122 = sphi 0, %s124
      %s125 = sphi 0, %s122
      %s126 = sphi 0, %s125
      %s142 = sphi 0, %s126
    $region4: #{encoder_ae_forward.3} parent=1 // loop_header_branch
      %16 = sbr.rel (%p14) target = $region8
    $region5: #{encoder_ae_forward.3} parent=1 // loop_body
      %s18 = ssub.s32 %s13, 1
      %s19 = ssub.s32 %s13, 2
      %s20 = sadd.s32 %s13, 1
      %s22 = sadd.s32 %s21, 1
      %p25 = scmp.eq.s32.totalorder %s13, 1
      %p26 = scmp.ne.s32.totalorder %s21, %s23
      %p27 = scmp.eq.s32.totalorder %s13, 0
      %p28 = por %p26, %p27
      %p29 = scmp.ne.s32.totalorder %s21, %s23
      %p30 = scmp.eq.s32.totalorder %s18, 1
      %p31 = por %p29, %p30
      %p32 = scmp.ne.s32.totalorder %s23, %s24
      %p33 = scmp.eq.s32.totalorder %s18, 0
      %p34 = por %p32, %p33
      %p35 = scmp.ne.s32.totalorder %s23, %s24
      %p36 = scmp.eq.s32.totalorder %s19, 1
      %p37 = por %p35, %p36
      %p39 = scmp.ne.s32.totalorder %s24, %s38
      %p40 = scmp.eq.s32.totalorder %s19, 0
      %p41 = por %p39, %p40
      %s42 = ssub.s32 %s13, %s20
      %p43 = scmp.eq.s32.totalorder %s42, 0
      %s45 = sadd.s32 %s44, 1
      %s46 = scalar_select %p43, %s44, %s45
      %p49 = pneg %p43
      %p50 = scmp.eq.s32.totalorder %s13, 1
      %p51 = por %p49, %p50
      %p52 = scmp.ne.s32.totalorder %s44, %s47
      %p53 = scmp.eq.s32.totalorder %s13, 0
      %p54 = por %p52, %p53
      %p55 = scmp.ne.s32.totalorder %s44, %s47
      %p56 = scmp.eq.s32.totalorder %s18, 1
      %p57 = por %p55, %p56
      %p58 = scmp.ne.s32.totalorder %s47, %s48
      %p59 = scmp.eq.s32.totalorder %s18, 0
      %p60 = por %p58, %p59
      %p61 = scmp.ne.s32.totalorder %s47, %s48
      %p62 = scmp.eq.s32.totalorder %s19, 1
      %p63 = por %p61, %p62
      %p65 = scmp.ne.s32.totalorder %s48, %s64
      %p66 = scmp.eq.s32.totalorder %s19, 0
      %p67 = por %p65, %p66
      %s68 = ssub.s32 %s13, %s20
      %p69 = scmp.eq.s32.totalorder %s68, 0
      %s71 = sadd.s32 %s70, 1
      %s72 = scalar_select %p69, %s70, %s71
      %p75 = pneg %p69
      %p76 = scmp.eq.s32.totalorder %s13, 1
      %p77 = por %p75, %p76
      %p78 = scmp.ne.s32.totalorder %s70, %s73
      %p79 = scmp.eq.s32.totalorder %s13, 0
      %p80 = por %p78, %p79
      %p81 = scmp.ne.s32.totalorder %s70, %s73
      %p82 = scmp.eq.s32.totalorder %s18, 1
      %p83 = por %p81, %p82
      %p84 = scmp.ne.s32.totalorder %s73, %s74
      %p85 = scmp.eq.s32.totalorder %s18, 0
      %p86 = por %p84, %p85
      %p87 = scmp.ne.s32.totalorder %s73, %s74
      %p88 = scmp.eq.s32.totalorder %s19, 1
      %p89 = por %p87, %p88
      %p91 = scmp.ne.s32.totalorder %s74, %s90
      %p92 = scmp.eq.s32.totalorder %s19, 0
      %p93 = por %p91, %p92
      %s94 = ssub.s32 %s13, %s20
      %p95 = scmp.eq.s32.totalorder %s94, 0
      %s97 = sadd.s32 %s96, 1
      %s98 = scalar_select %p95, %s96, %s97
      %p101 = pneg %p95
      %p102 = scmp.eq.s32.totalorder %s13, 1
      %p103 = por %p101, %p102
      %p104 = scmp.ne.s32.totalorder %s96, %s99
      %p105 = scmp.eq.s32.totalorder %s13, 0
      %p106 = por %p104, %p105
      %p107 = scmp.ne.s32.totalorder %s96, %s99
      %p108 = scmp.eq.s32.totalorder %s18, 1
      %p109 = por %p107, %p108
      %p110 = scmp.ne.s32.totalorder %s99, %s100
      %p111 = scmp.eq.s32.totalorder %s18, 0
      %p112 = por %p110, %p111
      %p113 = scmp.ne.s32.totalorder %s99, %s100
      %p114 = scmp.eq.s32.totalorder %s19, 1
      %p115 = por %p113, %p114
      %p117 = scmp.ne.s32.totalorder %s100, %s116
      %p118 = scmp.eq.s32.totalorder %s19, 0
      %p119 = por %p117, %p118
      %s120 = ssub.s32 %s13, %s20
      %p121 = scmp.eq.s32.totalorder %s120, 0
      %s123 = sadd.s32 %s122, 1
      %s124 = scalar_select %p121, %s122, %s123
      %p127 = pneg %p121
      %p128 = scmp.eq.s32.totalorder %s13, 1
      %p129 = por %p127, %p128
      %p130 = scmp.ne.s32.totalorder %s122, %s125
      %p131 = scmp.eq.s32.totalorder %s13, 0
      %p132 = por %p130, %p131
      %p133 = scmp.ne.s32.totalorder %s122, %s125
      %p134 = scmp.eq.s32.totalorder %s18, 1
      %p135 = por %p133, %p134
      %p136 = scmp.ne.s32.totalorder %s125, %s126
      %p137 = scmp.eq.s32.totalorder %s18, 0
      %p138 = por %p136, %p137
      %p139 = scmp.ne.s32.totalorder %s125, %s126
      %p140 = scmp.eq.s32.totalorder %s19, 1
      %p141 = por %p139, %p140
      %p143 = scmp.ne.s32.totalorder %s126, %s142
      %p144 = scmp.eq.s32.totalorder %s19, 0
      %p145 = por %p143, %p144
      %p146 = scmp.le.s32.totalorder 1, %s13
      %p147 = scmp.lt.s32.totalorder %s13, 3
      %p148 = pnand %p146, %p147
      %p149 = pneg %p148
      // Predicated region
      $region9: #{encoder_ae_forward.3} parent=5 // pred_check
        _
      $region10: #{encoder_ae_forward.3} parent=5 // pred_check_branch
        %151 = sbr.rel (%p148) target = $region12
      $region11: #{encoder_ae_forward.3} parent=5 // pred_region
        %s152 = ssub.s32 %s13, 1
        // Predicated region
        $region13: #{encoder_ae_forward.3} parent=11 // pred_check
          %p153 = pneg %p34
        $region14: #{encoder_ae_forward.3} parent=11 // pred_check_branch
          %155 = sbr.rel (%p153) target = $region16
        $region15: #{encoder_ae_forward.3} parent=11 // pred_region
          _
        $region16: #{encoder_ae_forward.3} parent=11 // pred_fallthru
          _
      $region12: #{encoder_ae_forward.3} parent=5 // pred_fallthru
        _
      %p156 = scmp.lt.s32.totalorder %s13, 2
      // Predicated region
      $region17: #{encoder_ae_forward.3} parent=5 // pred_check
        %p157 = pneg %p156
      $region18: #{encoder_ae_forward.3} parent=5 // pred_check_branch
        %159 = sbr.rel (%p157) target = $region20
      $region19: #{encoder_ae_forward.3} parent=5 // pred_region
        // Predicated region
        $region21: #{encoder_ae_forward.3} parent=19 // pred_check
          %p160 = pneg %p54
        $region22: #{encoder_ae_forward.3} parent=19 // pred_check_branch
          %162 = sbr.rel (%p160) target = $region24
        $region23: #{encoder_ae_forward.3} parent=19 // pred_region
          %p163 = scmp.lt.s32.totalorder %s13, 1
          %s164 = scalar_select %p163, %s13, 1
          %s165 = smul.addr %s164, 8
          %s166 = smul.addr %s165, 8
          %s167 = scalar_lea.vmem %s1, %s166
        $region24: #{encoder_ae_forward.3} parent=19 // pred_fallthru
          _
        // Predicated region
        $region25: #{encoder_ae_forward.3} parent=19 // pred_check
          %p168 = pneg %p80
        $region26: #{encoder_ae_forward.3} parent=19 // pred_check_branch
          %170 = sbr.rel (%p168) target = $region28
        $region27: #{encoder_ae_forward.3} parent=19 // pred_region
          %p171 = scmp.lt.s32.totalorder %s13, 1
          %s172 = scalar_select %p171, %s13, 1
          %s173 = smul.addr %s172, 10
          %s174 = smul.addr %s173, 8
          %s175 = scalar_lea.vmem %s2, %s174
        $region28: #{encoder_ae_forward.3} parent=19 // pred_fallthru
          _
        // Predicated region
        $region29: #{encoder_ae_forward.3} parent=19 // pred_check
          %p176 = pneg %p106
        $region30: #{encoder_ae_forward.3} parent=19 // pred_check_branch
          %178 = sbr.rel (%p176) target = $region32
        $region31: #{encoder_ae_forward.3} parent=19 // pred_region
          %p179 = scmp.lt.s32.totalorder %s13, 1
          %s180 = scalar_select %p179, %s13, 1
          %s181 = smul.addr %s180, 48
          %s182 = smul.addr %s181, 8
          %s183 = scalar_lea.vmem %s3, %s182
        $region32: #{encoder_ae_forward.3} parent=19 // pred_fallthru
          _
      $region20: #{encoder_ae_forward.3} parent=5 // pred_fallthru
        _
      %p184 = scmp.le.s32.totalorder 1, %s13
      %p185 = scmp.lt.s32.totalorder %s13, 3
      %p186 = pnand %p184, %p185
      %p187 = pneg %p186
      // Predicated region
      $region33: #{encoder_ae_forward.3} parent=5 // pred_check
        _
      $region34: #{encoder_ae_forward.3} parent=5 // pred_check_branch
        %189 = sbr.rel (%p186) target = $region36
      $region35: #{encoder_ae_forward.3} parent=5 // pred_region
        %s190 = ssub.s32 %s13, 1
        %p191 = pneg %p34
        %p192 = pneg %p31
        %p193 = scmp.lt.s32.totalorder %s18, 1
        %s194 = scalar_select %p193, %s18, 1
        %s195 = smul.addr %s194, 8
        %s196 = smul.addr %s195, 8
        %s197 = scalar_lea.vmem %s1, %s196
        %p198 = pneg %p60
        %p199 = pneg %p57
        %p200 = scmp.lt.s32.totalorder %s18, 1
        %s201 = scalar_select %p200, %s18, 1
        %s202 = smul.addr %s201, 10
        %s203 = smul.addr %s202, 8
        %s204 = scalar_lea.vmem %s2, %s203
        %p205 = pneg %p86
        %p206 = pneg %p83
        %p207 = scmp.lt.s32.totalorder %s18, 1
        %s208 = scalar_select %p207, %s18, 1
        %s209 = smul.addr %s208, 48
        %s210 = smul.addr %s209, 8
        %s211 = scalar_lea.vmem %s3, %s210
        %p212 = pneg %p112
        %p213 = pneg %p109
        %p214 = pneg %p138
        %p215 = pneg %p135
        %s216 = sand.u32 %s125, 1
        %s217 = scalar_lea.sflag [#allocation3], %s216
        %s218 = sand.u32 %s125, 1
        %s219 = smul.addr %s218, 64
        %s220 = scalar_lea.vmem [#allocation2], %s219
        %p221 = scmp.lt.s32.totalorder %s18, 1
        %s222 = scalar_select %p221, %s18, 1
        %s223 = smul.addr %s222, 8
        %s224 = smul.addr %s223, 8
        %s225 = scalar_lea.vmem %s1, %s224
        %p226 = scmp.lt.s32.totalorder %s18, 1
        %s227 = scalar_select %p226, %s18, 1
        %s228 = smul.addr %s227, 10
        %s229 = smul.addr %s228, 8
        %s230 = scalar_lea.vmem %s2, %s229
        %p231 = scmp.lt.s32.totalorder %s18, 1
        %s232 = scalar_select %p231, %s18, 1
        %s233 = smul.addr %s232, 48
        %s234 = smul.addr %s233, 8
        %s235 = scalar_lea.vmem %s3, %s234
        %v236 = vld [vmem:[%s225] sm:$0xff]
        %v237 = vld [vmem:[%s225 + $0x8] sm:$0xff]
        %v238 = vld [vmem:[%s225 + $0x10] sm:$0xff]
        %v239 = vld [vmem:[%s225 + $0x18] sm:$0xff]
        %v240 = vld [vmem:[%s225 + $0x20] sm:$0xff]
        %v241 = vld [vmem:[%s225 + $0x28] sm:$0xff]
        %v242 = vld [vmem:[%s225 + $0x30] sm:$0xff]
        %v243 = vld [vmem:[%s225 + $0x38] sm:$0xff]
        %v244 = vld [vmem:[%s0] sm:$0xff]
        %v245 = vld [vmem:[%s0 + $0x8] sm:$0xff]
        %v246 = vld [vmem:[%s230] sm:$0xff]
        %v247 = vld [vmem:[%s230 + $0x8] sm:$0xff]
        %v248 = vld [vmem:[%s230 + $0x10] sm:$0xff]
        %v249 = vld [vmem:[%s230 + $0x18] sm:$0xff]
        %v250 = vld [vmem:[%s230 + $0x20] sm:$0xf]
        %251 = vxpose.xlu0.b32.start [1/16] %v246, 128
        %252 = vxpose.xlu0.b32.cont [2/16] %v247, 128
        %253 = vxpose.xlu0.b32.cont [3/16] %v248, 128
        %254 = vxpose.xlu0.b32.cont [4/16] %v249, 128
        %255 = vxpose.xlu0.b32.cont [5/16] %v250, 128
        %256 = vxpose.xlu0.b32.cont [6/16] 0.0, 128
        %257 = vxpose.xlu0.b32.cont [7/16] 0.0, 128
        %258 = vxpose.xlu0.b32.cont [8/16] 0.0, 128
        %259 = vxpose.xlu0.b32.cont [9/16] 0.0, 128
        %260 = vxpose.xlu0.b32.cont [10/16] 0.0, 128
        %261 = vxpose.xlu0.b32.cont [11/16] 0.0, 128
        %262 = vxpose.xlu0.b32.cont [12/16] 0.0, 128
        %263 = vxpose.xlu0.b32.cont [13/16] 0.0, 128
        %264 = vxpose.xlu0.b32.cont [14/16] 0.0, 128
        %265 = vxpose.xlu0.b32.cont [15/16] 0.0, 128
        %266 = vxpose.xlu0.b32.end [16/16] 0.0, 128
        %v267 = vpop.trf.xlu0
        %v268 = vpop.trf.xlu0
        %v269 = vpop.trf.xlu0
        %v270 = vpop.trf.xlu0
        %v271 = vpop.trf.xlu0
        %v272 = vpop.trf.xlu0
        %v273 = vpop.trf.xlu0
        %v274 = vpop.trf.xlu0
        %v275 = vpop.trf.xlu0
        %v276 = vpop.trf.xlu0
        %v277 = vpop.trf.xlu0
        %v278 = vpop.trf.xlu0
        %v279 = vpop.trf.xlu0
        %v280 = vpop.trf.xlu0
        %v281 = vpop.trf.xlu0
        %v282 = vpop.trf.xlu0
        %vm283 = vcmask 293888
        %v285 = vsel %vm283, %v267, 0
        %v288 = vsel %vm283, %v268, 0
        %vm290 = vcmask 1043456
        %v292 = vsel %vm290, %v250, 0
        %294 = vmatprep.subr.mxu0 0.0
        %295 = vmatpush1.msra.mxu0 %v246
        %296 = vmatprep.subr.mxu0 0.0
        %297 = vmatpush1.msra.mxu0 %v247
        %298 = vmatprep.subr.mxu0 0.0
        %299 = vmatpush1.msra.mxu0 %v248
        %300 = vmatprep.subr.mxu0 0.0
        %301 = vmatpush1.msra.mxu0 %v249
        %302 = vmatprep.subr.mxu0 0.0
        %303 = vmatpush1.msra.mxu0 %v292
        %304 = vmatprep.subr.mxu0 0.0
        %305 = vmatpush1.msra.mxu0 0.0
        %306 = vmatprep.subr.mxu0 0.0
        %307 = vmatpush1.msra.mxu0 0.0
        %308 = vmatprep.subr.mxu0 0.0
        %309 = vmatpush1.msra.mxu0 0.0
        %310 = vmatprep.subr.mxu0 0.0
        %311 = vmatpush1.msra.mxu0 0.0
        %312 = vmatprep.subr.mxu0 0.0
        %313 = vmatpush1.msra.mxu0 0.0
        %314 = vmatprep.subr.mxu0 0.0
        %315 = vmatpush1.msra.mxu0 0.0
        %316 = vmatprep.subr.mxu0 0.0
        %317 = vmatpush1.msra.mxu0 0.0
        %318 = vmatprep.subr.mxu0 0.0
        %319 = vmatpush1.msra.mxu0 0.0
        %320 = vmatprep.subr.mxu0 0.0
        %321 = vmatpush1.msra.mxu0 0.0
        %322 = vmatprep.subr.mxu0 0.0
        %323 = vmatpush1.msra.mxu0 0.0
        %324 = vmatprep.subr.mxu0 0.0
        %325 = vmatpush1.msra.mxu0 0.0
        %326 = vmatprep.subr.mxu0 0.0
        %327 = vmatpush1.msra.mxu0 0.0
        %328 = vmatprep.subr.mxu0 0.0
        %329 = vmatpush1.msra.mxu0 0.0
        %330 = vmatprep.subr.mxu0 0.0
        %331 = vmatpush1.msra.mxu0 0.0
        %332 = vmatprep.subr.mxu0 0.0
        %333 = vmatpush1.msra.mxu0 0.0
        %334 = vmatprep.subr.mxu0 0.0
        %335 = vmatpush1.msra.mxu0 0.0
        %336 = vmatprep.subr.mxu0 0.0
        %337 = vmatpush1.msra.mxu0 0.0
        %338 = vmatprep.subr.mxu0 0.0
        %339 = vmatpush1.msra.mxu0 0.0
        %340 = vmatprep.subr.mxu0 0.0
        %341 = vmatpush1.msra.mxu0 0.0
        %342 = vmatprep.subr.mxu0 0.0
        %343 = vmatpush1.msra.mxu0 0.0
        %344 = vmatprep.subr.mxu0 0.0
        %345 = vmatpush1.msra.mxu0 0.0
        %346 = vmatprep.subr.mxu0 0.0
        %347 = vmatpush1.msra.mxu0 0.0
        %348 = vmatprep.subr.mxu0 0.0
        %349 = vmatpush1.msra.mxu0 0.0
        %350 = vmatprep.subr.mxu0 0.0
        %351 = vmatpush1.msra.mxu0 0.0
        %352 = vmatprep.subr.mxu0 0.0
        %353 = vmatpush1.msra.mxu0 0.0
        %354 = vmatprep.subr.mxu0 0.0
        %355 = vmatpush1.msra.mxu0 0.0
        %356 = vmatprep.subr.mxu0 0.0
        %357 = vmatpush1.msra.mxu0 0.0
        %358 = vmatprep.mubr.f32.mxu0 0.0
        %359 = vmatmul.mubr.f32.gmra.mrb[0].mxu0 %v285
        %v360 = vpop.f32.mrb[0].mxu0
        %v361 = vadd.f32 0.0, %v360
        %v362 = vpop.f32.mrb[0].mxu0
        %363 = vmatprep.mubr.f32.mxu0 0.0
        %364 = vmatmul.mubr.f32.gmra.mrb[0].mxu0 %v288
        %v365 = vpop.f32.mrb[0].mxu0
        %v366 = vadd.f32 0.0, %v365
        %v367 = vpop.f32.mrb[0].mxu0
        %368 = vdwg.mxu0
        %v369 = vtanh.pop %v361
        %v370 = vtanh.pop %v366
        %v371 = vadd.f32 %v369, %v244
        %v372 = vadd.f32 %v370, %v245
        %vm373 = vcmask 130048
        %v375 = vsel %vm373, %v236, 0
        %v378 = vsel %vm373, %v237, 0
        %v381 = vsel %vm373, %v238, 0
        %v384 = vsel %vm373, %v239, 0
        %v387 = vsel %vm373, %v240, 0
        %v390 = vsel %vm373, %v241, 0
        %v393 = vsel %vm373, %v242, 0
        %v396 = vsel %vm373, %v243, 0
        %398 = vmatprep.subr.mxu0 0.0
        %399 = vmatpush1.msra.mxu0 %v371
        %400 = vmatprep.subr.mxu0 0.0
        %401 = vmatpush1.msra.mxu0 %v372
        %402 = vmatprep.subr.mxu0 0.0
        %403 = vmatpush1.msra.mxu0 0.0
        %404 = vmatprep.subr.mxu0 0.0
        %405 = vmatpush1.msra.mxu0 0.0
        %406 = vmatprep.subr.mxu0 0.0
        %407 = vmatpush1.msra.mxu0 0.0
        %408 = vmatprep.subr.mxu0 0.0
        %409 = vmatpush1.msra.mxu0 0.0
        %410 = vmatprep.subr.mxu0 0.0
        %411 = vmatpush1.msra.mxu0 0.0
        %412 = vmatprep.subr.mxu0 0.0
        %413 = vmatpush1.msra.mxu0 0.0
        %414 = vmatprep.subr.mxu0 0.0
        %415 = vmatpush1.msra.mxu0 0.0
        %416 = vmatprep.subr.mxu0 0.0
        %417 = vmatpush1.msra.mxu0 0.0
        %418 = vmatprep.subr.mxu0 0.0
        %419 = vmatpush1.msra.mxu0 0.0
        %420 = vmatprep.subr.mxu0 0.0
        %421 = vmatpush1.msra.mxu0 0.0
        %422 = vmatprep.subr.mxu0 0.0
        %423 = vmatpush1.msra.mxu0 0.0
        %424 = vmatprep.subr.mxu0 0.0
        %425 = vmatpush1.msra.mxu0 0.0
        %426 = vmatprep.subr.mxu0 0.0
        %427 = vmatpush1.msra.mxu0 0.0
        %428 = vmatprep.subr.mxu0 0.0
        %429 = vmatpush1.msra.mxu0 0.0
        %430 = vmatprep.subr.mxu0 0.0
        %431 = vmatpush1.msra.mxu0 0.0
        %432 = vmatprep.subr.mxu0 0.0
        %433 = vmatpush1.msra.mxu0 0.0
        %434 = vmatprep.subr.mxu0 0.0
        %435 = vmatpush1.msra.mxu0 0.0
        %436 = vmatprep.subr.mxu0 0.0
        %437 = vmatpush1.msra.mxu0 0.0
        %438 = vmatprep.subr.mxu0 0.0
        %439 = vmatpush1.msra.mxu0 0.0
        %440 = vmatprep.subr.mxu0 0.0
        %441 = vmatpush1.msra.mxu0 0.0
        %442 = vmatprep.subr.mxu0 0.0
        %443 = vmatpush1.msra.mxu0 0.0
        %444 = vmatprep.subr.mxu0 0.0
        %445 = vmatpush1.msra.mxu0 0.0
        %446 = vmatprep.subr.mxu0 0.0
        %447 = vmatpush1.msra.mxu0 0.0
        %448 = vmatprep.subr.mxu0 0.0
        %449 = vmatpush1.msra.mxu0 0.0
        %450 = vmatprep.subr.mxu0 0.0
        %451 = vmatpush1.msra.mxu0 0.0
        %452 = vmatprep.subr.mxu0 0.0
        %453 = vmatpush1.msra.mxu0 0.0
        %454 = vmatprep.subr.mxu0 0.0
        %455 = vmatpush1.msra.mxu0 0.0
        %456 = vmatprep.subr.mxu0 0.0
        %457 = vmatpush1.msra.mxu0 0.0
        %458 = vmatprep.subr.mxu0 0.0
        %459 = vmatpush1.msra.mxu0 0.0
        %460 = vmatprep.subr.mxu0 0.0
        %461 = vmatpush1.msra.mxu0 0.0
        %462 = vmatprep.mubr.f32.mxu0 0.0
        %463 = vmatmul.mubr.f32.gmra.mrb[0].mxu0 %v375
        %v464 = vpop.f32.mrb[0].mxu0
        %v465 = vadd.f32 0.0, %v464
        %v466 = vpop.f32.mrb[0].mxu0
        %467 = vmatprep.mubr.f32.mxu0 0.0
        %468 = vmatmul.mubr.f32.gmra.mrb[0].mxu0 %v378
        %v469 = vpop.f32.mrb[0].mxu0
        %v470 = vadd.f32 0.0, %v469
        %v471 = vpop.f32.mrb[0].mxu0
        %472 = vmatprep.mubr.f32.mxu0 0.0
        %473 = vmatmul.mubr.f32.gmra.mrb[0].mxu0 %v381
        %v474 = vpop.f32.mrb[0].mxu0
        %v475 = vadd.f32 0.0, %v474
        %v476 = vpop.f32.mrb[0].mxu0
        %477 = vmatprep.mubr.f32.mxu0 0.0
        %478 = vmatmul.mubr.f32.gmra.mrb[0].mxu0 %v384
        %v479 = vpop.f32.mrb[0].mxu0
        %v480 = vadd.f32 0.0, %v479
        %v481 = vpop.f32.mrb[0].mxu0
        %482 = vmatprep.mubr.f32.mxu0 0.0
        %483 = vmatmul.mubr.f32.gmra.mrb[0].mxu0 %v387
        %v484 = vpop.f32.mrb[0].mxu0
        %v485 = vadd.f32 0.0, %v484
        %v486 = vpop.f32.mrb[0].mxu0
        %487 = vmatprep.mubr.f32.mxu0 0.0
        %488 = vmatmul.mubr.f32.gmra.mrb[0].mxu0 %v390
        %v489 = vpop.f32.mrb[0].mxu0
        %v490 = vadd.f32 0.0, %v489
        %v491 = vpop.f32.mrb[0].mxu0
        %492 = vmatprep.mubr.f32.mxu0 0.0
        %493 = vmatmul.mubr.f32.gmra.mrb[0].mxu0 %v393
        %v494 = vpop.f32.mrb[0].mxu0
        %v495 = vadd.f32 0.0, %v494
        %v496 = vpop.f32.mrb[0].mxu0
        %497 = vmatprep.mubr.f32.mxu0 0.0
        %498 = vmatmul.mubr.f32.gmra.mrb[0].mxu0 %v396
        %v499 = vpop.f32.mrb[0].mxu0
        %v500 = vadd.f32 0.0, %v499
        %v501 = vpop.f32.mrb[0].mxu0
        %502 = vdwg.mxu0
        %v503 = vld [vmem:[%s235] sm:$0xff]
        %v504 = vld [vmem:[%s235 + $0x8] sm:$0xff]
        %v505 = vld [vmem:[%s235 + $0x10] sm:$0xff]
        %v506 = vld [vmem:[%s235 + $0x18] sm:$0xff]
        %v507 = vld [vmem:[%s235 + $0x20] sm:$0xff]
        %v508 = vld [vmem:[%s235 + $0x28] sm:$0xff]
        %v509 = vld [vmem:[%s235 + $0x30] sm:$0xff]
        %v510 = vld [vmem:[%s235 + $0x38] sm:$0xff]
        %v511 = vld [vmem:[%s235 + $0x40] sm:$0xff]
        %v512 = vld [vmem:[%s235 + $0x48] sm:$0xff]
        %v513 = vld [vmem:[%s235 + $0x50] sm:$0xff]
        %v514 = vld [vmem:[%s235 + $0x58] sm:$0xff]
        %v515 = vld [vmem:[%s235 + $0x60] sm:$0xff]
        %v516 = vld [vmem:[%s235 + $0x68] sm:$0xff]
        %v517 = vld [vmem:[%s235 + $0x70] sm:$0xff]
        %v518 = vld [vmem:[%s235 + $0x78] sm:$0xff]
        %v520 = vsel %vm373, %v465, 0
        %v523 = vsel %vm373, %v470, 0
        %v526 = vsel %vm373, %v475, 0
        %v529 = vsel %vm373, %v480, 0
        %v532 = vsel %vm373, %v485, 0
        %v535 = vsel %vm373, %v490, 0
        %v538 = vsel %vm373, %v495, 0
        %v541 = vsel %vm373, %v500, 0
        %v544 = vsel %vm373, %v503, 0
        %v547 = vsel %vm373, %v504, 0
        %v550 = vsel %vm373, %v505, 0
        %v553 = vsel %vm373, %v506, 0
        %v556 = vsel %vm373, %v507, 0
        %v559 = vsel %vm373, %v508, 0
        %v562 = vsel %vm373, %v509, 0
        %v565 = vsel %vm373, %v510, 0
        %v568 = vsel %vm373, %v511, 0
        %v571 = vsel %vm373, %v512, 0
        %v574 = vsel %vm373, %v513, 0
        %v577 = vsel %vm373, %v514, 0
        %v580 = vsel %vm373, %v515, 0
        %v583 = vsel %vm373, %v516, 0
        %v586 = vsel %vm373, %v517, 0
        %v589 = vsel %vm373, %v518, 0
        %591 = vmatprep.subr.mxu0 0.0
        %592 = vmatpush1.xpose.msra.mxu0 %v544
        %593 = vmatprep.subr.mxu0 0.0
        %594 = vmatpush1.xpose.msra.mxu0 %v547
        %595 = vmatprep.subr.mxu0 0.0
        %596 = vmatpush1.xpose.msra.mxu0 %v550
        %597 = vmatprep.subr.mxu0 0.0
        %598 = vmatpush1.xpose.msra.mxu0 %v553
        %599 = vmatprep.subr.mxu0 0.0
        %600 = vmatpush1.xpose.msra.mxu0 %v556
        %601 = vmatprep.subr.mxu0 0.0
        %602 = vmatpush1.xpose.msra.mxu0 %v559
        %603 = vmatprep.subr.mxu0 0.0
        %604 = vmatpush1.xpose.msra.mxu0 %v562
        %605 = vmatprep.subr.mxu0 0.0
        %606 = vmatpush1.xpose.msra.mxu0 %v565
        %607 = vmatprep.subr.mxu0 0.0
        %608 = vmatpush1.xpose.msra.mxu0 %v568
        %609 = vmatprep.subr.mxu0 0.0
        %610 = vmatpush1.xpose.msra.mxu0 %v571
        %611 = vmatprep.subr.mxu0 0.0
        %612 = vmatpush1.xpose.msra.mxu0 %v574
        %613 = vmatprep.subr.mxu0 0.0
        %614 = vmatpush1.xpose.msra.mxu0 %v577
        %615 = vmatprep.subr.mxu0 0.0
        %616 = vmatpush1.xpose.msra.mxu0 %v580
        %617 = vmatprep.subr.mxu0 0.0
        %618 = vmatpush1.xpose.msra.mxu0 %v583
        %619 = vmatprep.subr.mxu0 0.0
        %620 = vmatpush1.xpose.msra.mxu0 %v586
        %621 = vmatprep.subr.mxu0 0.0
        %622 = vmatpush1.xpose.msra.mxu0 %v589
        %623 = vmatprep.subr.mxu0 0.0
        %624 = vmatpush1.xpose.msra.mxu0 0.0
        %625 = vmatprep.subr.mxu0 0.0
        %626 = vmatpush1.xpose.msra.mxu0 0.0
        %627 = vmatprep.subr.mxu0 0.0
        %628 = vmatpush1.xpose.msra.mxu0 0.0
        %629 = vmatprep.subr.mxu0 0.0
        %630 = vmatpush1.xpose.msra.mxu0 0.0
        %631 = vmatprep.subr.mxu0 0.0
        %632 = vmatpush1.xpose.msra.mxu0 0.0
        %633 = vmatprep.subr.mxu0 0.0
        %634 = vmatpush1.xpose.msra.mxu0 0.0
        %635 = vmatprep.subr.mxu0 0.0
        %636 = vmatpush1.xpose.msra.mxu0 0.0
        %637 = vmatprep.subr.mxu0 0.0
        %638 = vmatpush1.xpose.msra.mxu0 0.0
        %639 = vmatprep.subr.mxu0 0.0
        %640 = vmatpush1.xpose.msra.mxu0 0.0
        %641 = vmatprep.subr.mxu0 0.0
        %642 = vmatpush1.xpose.msra.mxu0 0.0
        %643 = vmatprep.subr.mxu0 0.0
        %644 = vmatpush1.xpose.msra.mxu0 0.0
        %645 = vmatprep.subr.mxu0 0.0
        %646 = vmatpush1.xpose.msra.mxu0 0.0
        %647 = vmatprep.subr.mxu0 0.0
        %648 = vmatpush1.xpose.msra.mxu0 0.0
        %649 = vmatprep.subr.mxu0 0.0
        %650 = vmatpush1.xpose.msra.mxu0 0.0
        %651 = vmatprep.subr.mxu0 0.0
        %652 = vmatpush1.xpose.msra.mxu0 0.0
        %653 = vmatprep.subr.mxu0 0.0
        %654 = vmatpush1.xpose.msra.mxu0 0.0
        %655 = vmatprep.mubr.f32.mxu0 0.0
        %656 = vmatmul.mubr.f32.gmra.mrb[0].mxu0 %v520
        %v657 = vpop.f32.mrb[0].mxu0
        %v658 = vadd.f32 0.0, %v657
        %v659 = vpop.f32.mrb[0].mxu0
        %660 = vmatprep.mubr.f32.mxu0 0.0
        %661 = vmatmul.mubr.f32.gmra.mrb[0].mxu0 %v523
        %v662 = vpop.f32.mrb[0].mxu0
        %v663 = vadd.f32 0.0, %v662
        %v664 = vpop.f32.mrb[0].mxu0
        %665 = vmatprep.mubr.f32.mxu0 0.0
        %666 = vmatmul.mubr.f32.gmra.mrb[0].mxu0 %v526
        %v667 = vpop.f32.mrb[0].mxu0
        %v668 = vadd.f32 0.0, %v667
        %v669 = vpop.f32.mrb[0].mxu0
        %670 = vmatprep.mubr.f32.mxu0 0.0
        %671 = vmatmul.mubr.f32.gmra.mrb[0].mxu0 %v529
        %v672 = vpop.f32.mrb[0].mxu0
        %v673 = vadd.f32 0.0, %v672
        %v674 = vpop.f32.mrb[0].mxu0
        %675 = vmatprep.mubr.f32.mxu0 0.0
        %676 = vmatmul.mubr.f32.gmra.mrb[0].mxu0 %v532
        %v677 = vpop.f32.mrb[0].mxu0
        %v678 = vadd.f32 0.0, %v677
        %v679 = vpop.f32.mrb[0].mxu0
        %680 = vmatprep.mubr.f32.mxu0 0.0
        %681 = vmatmul.mubr.f32.gmra.mrb[0].mxu0 %v535
        %v682 = vpop.f32.mrb[0].mxu0
        %v683 = vadd.f32 0.0, %v682
        %v684 = vpop.f32.mrb[0].mxu0
        %685 = vmatprep.mubr.f32.mxu0 0.0
        %686 = vmatmul.mubr.f32.gmra.mrb[0].mxu0 %v538
        %v687 = vpop.f32.mrb[0].mxu0
        %v688 = vadd.f32 0.0, %v687
        %v689 = vpop.f32.mrb[0].mxu0
        %690 = vmatprep.mubr.f32.mxu0 0.0
        %691 = vmatmul.mubr.f32.gmra.mrb[0].mxu0 %v541
        %v692 = vpop.f32.mrb[0].mxu0
        %v693 = vadd.f32 0.0, %v692
        %v694 = vpop.f32.mrb[0].mxu0
        %695 = vdwg.mxu0
        %v696 = vtanh.pop %v658
        %v697 = vtanh.pop %v663
        %v698 = vtanh.pop %v668
        %v699 = vtanh.pop %v673
        %v700 = vtanh.pop %v678
        %v701 = vtanh.pop %v683
        %v702 = vtanh.pop %v688
        %v703 = vtanh.pop %v693
        %v704 = vadd.f32 %v696, 0.0
        %v705 = vadd.f32 %v697, 0.0
        %v706 = vadd.f32 %v698, 0.0
        %v707 = vadd.f32 %v699, 0.0
        %v708 = vadd.f32 %v700, 0.0
        %v709 = vadd.f32 %v701, 0.0
        %v710 = vadd.f32 %v702, 0.0
        %v711 = vadd.f32 %v703, 0.0
        %s712 = scalar_lea.vmem %s235, 128
        %v713 = vld [vmem:[%s712] sm:$0xff]
        %v714 = vld [vmem:[%s712 + $0x8] sm:$0xff]
        %v715 = vld [vmem:[%s712 + $0x10] sm:$0xff]
        %v716 = vld [vmem:[%s712 + $0x18] sm:$0xff]
        %v717 = vld [vmem:[%s712 + $0x20] sm:$0xff]
        %v718 = vld [vmem:[%s712 + $0x28] sm:$0xff]
        %v719 = vld [vmem:[%s712 + $0x30] sm:$0xff]
        %v720 = vld [vmem:[%s712 + $0x38] sm:$0xff]
        %v721 = vld [vmem:[%s712 + $0x40] sm:$0xff]
        %v722 = vld [vmem:[%s712 + $0x48] sm:$0xff]
        %v723 = vld [vmem:[%s712 + $0x50] sm:$0xff]
        %v724 = vld [vmem:[%s712 + $0x58] sm:$0xff]
        %v725 = vld [vmem:[%s712 + $0x60] sm:$0xff]
        %v726 = vld [vmem:[%s712 + $0x68] sm:$0xff]
        %v727 = vld [vmem:[%s712 + $0x70] sm:$0xff]
        %v728 = vld [vmem:[%s712 + $0x78] sm:$0xff]
        %v730 = vsel %vm373, %v713, 0
        %v733 = vsel %vm373, %v714, 0
        %v736 = vsel %vm373, %v715, 0
        %v739 = vsel %vm373, %v716, 0
        %v742 = vsel %vm373, %v717, 0
        %v745 = vsel %vm373, %v718, 0
        %v748 = vsel %vm373, %v719, 0
        %v751 = vsel %vm373, %v720, 0
        %v754 = vsel %vm373, %v721, 0
        %v757 = vsel %vm373, %v722, 0
        %v760 = vsel %vm373, %v723, 0
        %v763 = vsel %vm373, %v724, 0
        %v766 = vsel %vm373, %v725, 0
        %v769 = vsel %vm373, %v726, 0
        %v772 = vsel %vm373, %v727, 0
        %v775 = vsel %vm373, %v728, 0
        %777 = vmatprep.subr.mxu0 0.0
        %778 = vmatpush1.xpose.msra.mxu0 %v730
        %779 = vmatprep.subr.mxu0 0.0
        %780 = vmatpush1.xpose.msra.mxu0 %v733
        %781 = vmatprep.subr.mxu0 0.0
        %782 = vmatpush1.xpose.msra.mxu0 %v736
        %783 = vmatprep.subr.mxu0 0.0
        %784 = vmatpush1.xpose.msra.mxu0 %v739
        %785 = vmatprep.subr.mxu0 0.0
        %786 = vmatpush1.xpose.msra.mxu0 %v742
        %787 = vmatprep.subr.mxu0 0.0
        %788 = vmatpush1.xpose.msra.mxu0 %v745
        %789 = vmatprep.subr.mxu0 0.0
        %790 = vmatpush1.xpose.msra.mxu0 %v748
        %791 = vmatprep.subr.mxu0 0.0
        %792 = vmatpush1.xpose.msra.mxu0 %v751
        %793 = vmatprep.subr.mxu0 0.0
        %794 = vmatpush1.xpose.msra.mxu0 %v754
        %795 = vmatprep.subr.mxu0 0.0
        %796 = vmatpush1.xpose.msra.mxu0 %v757
        %797 = vmatprep.subr.mxu0 0.0
        %798 = vmatpush1.xpose.msra.mxu0 %v760
        %799 = vmatprep.subr.mxu0 0.0
        %800 = vmatpush1.xpose.msra.mxu0 %v763
        %801 = vmatprep.subr.mxu0 0.0
        %802 = vmatpush1.xpose.msra.mxu0 %v766
        %803 = vmatprep.subr.mxu0 0.0
        %804 = vmatpush1.xpose.msra.mxu0 %v769
        %805 = vmatprep.subr.mxu0 0.0
        %806 = vmatpush1.xpose.msra.mxu0 %v772
        %807 = vmatprep.subr.mxu0 0.0
        %808 = vmatpush1.xpose.msra.mxu0 %v775
        %809 = vmatprep.subr.mxu0 0.0
        %810 = vmatpush1.xpose.msra.mxu0 0.0
        %811 = vmatprep.subr.mxu0 0.0
        %812 = vmatpush1.xpose.msra.mxu0 0.0
        %813 = vmatprep.subr.mxu0 0.0
        %814 = vmatpush1.xpose.msra.mxu0 0.0
        %815 = vmatprep.subr.mxu0 0.0
        %816 = vmatpush1.xpose.msra.mxu0 0.0
        %817 = vmatprep.subr.mxu0 0.0
        %818 = vmatpush1.xpose.msra.mxu0 0.0
        %819 = vmatprep.subr.mxu0 0.0
        %820 = vmatpush1.xpose.msra.mxu0 0.0
        %821 = vmatprep.subr.mxu0 0.0
        %822 = vmatpush1.xpose.msra.mxu0 0.0
        %823 = vmatprep.subr.mxu0 0.0
        %824 = vmatpush1.xpose.msra.mxu0 0.0
        %825 = vmatprep.subr.mxu0 0.0
        %826 = vmatpush1.xpose.msra.mxu0 0.0
        %827 = vmatprep.subr.mxu0 0.0
        %828 = vmatpush1.xpose.msra.mxu0 0.0
        %829 = vmatprep.subr.mxu0 0.0
        %830 = vmatpush1.xpose.msra.mxu0 0.0
        %831 = vmatprep.subr.mxu0 0.0
        %832 = vmatpush1.xpose.msra.mxu0 0.0
        %833 = vmatprep.subr.mxu0 0.0
        %834 = vmatpush1.xpose.msra.mxu0 0.0
        %835 = vmatprep.subr.mxu0 0.0
        %836 = vmatpush1.xpose.msra.mxu0 0.0
        %837 = vmatprep.subr.mxu0 0.0
        %838 = vmatpush1.xpose.msra.mxu0 0.0
        %839 = vmatprep.subr.mxu0 0.0
        %840 = vmatpush1.xpose.msra.mxu0 0.0
        %841 = vmatprep.mubr.f32.mxu0 0.0
        %842 = vmatmul.mubr.f32.gmra.mrb[0].mxu0 %v520
        %v843 = vpop.f32.mrb[0].mxu0
        %v844 = vadd.f32 0.0, %v843
        %v845 = vpop.f32.mrb[0].mxu0
        %846 = vmatprep.mubr.f32.mxu0 0.0
        %847 = vmatmul.mubr.f32.gmra.mrb[0].mxu0 %v523
        %v848 = vpop.f32.mrb[0].mxu0
        %v849 = vadd.f32 0.0, %v848
        %v850 = vpop.f32.mrb[0].mxu0
        %851 = vmatprep.mubr.f32.mxu0 0.0
        %852 = vmatmul.mubr.f32.gmra.mrb[0].mxu0 %v526
        %v853 = vpop.f32.mrb[0].mxu0
        %v854 = vadd.f32 0.0, %v853
        %v855 = vpop.f32.mrb[0].mxu0
        %856 = vmatprep.mubr.f32.mxu0 0.0
        %857 = vmatmul.mubr.f32.gmra.mrb[0].mxu0 %v529
        %v858 = vpop.f32.mrb[0].mxu0
        %v859 = vadd.f32 0.0, %v858
        %v860 = vpop.f32.mrb[0].mxu0
        %861 = vmatprep.mubr.f32.mxu0 0.0
        %862 = vmatmul.mubr.f32.gmra.mrb[0].mxu0 %v532
        %v863 = vpop.f32.mrb[0].mxu0
        %v864 = vadd.f32 0.0, %v863
        %v865 = vpop.f32.mrb[0].mxu0
        %866 = vmatprep.mubr.f32.mxu0 0.0
        %867 = vmatmul.mubr.f32.gmra.mrb[0].mxu0 %v535
        %v868 = vpop.f32.mrb[0].mxu0
        %v869 = vadd.f32 0.0, %v868
        %v870 = vpop.f32.mrb[0].mxu0
        %871 = vmatprep.mubr.f32.mxu0 0.0
        %872 = vmatmul.mubr.f32.gmra.mrb[0].mxu0 %v538
        %v873 = vpop.f32.mrb[0].mxu0
        %v874 = vadd.f32 0.0, %v873
        %v875 = vpop.f32.mrb[0].mxu0
        %876 = vmatprep.mubr.f32.mxu0 0.0
        %877 = vmatmul.mubr.f32.gmra.mrb[0].mxu0 %v541
        %v878 = vpop.f32.mrb[0].mxu0
        %v879 = vadd.f32 0.0, %v878
        %v880 = vpop.f32.mrb[0].mxu0
        %881 = vdwg.mxu0
        %v882 = vtanh.pop %v844
        %v883 = vtanh.pop %v849
        %v884 = vtanh.pop %v854
        %v885 = vtanh.pop %v859
        %v886 = vtanh.pop %v864
        %v887 = vtanh.pop %v869
        %v888 = vtanh.pop %v874
        %v889 = vtanh.pop %v879
        %v890 = vadd.f32 %v704, %v882
        %v891 = vadd.f32 %v705, %v883
        %v892 = vadd.f32 %v706, %v884
        %v893 = vadd.f32 %v707, %v885
        %v894 = vadd.f32 %v708, %v886
        %v895 = vadd.f32 %v709, %v887
        %v896 = vadd.f32 %v710, %v888
        %v897 = vadd.f32 %v711, %v889
        %s898 = scalar_lea.vmem %s235, 256
        %v899 = vld [vmem:[%s898] sm:$0xff]
        %v900 = vld [vmem:[%s898 + $0x8] sm:$0xff]
        %v901 = vld [vmem:[%s898 + $0x10] sm:$0xff]
        %v902 = vld [vmem:[%s898 + $0x18] sm:$0xff]
        %v903 = vld [vmem:[%s898 + $0x20] sm:$0xff]
        %v904 = vld [vmem:[%s898 + $0x28] sm:$0xff]
        %v905 = vld [vmem:[%s898 + $0x30] sm:$0xff]
        %v906 = vld [vmem:[%s898 + $0x38] sm:$0xff]
        %v907 = vld [vmem:[%s898 + $0x40] sm:$0xff]
        %v908 = vld [vmem:[%s898 + $0x48] sm:$0xff]
        %v909 = vld [vmem:[%s898 + $0x50] sm:$0xff]
        %v910 = vld [vmem:[%s898 + $0x58] sm:$0xff]
        %v911 = vld [vmem:[%s898 + $0x60] sm:$0xff]
        %v912 = vld [vmem:[%s898 + $0x68] sm:$0xff]
        %v913 = vld [vmem:[%s898 + $0x70] sm:$0xff]
        %v914 = vld [vmem:[%s898 + $0x78] sm:$0xff]
        %v916 = vsel %vm373, %v899, 0
        %v919 = vsel %vm373, %v900, 0
        %v922 = vsel %vm373, %v901, 0
        %v925 = vsel %vm373, %v902, 0
        %v928 = vsel %vm373, %v903, 0
        %v931 = vsel %vm373, %v904, 0
        %v934 = vsel %vm373, %v905, 0
        %v937 = vsel %vm373, %v906, 0
        %v940 = vsel %vm373, %v907, 0
        %v943 = vsel %vm373, %v908, 0
        %v946 = vsel %vm373, %v909, 0
        %v949 = vsel %vm373, %v910, 0
        %v952 = vsel %vm373, %v911, 0
        %v955 = vsel %vm373, %v912, 0
        %v958 = vsel %vm373, %v913, 0
        %v961 = vsel %vm373, %v914, 0
        %963 = vmatprep.subr.mxu0 0.0
        %964 = vmatpush1.xpose.msra.mxu0 %v916
        %965 = vmatprep.subr.mxu0 0.0
        %966 = vmatpush1.xpose.msra.mxu0 %v919
        %967 = vmatprep.subr.mxu0 0.0
        %968 = vmatpush1.xpose.msra.mxu0 %v922
        %969 = vmatprep.subr.mxu0 0.0
        %970 = vmatpush1.xpose.msra.mxu0 %v925
        %971 = vmatprep.subr.mxu0 0.0
        %972 = vmatpush1.xpose.msra.mxu0 %v928
        %973 = vmatprep.subr.mxu0 0.0
        %974 = vmatpush1.xpose.msra.mxu0 %v931
        %975 = vmatprep.subr.mxu0 0.0
        %976 = vmatpush1.xpose.msra.mxu0 %v934
        %977 = vmatprep.subr.mxu0 0.0
        %978 = vmatpush1.xpose.msra.mxu0 %v937
        %979 = vmatprep.subr.mxu0 0.0
        %980 = vmatpush1.xpose.msra.mxu0 %v940
        %981 = vmatprep.subr.mxu0 0.0
        %982 = vmatpush1.xpose.msra.mxu0 %v943
        %983 = vmatprep.subr.mxu0 0.0
        %984 = vmatpush1.xpose.msra.mxu0 %v946
        %985 = vmatprep.subr.mxu0 0.0
        %986 = vmatpush1.xpose.msra.mxu0 %v949
        %987 = vmatprep.subr.mxu0 0.0
        %988 = vmatpush1.xpose.msra.mxu0 %v952
        %989 = vmatprep.subr.mxu0 0.0
        %990 = vmatpush1.xpose.msra.mxu0 %v955
        %991 = vmatprep.subr.mxu0 0.0
        %992 = vmatpush1.xpose.msra.mxu0 %v958
        %993 = vmatprep.subr.mxu0 0.0
        %994 = vmatpush1.xpose.msra.mxu0 %v961
        %995 = vmatprep.subr.mxu0 0.0
        %996 = vmatpush1.xpose.msra.mxu0 0.0
        %997 = vmatprep.subr.mxu0 0.0
        %998 = vmatpush1.xpose.msra.mxu0 0.0
        %999 = vmatprep.subr.mxu0 0.0
        %1000 = vmatpush1.xpose.msra.mxu0 0.0
        %1001 = vmatprep.subr.mxu0 0.0
        %1002 = vmatpush1.xpose.msra.mxu0 0.0
        %1003 = vmatprep.subr.mxu0 0.0
        %1004 = vmatpush1.xpose.msra.mxu0 0.0
        %1005 = vmatprep.subr.mxu0 0.0
        %1006 = vmatpush1.xpose.msra.mxu0 0.0
        %1007 = vmatprep.subr.mxu0 0.0
        %1008 = vmatpush1.xpose.msra.mxu0 0.0
        %1009 = vmatprep.subr.mxu0 0.0
        %1010 = vmatpush1.xpose.msra.mxu0 0.0
        %1011 = vmatprep.subr.mxu0 0.0
        %1012 = vmatpush1.xpose.msra.mxu0 0.0
        %1013 = vmatprep.subr.mxu0 0.0
        %1014 = vmatpush1.xpose.msra.mxu0 0.0
        %1015 = vmatprep.subr.mxu0 0.0
        %1016 = vmatpush1.xpose.msra.mxu0 0.0
        %1017 = vmatprep.subr.mxu0 0.0
        %1018 = vmatpush1.xpose.msra.mxu0 0.0
        %1019 = vmatprep.subr.mxu0 0.0
        %1020 = vmatpush1.xpose.msra.mxu0 0.0
        %1021 = vmatprep.subr.mxu0 0.0
        %1022 = vmatpush1.xpose.msra.mxu0 0.0
        %1023 = vmatprep.subr.mxu0 0.0
        %1024 = vmatpush1.xpose.msra.mxu0 0.0
        %1025 = vmatprep.subr.mxu0 0.0
        %1026 = vmatpush1.xpose.msra.mxu0 0.0
        %1027 = vmatprep.mubr.f32.mxu0 0.0
        %1028 = vmatmul.mubr.f32.gmra.mrb[0].mxu0 %v520
        %v1029 = vpop.f32.mrb[0].mxu0
        %v1030 = vadd.f32 0.0, %v1029
        %v1031 = vpop.f32.mrb[0].mxu0
        %1032 = vmatprep.mubr.f32.mxu0 0.0
        %1033 = vmatmul.mubr.f32.gmra.mrb[0].mxu0 %v523
        %v1034 = vpop.f32.mrb[0].mxu0
        %v1035 = vadd.f32 0.0, %v1034
        %v1036 = vpop.f32.mrb[0].mxu0
        %1037 = vmatprep.mubr.f32.mxu0 0.0
        %1038 = vmatmul.mubr.f32.gmra.mrb[0].mxu0 %v526
        %v1039 = vpop.f32.mrb[0].mxu0
        %v1040 = vadd.f32 0.0, %v1039
        %v1041 = vpop.f32.mrb[0].mxu0
        %1042 = vmatprep.mubr.f32.mxu0 0.0
        %1043 = vmatmul.mubr.f32.gmra.mrb[0].mxu0 %v529
        %v1044 = vpop.f32.mrb[0].mxu0
        %v1045 = vadd.f32 0.0, %v1044
        %v1046 = vpop.f32.mrb[0].mxu0
        %1047 = vmatprep.mubr.f32.mxu0 0.0
        %1048 = vmatmul.mubr.f32.gmra.mrb[0].mxu0 %v532
        %v1049 = vpop.f32.mrb[0].mxu0
        %v1050 = vadd.f32 0.0, %v1049
        %v1051 = vpop.f32.mrb[0].mxu0
        %1052 = vmatprep.mubr.f32.mxu0 0.0
        %1053 = vmatmul.mubr.f32.gmra.mrb[0].mxu0 %v535
        %v1054 = vpop.f32.mrb[0].mxu0
        %v1055 = vadd.f32 0.0, %v1054
        %v1056 = vpop.f32.mrb[0].mxu0
        %1057 = vmatprep.mubr.f32.mxu0 0.0
        %1058 = vmatmul.mubr.f32.gmra.mrb[0].mxu0 %v538
        %v1059 = vpop.f32.mrb[0].mxu0
        %v1060 = vadd.f32 0.0, %v1059
        %v1061 = vpop.f32.mrb[0].mxu0
        %1062 = vmatprep.mubr.f32.mxu0 0.0
        %1063 = vmatmul.mubr.f32.gmra.mrb[0].mxu0 %v541
        %v1064 = vpop.f32.mrb[0].mxu0
        %v1065 = vadd.f32 0.0, %v1064
        %v1066 = vpop.f32.mrb[0].mxu0
        %1067 = vdwg.mxu0
        %v1068 = vtanh.pop %v1030
        %v1069 = vtanh.pop %v1035
        %v1070 = vtanh.pop %v1040
        %v1071 = vtanh.pop %v1045
        %v1072 = vtanh.pop %v1050
        %v1073 = vtanh.pop %v1055
        %v1074 = vtanh.pop %v1060
        %v1075 = vtanh.pop %v1065
        %v1076 = vadd.f32 %v890, %v1068
        %v1077 = vadd.f32 %v891, %v1069
        %v1078 = vadd.f32 %v892, %v1070
        %v1079 = vadd.f32 %v893, %v1071
        %v1080 = vadd.f32 %v894, %v1072
        %v1081 = vadd.f32 %v895, %v1073
        %v1082 = vadd.f32 %v896, %v1074
        %v1083 = vadd.f32 %v897, %v1075
        %s1084 = scalar_lea.vmem %s230, 40
        %v1085 = vld [vmem:[%s1084] sm:$0xff]
        %v1086 = vld [vmem:[%s1084 + $0x8] sm:$0xff]
        %v1087 = vld [vmem:[%s1084 + $0x10] sm:$0xff]
        %v1088 = vld [vmem:[%s1084 + $0x18] sm:$0xff]
        %v1089 = vld [vmem:[%s1084 + $0x20] sm:$0xf]
        %1090 = vxpose.xlu0.b32.start [1/16] %v1085, 128
        %1091 = vxpose.xlu0.b32.cont [2/16] %v1086, 128
        %1092 = vxpose.xlu0.b32.cont [3/16] %v1087, 128
        %1093 = vxpose.xlu0.b32.cont [4/16] %v1088, 128
        %1094 = vxpose.xlu0.b32.cont [5/16] %v1089, 128
        %1095 = vxpose.xlu0.b32.cont [6/16] 0.0, 128
        %1096 = vxpose.xlu0.b32.cont [7/16] 0.0, 128
        %1097 = vxpose.xlu0.b32.cont [8/16] 0.0, 128
        %1098 = vxpose.xlu0.b32.cont [9/16] 0.0, 128
        %1099 = vxpose.xlu0.b32.cont [10/16] 0.0, 128
        %1100 = vxpose.xlu0.b32.cont [11/16] 0.0, 128
        %1101 = vxpose.xlu0.b32.cont [12/16] 0.0, 128
        %1102 = vxpose.xlu0.b32.cont [13/16] 0.0, 128
        %1103 = vxpose.xlu0.b32.cont [14/16] 0.0, 128
        %1104 = vxpose.xlu0.b32.cont [15/16] 0.0, 128
        %1105 = vxpose.xlu0.b32.end [16/16] 0.0, 128
        %v1106 = vpop.trf.xlu0
        %v1107 = vpop.trf.xlu0
        %v1108 = vpop.trf.xlu0
        %v1109 = vpop.trf.xlu0
        %v1110 = vpop.trf.xlu0
        %v1111 = vpop.trf.xlu0
        %v1112 = vpop.trf.xlu0
        %v1113 = vpop.trf.xlu0
        %v1114 = vpop.trf.xlu0
        %v1115 = vpop.trf.xlu0
        %v1116 = vpop.trf.xlu0
        %v1117 = vpop.trf.xlu0
        %v1118 = vpop.trf.xlu0
        %v1119 = vpop.trf.xlu0
        %v1120 = vpop.trf.xlu0
        %v1121 = vpop.trf.xlu0
        %v1123 = vsel %vm283, %v1106, 0
        %v1126 = vsel %vm283, %v1107, 0
        %v1129 = vsel %vm290, %v1089, 0
        %1131 = vmatprep.subr.mxu0 0.0
        %1132 = vmatpush1.msra.mxu0 %v1085
        %1133 = vmatprep.subr.mxu0 0.0
        %1134 = vmatpush1.msra.mxu0 %v1086
        %1135 = vmatprep.subr.mxu0 0.0
        %1136 = vmatpush1.msra.mxu0 %v1087
        %1137 = vmatprep.subr.mxu0 0.0
        %1138 = vmatpush1.msra.mxu0 %v1088
        %1139 = vmatprep.subr.mxu0 0.0
        %1140 = vmatpush1.msra.mxu0 %v1129
        %1141 = vmatprep.subr.mxu0 0.0
        %1142 = vmatpush1.msra.mxu0 0.0
        %1143 = vmatprep.subr.mxu0 0.0
        %1144 = vmatpush1.msra.mxu0 0.0
        %1145 = vmatprep.subr.mxu0 0.0
        %1146 = vmatpush1.msra.mxu0 0.0
        %1147 = vmatprep.subr.mxu0 0.0
        %1148 = vmatpush1.msra.mxu0 0.0
        %1149 = vmatprep.subr.mxu0 0.0
        %1150 = vmatpush1.msra.mxu0 0.0
        %1151 = vmatprep.subr.mxu0 0.0
        %1152 = vmatpush1.msra.mxu0 0.0
        %1153 = vmatprep.subr.mxu0 0.0
        %1154 = vmatpush1.msra.mxu0 0.0
        %1155 = vmatprep.subr.mxu0 0.0
        %1156 = vmatpush1.msra.mxu0 0.0
        %1157 = vmatprep.subr.mxu0 0.0
        %1158 = vmatpush1.msra.mxu0 0.0
        %1159 = vmatprep.subr.mxu0 0.0
        %1160 = vmatpush1.msra.mxu0 0.0
        %1161 = vmatprep.subr.mxu0 0.0
        %1162 = vmatpush1.msra.mxu0 0.0
        %1163 = vmatprep.subr.mxu0 0.0
        %1164 = vmatpush1.msra.mxu0 0.0
        %1165 = vmatprep.subr.mxu0 0.0
        %1166 = vmatpush1.msra.mxu0 0.0
        %1167 = vmatprep.subr.mxu0 0.0
        %1168 = vmatpush1.msra.mxu0 0.0
        %1169 = vmatprep.subr.mxu0 0.0
        %1170 = vmatpush1.msra.mxu0 0.0
        %1171 = vmatprep.subr.mxu0 0.0
        %1172 = vmatpush1.msra.mxu0 0.0
        %1173 = vmatprep.subr.mxu0 0.0
        %1174 = vmatpush1.msra.mxu0 0.0
        %1175 = vmatprep.subr.mxu0 0.0
        %1176 = vmatpush1.msra.mxu0 0.0
        %1177 = vmatprep.subr.mxu0 0.0
        %1178 = vmatpush1.msra.mxu0 0.0
        %1179 = vmatprep.subr.mxu0 0.0
        %1180 = vmatpush1.msra.mxu0 0.0
        %1181 = vmatprep.subr.mxu0 0.0
        %1182 = vmatpush1.msra.mxu0 0.0
        %1183 = vmatprep.subr.mxu0 0.0
        %1184 = vmatpush1.msra.mxu0 0.0
        %1185 = vmatprep.subr.mxu0 0.0
        %1186 = vmatpush1.msra.mxu0 0.0
        %1187 = vmatprep.subr.mxu0 0.0
        %1188 = vmatpush1.msra.mxu0 0.0
        %1189 = vmatprep.subr.mxu0 0.0
        %1190 = vmatpush1.msra.mxu0 0.0
        %1191 = vmatprep.subr.mxu0 0.0
        %1192 = vmatpush1.msra.mxu0 0.0
        %1193 = vmatprep.subr.mxu0 0.0
        %1194 = vmatpush1.msra.mxu0 0.0
        %1195 = vmatprep.mubr.f32.mxu0 0.0
        %1196 = vmatmul.mubr.f32.gmra.mrb[0].mxu0 %v1123
        %v1197 = vpop.f32.mrb[0].mxu0
        %v1198 = vadd.f32 0.0, %v1197
        %v1199 = vpop.f32.mrb[0].mxu0
        %1200 = vmatprep.mubr.f32.mxu0 0.0
        %1201 = vmatmul.mubr.f32.gmra.mrb[0].mxu0 %v1126
        %v1202 = vpop.f32.mrb[0].mxu0
        %v1203 = vadd.f32 0.0, %v1202
        %v1204 = vpop.f32.mrb[0].mxu0
        %1205 = vdwg.mxu0
        %v1206 = vtanh.pop %v1198
        %v1207 = vtanh.pop %v1203
        %v1208 = vadd.f32 %v1206, %v244
        %v1209 = vadd.f32 %v1207, %v245
        %1210 = vmatprep.subr.mxu0 0.0
        %1211 = vmatpush1.msra.mxu0 %v1208
        %1212 = vmatprep.subr.mxu0 0.0
        %1213 = vmatpush1.msra.mxu0 %v1209
        %1214 = vmatprep.subr.mxu0 0.0
        %1215 = vmatpush1.msra.mxu0 0.0
        %1216 = vmatprep.subr.mxu0 0.0
        %1217 = vmatpush1.msra.mxu0 0.0
        %1218 = vmatprep.subr.mxu0 0.0
        %1219 = vmatpush1.msra.mxu0 0.0
        %1220 = vmatprep.subr.mxu0 0.0
        %1221 = vmatpush1.msra.mxu0 0.0
        %1222 = vmatprep.subr.mxu0 0.0
        %1223 = vmatpush1.msra.mxu0 0.0
        %1224 = vmatprep.subr.mxu0 0.0
        %1225 = vmatpush1.msra.mxu0 0.0
        %1226 = vmatprep.subr.mxu0 0.0
        %1227 = vmatpush1.msra.mxu0 0.0
        %1228 = vmatprep.subr.mxu0 0.0
        %1229 = vmatpush1.msra.mxu0 0.0
        %1230 = vmatprep.subr.mxu0 0.0
        %1231 = vmatpush1.msra.mxu0 0.0
        %1232 = vmatprep.subr.mxu0 0.0
        %1233 = vmatpush1.msra.mxu0 0.0
        %1234 = vmatprep.subr.mxu0 0.0
        %1235 = vmatpush1.msra.mxu0 0.0
        %1236 = vmatprep.subr.mxu0 0.0
        %1237 = vmatpush1.msra.mxu0 0.0
        %1238 = vmatprep.subr.mxu0 0.0
        %1239 = vmatpush1.msra.mxu0 0.0
        %1240 = vmatprep.subr.mxu0 0.0
        %1241 = vmatpush1.msra.mxu0 0.0
        %1242 = vmatprep.subr.mxu0 0.0
        %1243 = vmatpush1.msra.mxu0 0.0
        %1244 = vmatprep.subr.mxu0 0.0
        %1245 = vmatpush1.msra.mxu0 0.0
        %1246 = vmatprep.subr.mxu0 0.0
        %1247 = vmatpush1.msra.mxu0 0.0
        %1248 = vmatprep.subr.mxu0 0.0
        %1249 = vmatpush1.msra.mxu0 0.0
        %1250 = vmatprep.subr.mxu0 0.0
        %1251 = vmatpush1.msra.mxu0 0.0
        %1252 = vmatprep.subr.mxu0 0.0
        %1253 = vmatpush1.msra.mxu0 0.0
        %1254 = vmatprep.subr.mxu0 0.0
        %1255 = vmatpush1.msra.mxu0 0.0
        %1256 = vmatprep.subr.mxu0 0.0
        %1257 = vmatpush1.msra.mxu0 0.0
        %1258 = vmatprep.subr.mxu0 0.0
        %1259 = vmatpush1.msra.mxu0 0.0
        %1260 = vmatprep.subr.mxu0 0.0
        %1261 = vmatpush1.msra.mxu0 0.0
        %1262 = vmatprep.subr.mxu0 0.0
        %1263 = vmatpush1.msra.mxu0 0.0
        %1264 = vmatprep.subr.mxu0 0.0
        %1265 = vmatpush1.msra.mxu0 0.0
        %1266 = vmatprep.subr.mxu0 0.0
        %1267 = vmatpush1.msra.mxu0 0.0
        %1268 = vmatprep.subr.mxu0 0.0
        %1269 = vmatpush1.msra.mxu0 0.0
        %1270 = vmatprep.subr.mxu0 0.0
        %1271 = vmatpush1.msra.mxu0 0.0
        %1272 = vmatprep.subr.mxu0 0.0
        %1273 = vmatpush1.msra.mxu0 0.0
        %1274 = vmatprep.mubr.f32.mxu0 0.0
        %1275 = vmatmul.mubr.f32.gmra.mrb[0].mxu0 %v375
        %v1276 = vpop.f32.mrb[0].mxu0
        %v1277 = vadd.f32 0.0, %v1276
        %v1278 = vpop.f32.mrb[0].mxu0
        %1279 = vmatprep.mubr.f32.mxu0 0.0
        %1280 = vmatmul.mubr.f32.gmra.mrb[0].mxu0 %v378
        %v1281 = vpop.f32.mrb[0].mxu0
        %v1282 = vadd.f32 0.0, %v1281
        %v1283 = vpop.f32.mrb[0].mxu0
        %1284 = vmatprep.mubr.f32.mxu0 0.0
        %1285 = vmatmul.mubr.f32.gmra.mrb[0].mxu0 %v381
        %v1286 = vpop.f32.mrb[0].mxu0
        %v1287 = vadd.f32 0.0, %v1286
        %v1288 = vpop.f32.mrb[0].mxu0
        %1289 = vmatprep.mubr.f32.mxu0 0.0
        %1290 = vmatmul.mubr.f32.gmra.mrb[0].mxu0 %v384
        %v1291 = vpop.f32.mrb[0].mxu0
        %v1292 = vadd.f32 0.0, %v1291
        %v1293 = vpop.f32.mrb[0].mxu0
        %1294 = vmatprep.mubr.f32.mxu0 0.0
        %1295 = vmatmul.mubr.f32.gmra.mrb[0].mxu0 %v387
        %v1296 = vpop.f32.mrb[0].mxu0
        %v1297 = vadd.f32 0.0, %v1296
        %v1298 = vpop.f32.mrb[0].mxu0
        %1299 = vmatprep.mubr.f32.mxu0 0.0
        %1300 = vmatmul.mubr.f32.gmra.mrb[0].mxu0 %v390
        %v1301 = vpop.f32.mrb[0].mxu0
        %v1302 = vadd.f32 0.0, %v1301
        %v1303 = vpop.f32.mrb[0].mxu0
        %1304 = vmatprep.mubr.f32.mxu0 0.0
        %1305 = vmatmul.mubr.f32.gmra.mrb[0].mxu0 %v393
        %v1306 = vpop.f32.mrb[0].mxu0
        %v1307 = vadd.f32 0.0, %v1306
        %v1308 = vpop.f32.mrb[0].mxu0
        %1309 = vmatprep.mubr.f32.mxu0 0.0
        %1310 = vmatmul.mubr.f32.gmra.mrb[0].mxu0 %v396
        %v1311 = vpop.f32.mrb[0].mxu0
        %v1312 = vadd.f32 0.0, %v1311
        %v1313 = vpop.f32.mrb[0].mxu0
        %1314 = vdwg.mxu0
        %v1316 = vsel %vm373, %v1277, 0
        %v1319 = vsel %vm373, %v1282, 0
        %v1322 = vsel %vm373, %v1287, 0
        %v1325 = vsel %vm373, %v1292, 0
        %v1328 = vsel %vm373, %v1297, 0
        %v1331 = vsel %vm373, %v1302, 0
        %v1334 = vsel %vm373, %v1307, 0
        %v1337 = vsel %vm373, %v1312, 0
        %1339 = vmatprep.subr.mxu0 0.0
        %1340 = vmatpush1.xpose.msra.mxu0 %v544
        %1341 = vmatprep.subr.mxu0 0.0
        %1342 = vmatpush1.xpose.msra.mxu0 %v547
        %1343 = vmatprep.subr.mxu0 0.0
        %1344 = vmatpush1.xpose.msra.mxu0 %v550
        %1345 = vmatprep.subr.mxu0 0.0
        %1346 = vmatpush1.xpose.msra.mxu0 %v553
        %1347 = vmatprep.subr.mxu0 0.0
        %1348 = vmatpush1.xpose.msra.mxu0 %v556
        %1349 = vmatprep.subr.mxu0 0.0
        %1350 = vmatpush1.xpose.msra.mxu0 %v559
        %1351 = vmatprep.subr.mxu0 0.0
        %1352 = vmatpush1.xpose.msra.mxu0 %v562
        %1353 = vmatprep.subr.mxu0 0.0
        %1354 = vmatpush1.xpose.msra.mxu0 %v565
        %1355 = vmatprep.subr.mxu0 0.0
        %1356 = vmatpush1.xpose.msra.mxu0 %v568
        %1357 = vmatprep.subr.mxu0 0.0
        %1358 = vmatpush1.xpose.msra.mxu0 %v571
        %1359 = vmatprep.subr.mxu0 0.0
        %1360 = vmatpush1.xpose.msra.mxu0 %v574
        %1361 = vmatprep.subr.mxu0 0.0
        %1362 = vmatpush1.xpose.msra.mxu0 %v577
        %1363 = vmatprep.subr.mxu0 0.0
        %1364 = vmatpush1.xpose.msra.mxu0 %v580
        %1365 = vmatprep.subr.mxu0 0.0
        %1366 = vmatpush1.xpose.msra.mxu0 %v583
        %1367 = vmatprep.subr.mxu0 0.0
        %1368 = vmatpush1.xpose.msra.mxu0 %v586
        %1369 = vmatprep.subr.mxu0 0.0
        %1370 = vmatpush1.xpose.msra.mxu0 %v589
        %1371 = vmatprep.subr.mxu0 0.0
        %1372 = vmatpush1.xpose.msra.mxu0 0.0
        %1373 = vmatprep.subr.mxu0 0.0
        %1374 = vmatpush1.xpose.msra.mxu0 0.0
        %1375 = vmatprep.subr.mxu0 0.0
        %1376 = vmatpush1.xpose.msra.mxu0 0.0
        %1377 = vmatprep.subr.mxu0 0.0
        %1378 = vmatpush1.xpose.msra.mxu0 0.0
        %1379 = vmatprep.subr.mxu0 0.0
        %1380 = vmatpush1.xpose.msra.mxu0 0.0
        %1381 = vmatprep.subr.mxu0 0.0
        %1382 = vmatpush1.xpose.msra.mxu0 0.0
        %1383 = vmatprep.subr.mxu0 0.0
        %1384 = vmatpush1.xpose.msra.mxu0 0.0
        %1385 = vmatprep.subr.mxu0 0.0
        %1386 = vmatpush1.xpose.msra.mxu0 0.0
        %1387 = vmatprep.subr.mxu0 0.0
        %1388 = vmatpush1.xpose.msra.mxu0 0.0
        %1389 = vmatprep.subr.mxu0 0.0
        %1390 = vmatpush1.xpose.msra.mxu0 0.0
        %1391 = vmatprep.subr.mxu0 0.0
        %1392 = vmatpush1.xpose.msra.mxu0 0.0
        %1393 = vmatprep.subr.mxu0 0.0
        %1394 = vmatpush1.xpose.msra.mxu0 0.0
        %1395 = vmatprep.subr.mxu0 0.0
        %1396 = vmatpush1.xpose.msra.mxu0 0.0
        %1397 = vmatprep.subr.mxu0 0.0
        %1398 = vmatpush1.xpose.msra.mxu0 0.0
        %1399 = vmatprep.subr.mxu0 0.0
        %1400 = vmatpush1.xpose.msra.mxu0 0.0
        %1401 = vmatprep.subr.mxu0 0.0
        %1402 = vmatpush1.xpose.msra.mxu0 0.0
        %1403 = vmatprep.mubr.f32.mxu0 0.0
        %1404 = vmatmul.mubr.f32.gmra.mrb[0].mxu0 %v1316
        %v1405 = vpop.f32.mrb[0].mxu0
        %v1406 = vadd.f32 0.0, %v1405
        %v1407 = vpop.f32.mrb[0].mxu0
        %1408 = vmatprep.mubr.f32.mxu0 0.0
        %1409 = vmatmul.mubr.f32.gmra.mrb[0].mxu0 %v1319
        %v1410 = vpop.f32.mrb[0].mxu0
        %v1411 = vadd.f32 0.0, %v1410
        %v1412 = vpop.f32.mrb[0].mxu0
        %1413 = vmatprep.mubr.f32.mxu0 0.0
        %1414 = vmatmul.mubr.f32.gmra.mrb[0].mxu0 %v1322
        %v1415 = vpop.f32.mrb[0].mxu0
        %v1416 = vadd.f32 0.0, %v1415
        %v1417 = vpop.f32.mrb[0].mxu0
        %1418 = vmatprep.mubr.f32.mxu0 0.0
        %1419 = vmatmul.mubr.f32.gmra.mrb[0].mxu0 %v1325
        %v1420 = vpop.f32.mrb[0].mxu0
        %v1421 = vadd.f32 0.0, %v1420
        %v1422 = vpop.f32.mrb[0].mxu0
        %1423 = vmatprep.mubr.f32.mxu0 0.0
        %1424 = vmatmul.mubr.f32.gmra.mrb[0].mxu0 %v1328
        %v1425 = vpop.f32.mrb[0].mxu0
        %v1426 = vadd.f32 0.0, %v1425
        %v1427 = vpop.f32.mrb[0].mxu0
        %1428 = vmatprep.mubr.f32.mxu0 0.0
        %1429 = vmatmul.mubr.f32.gmra.mrb[0].mxu0 %v1331
        %v1430 = vpop.f32.mrb[0].mxu0
        %v1431 = vadd.f32 0.0, %v1430
        %v1432 = vpop.f32.mrb[0].mxu0
        %1433 = vmatprep.mubr.f32.mxu0 0.0
        %1434 = vmatmul.mubr.f32.gmra.mrb[0].mxu0 %v1334
        %v1435 = vpop.f32.mrb[0].mxu0
        %v1436 = vadd.f32 0.0, %v1435
        %v1437 = vpop.f32.mrb[0].mxu0
        %1438 = vmatprep.mubr.f32.mxu0 0.0
        %1439 = vmatmul.mubr.f32.gmra.mrb[0].mxu0 %v1337
        %v1440 = vpop.f32.mrb[0].mxu0
        %v1441 = vadd.f32 0.0, %v1440
        %v1442 = vpop.f32.mrb[0].mxu0
        %1443 = vdwg.mxu0
        %v1444 = vtanh.pop %v1406
        %v1445 = vtanh.pop %v1411
        %v1446 = vtanh.pop %v1416
        %v1447 = vtanh.pop %v1421
        %v1448 = vtanh.pop %v1426
        %v1449 = vtanh.pop %v1431
        %v1450 = vtanh.pop %v1436
        %v1451 = vtanh.pop %v1441
        %v1452 = vadd.f32 %v1076, %v1444
        %v1453 = vadd.f32 %v1077, %v1445
        %v1454 = vadd.f32 %v1078, %v1446
        %v1455 = vadd.f32 %v1079, %v1447
        %v1456 = vadd.f32 %v1080, %v1448
        %v1457 = vadd.f32 %v1081, %v1449
        %v1458 = vadd.f32 %v1082, %v1450
        %v1459 = vadd.f32 %v1083, %v1451
        %1460 = vmatprep.subr.mxu0 0.0
        %1461 = vmatpush1.xpose.msra.mxu0 %v730
        %1462 = vmatprep.subr.mxu0 0.0
        %1463 = vmatpush1.xpose.msra.mxu0 %v733
        %1464 = vmatprep.subr.mxu0 0.0
        %1465 = vmatpush1.xpose.msra.mxu0 %v736
        %1466 = vmatprep.subr.mxu0 0.0
        %1467 = vmatpush1.xpose.msra.mxu0 %v739
        %1468 = vmatprep.subr.mxu0 0.0
        %1469 = vmatpush1.xpose.msra.mxu0 %v742
        %1470 = vmatprep.subr.mxu0 0.0
        %1471 = vmatpush1.xpose.msra.mxu0 %v745
        %1472 = vmatprep.subr.mxu0 0.0
        %1473 = vmatpush1.xpose.msra.mxu0 %v748
        %1474 = vmatprep.subr.mxu0 0.0
        %1475 = vmatpush1.xpose.msra.mxu0 %v751
        %1476 = vmatprep.subr.mxu0 0.0
        %1477 = vmatpush1.xpose.msra.mxu0 %v754
        %1478 = vmatprep.subr.mxu0 0.0
        %1479 = vmatpush1.xpose.msra.mxu0 %v757
        %1480 = vmatprep.subr.mxu0 0.0
        %1481 = vmatpush1.xpose.msra.mxu0 %v760
        %1482 = vmatprep.subr.mxu0 0.0
        %1483 = vmatpush1.xpose.msra.mxu0 %v763
        %1484 = vmatprep.subr.mxu0 0.0
        %1485 = vmatpush1.xpose.msra.mxu0 %v766
        %1486 = vmatprep.subr.mxu0 0.0
        %1487 = vmatpush1.xpose.msra.mxu0 %v769
        %1488 = vmatprep.subr.mxu0 0.0
        %1489 = vmatpush1.xpose.msra.mxu0 %v772
        %1490 = vmatprep.subr.mxu0 0.0
        %1491 = vmatpush1.xpose.msra.mxu0 %v775
        %1492 = vmatprep.subr.mxu0 0.0
        %1493 = vmatpush1.xpose.msra.mxu0 0.0
        %1494 = vmatprep.subr.mxu0 0.0
        %1495 = vmatpush1.xpose.msra.mxu0 0.0
        %1496 = vmatprep.subr.mxu0 0.0
        %1497 = vmatpush1.xpose.msra.mxu0 0.0
        %1498 = vmatprep.subr.mxu0 0.0
        %1499 = vmatpush1.xpose.msra.mxu0 0.0
        %1500 = vmatprep.subr.mxu0 0.0
        %1501 = vmatpush1.xpose.msra.mxu0 0.0
        %1502 = vmatprep.subr.mxu0 0.0
        %1503 = vmatpush1.xpose.msra.mxu0 0.0
        %1504 = vmatprep.subr.mxu0 0.0
        %1505 = vmatpush1.xpose.msra.mxu0 0.0
        %1506 = vmatprep.subr.mxu0 0.0
        %1507 = vmatpush1.xpose.msra.mxu0 0.0
        %1508 = vmatprep.subr.mxu0 0.0
        %1509 = vmatpush1.xpose.msra.mxu0 0.0
        %1510 = vmatprep.subr.mxu0 0.0
        %1511 = vmatpush1.xpose.msra.mxu0 0.0
        %1512 = vmatprep.subr.mxu0 0.0
        %1513 = vmatpush1.xpose.msra.mxu0 0.0
        %1514 = vmatprep.subr.mxu0 0.0
        %1515 = vmatpush1.xpose.msra.mxu0 0.0
        %1516 = vmatprep.subr.mxu0 0.0
        %1517 = vmatpush1.xpose.msra.mxu0 0.0
        %1518 = vmatprep.subr.mxu0 0.0
        %1519 = vmatpush1.xpose.msra.mxu0 0.0
        %1520 = vmatprep.subr.mxu0 0.0
        %1521 = vmatpush1.xpose.msra.mxu0 0.0
        %1522 = vmatprep.subr.mxu0 0.0
        %1523 = vmatpush1.xpose.msra.mxu0 0.0
        %1524 = vmatprep.mubr.f32.mxu0 0.0
        %1525 = vmatmul.mubr.f32.gmra.mrb[0].mxu0 %v1316
        %v1526 = vpop.f32.mrb[0].mxu0
        %v1527 = vadd.f32 0.0, %v1526
        %v1528 = vpop.f32.mrb[0].mxu0
        %1529 = vmatprep.mubr.f32.mxu0 0.0
        %1530 = vmatmul.mubr.f32.gmra.mrb[0].mxu0 %v1319
        %v1531 = vpop.f32.mrb[0].mxu0
        %v1532 = vadd.f32 0.0, %v1531
        %v1533 = vpop.f32.mrb[0].mxu0
        %1534 = vmatprep.mubr.f32.mxu0 0.0
        %1535 = vmatmul.mubr.f32.gmra.mrb[0].mxu0 %v1322
        %v1536 = vpop.f32.mrb[0].mxu0
        %v1537 = vadd.f32 0.0, %v1536
        %v1538 = vpop.f32.mrb[0].mxu0
        %1539 = vmatprep.mubr.f32.mxu0 0.0
        %1540 = vmatmul.mubr.f32.gmra.mrb[0].mxu0 %v1325
        %v1541 = vpop.f32.mrb[0].mxu0
        %v1542 = vadd.f32 0.0, %v1541
        %v1543 = vpop.f32.mrb[0].mxu0
        %1544 = vmatprep.mubr.f32.mxu0 0.0
        %1545 = vmatmul.mubr.f32.gmra.mrb[0].mxu0 %v1328
        %v1546 = vpop.f32.mrb[0].mxu0
        %v1547 = vadd.f32 0.0, %v1546
        %v1548 = vpop.f32.mrb[0].mxu0
        %1549 = vmatprep.mubr.f32.mxu0 0.0
        %1550 = vmatmul.mubr.f32.gmra.mrb[0].mxu0 %v1331
        %v1551 = vpop.f32.mrb[0].mxu0
        %v1552 = vadd.f32 0.0, %v1551
        %v1553 = vpop.f32.mrb[0].mxu0
        %1554 = vmatprep.mubr.f32.mxu0 0.0
        %1555 = vmatmul.mubr.f32.gmra.mrb[0].mxu0 %v1334
        %v1556 = vpop.f32.mrb[0].mxu0
        %v1557 = vadd.f32 0.0, %v1556
        %v1558 = vpop.f32.mrb[0].mxu0
        %1559 = vmatprep.mubr.f32.mxu0 0.0
        %1560 = vmatmul.mubr.f32.gmra.mrb[0].mxu0 %v1337
        %v1561 = vpop.f32.mrb[0].mxu0
        %v1562 = vadd.f32 0.0, %v1561
        %v1563 = vpop.f32.mrb[0].mxu0
        %1564 = vdwg.mxu0
        %v1565 = vtanh.pop %v1527
        %v1566 = vtanh.pop %v1532
        %v1567 = vtanh.pop %v1537
        %v1568 = vtanh.pop %v1542
        %v1569 = vtanh.pop %v1547
        %v1570 = vtanh.pop %v1552
        %v1571 = vtanh.pop %v1557
        %v1572 = vtanh.pop %v1562
        %v1573 = vadd.f32 %v1452, %v1565
        %v1574 = vadd.f32 %v1453, %v1566
        %v1575 = vadd.f32 %v1454, %v1567
        %v1576 = vadd.f32 %v1455, %v1568
        %v1577 = vadd.f32 %v1456, %v1569
        %v1578 = vadd.f32 %v1457, %v1570
        %v1579 = vadd.f32 %v1458, %v1571
        %v1580 = vadd.f32 %v1459, %v1572
        %1581 = vmatprep.subr.mxu0 0.0
        %1582 = vmatpush1.xpose.msra.mxu0 %v916
        %1583 = vmatprep.subr.mxu0 0.0
        %1584 = vmatpush1.xpose.msra.mxu0 %v919
        %1585 = vmatprep.subr.mxu0 0.0
        %1586 = vmatpush1.xpose.msra.mxu0 %v922
        %1587 = vmatprep.subr.mxu0 0.0
        %1588 = vmatpush1.xpose.msra.mxu0 %v925
        %1589 = vmatprep.subr.mxu0 0.0
        %1590 = vmatpush1.xpose.msra.mxu0 %v928
        %1591 = vmatprep.subr.mxu0 0.0
        %1592 = vmatpush1.xpose.msra.mxu0 %v931
        %1593 = vmatprep.subr.mxu0 0.0
        %1594 = vmatpush1.xpose.msra.mxu0 %v934
        %1595 = vmatprep.subr.mxu0 0.0
        %1596 = vmatpush1.xpose.msra.mxu0 %v937
        %1597 = vmatprep.subr.mxu0 0.0
        %1598 = vmatpush1.xpose.msra.mxu0 %v940
        %1599 = vmatprep.subr.mxu0 0.0
        %1600 = vmatpush1.xpose.msra.mxu0 %v943
        %1601 = vmatprep.subr.mxu0 0.0
        %1602 = vmatpush1.xpose.msra.mxu0 %v946
        %1603 = vmatprep.subr.mxu0 0.0
        %1604 = vmatpush1.xpose.msra.mxu0 %v949
        %1605 = vmatprep.subr.mxu0 0.0
        %1606 = vmatpush1.xpose.msra.mxu0 %v952
        %1607 = vmatprep.subr.mxu0 0.0
        %1608 = vmatpush1.xpose.msra.mxu0 %v955
        %1609 = vmatprep.subr.mxu0 0.0
        %1610 = vmatpush1.xpose.msra.mxu0 %v958
        %1611 = vmatprep.subr.mxu0 0.0
        %1612 = vmatpush1.xpose.msra.mxu0 %v961
        %1613 = vmatprep.subr.mxu0 0.0
        %1614 = vmatpush1.xpose.msra.mxu0 0.0
        %1615 = vmatprep.subr.mxu0 0.0
        %1616 = vmatpush1.xpose.msra.mxu0 0.0
        %1617 = vmatprep.subr.mxu0 0.0
        %1618 = vmatpush1.xpose.msra.mxu0 0.0
        %1619 = vmatprep.subr.mxu0 0.0
        %1620 = vmatpush1.xpose.msra.mxu0 0.0
        %1621 = vmatprep.subr.mxu0 0.0
        %1622 = vmatpush1.xpose.msra.mxu0 0.0
        %1623 = vmatprep.subr.mxu0 0.0
        %1624 = vmatpush1.xpose.msra.mxu0 0.0
        %1625 = vmatprep.subr.mxu0 0.0
        %1626 = vmatpush1.xpose.msra.mxu0 0.0
        %1627 = vmatprep.subr.mxu0 0.0
        %1628 = vmatpush1.xpose.msra.mxu0 0.0
        %1629 = vmatprep.subr.mxu0 0.0
        %1630 = vmatpush1.xpose.msra.mxu0 0.0
        %1631 = vmatprep.subr.mxu0 0.0
        %1632 = vmatpush1.xpose.msra.mxu0 0.0
        %1633 = vmatprep.subr.mxu0 0.0
        %1634 = vmatpush1.xpose.msra.mxu0 0.0
        %1635 = vmatprep.subr.mxu0 0.0
        %1636 = vmatpush1.xpose.msra.mxu0 0.0
        %1637 = vmatprep.subr.mxu0 0.0
        %1638 = vmatpush1.xpose.msra.mxu0 0.0
        %1639 = vmatprep.subr.mxu0 0.0
        %1640 = vmatpush1.xpose.msra.mxu0 0.0
        %1641 = vmatprep.subr.mxu0 0.0
        %1642 = vmatpush1.xpose.msra.mxu0 0.0
        %1643 = vmatprep.subr.mxu0 0.0
        %1644 = vmatpush1.xpose.msra.mxu0 0.0
        %1645 = vmatprep.mubr.f32.mxu0 0.0
        %1646 = vmatmul.mubr.f32.gmra.mrb[0].mxu0 %v1316
        %v1647 = vpop.f32.mrb[0].mxu0
        %v1648 = vadd.f32 0.0, %v1647
        %v1649 = vpop.f32.mrb[0].mxu0
        %1650 = vmatprep.mubr.f32.mxu0 0.0
        %1651 = vmatmul.mubr.f32.gmra.mrb[0].mxu0 %v1319
        %v1652 = vpop.f32.mrb[0].mxu0
        %v1653 = vadd.f32 0.0, %v1652
        %v1654 = vpop.f32.mrb[0].mxu0
        %1655 = vmatprep.mubr.f32.mxu0 0.0
        %1656 = vmatmul.mubr.f32.gmra.mrb[0].mxu0 %v1322
        %v1657 = vpop.f32.mrb[0].mxu0
        %v1658 = vadd.f32 0.0, %v1657
        %v1659 = vpop.f32.mrb[0].mxu0
        %1660 = vmatprep.mubr.f32.mxu0 0.0
        %1661 = vmatmul.mubr.f32.gmra.mrb[0].mxu0 %v1325
        %v1662 = vpop.f32.mrb[0].mxu0
        %v1663 = vadd.f32 0.0, %v1662
        %v1664 = vpop.f32.mrb[0].mxu0
        %1665 = vmatprep.mubr.f32.mxu0 0.0
        %1666 = vmatmul.mubr.f32.gmra.mrb[0].mxu0 %v1328
        %v1667 = vpop.f32.mrb[0].mxu0
        %v1668 = vadd.f32 0.0, %v1667
        %v1669 = vpop.f32.mrb[0].mxu0
        %1670 = vmatprep.mubr.f32.mxu0 0.0
        %1671 = vmatmul.mubr.f32.gmra.mrb[0].mxu0 %v1331
        %v1672 = vpop.f32.mrb[0].mxu0
        %v1673 = vadd.f32 0.0, %v1672
        %v1674 = vpop.f32.mrb[0].mxu0
        %1675 = vmatprep.mubr.f32.mxu0 0.0
        %1676 = vmatmul.mubr.f32.gmra.mrb[0].mxu0 %v1334
        %v1677 = vpop.f32.mrb[0].mxu0
        %v1678 = vadd.f32 0.0, %v1677
        %v1679 = vpop.f32.mrb[0].mxu0
        %1680 = vmatprep.mubr.f32.mxu0 0.0
        %1681 = vmatmul.mubr.f32.gmra.mrb[0].mxu0 %v1337
        %v1682 = vpop.f32.mrb[0].mxu0
        %v1683 = vadd.f32 0.0, %v1682
        %v1684 = vpop.f32.mrb[0].mxu0
        %1685 = vdwg.mxu0
        %v1686 = vtanh.pop %v1648
        %v1687 = vtanh.pop %v1653
        %v1688 = vtanh.pop %v1658
        %v1689 = vtanh.pop %v1663
        %v1690 = vtanh.pop %v1668
        %v1691 = vtanh.pop %v1673
        %v1692 = vtanh.pop %v1678
        %v1693 = vtanh.pop %v1683
        %v1694 = vadd.f32 %v1573, %v1686
        %v1695 = vadd.f32 %v1574, %v1687
        %v1696 = vadd.f32 %v1575, %v1688
        %v1697 = vadd.f32 %v1576, %v1689
        %v1698 = vadd.f32 %v1577, %v1690
        %v1699 = vadd.f32 %v1578, %v1691
        %v1700 = vadd.f32 %v1579, %v1692
        %v1701 = vadd.f32 %v1580, %v1693
        %v1702 = vmax.f32 %v1694, 0.0
        %v1703 = vmax.f32 %v1695, 0.0
        %v1704 = vmax.f32 %v1696, 0.0
        %v1705 = vmax.f32 %v1697, 0.0
        %v1706 = vmax.f32 %v1698, 0.0
        %v1707 = vmax.f32 %v1699, 0.0
        %v1708 = vmax.f32 %v1700, 0.0
        %v1709 = vmax.f32 %v1701, 0.0
        %1710 = vst [vmem:[%s220] sm:$0xff] %v1702
        %1711 = vst [vmem:[%s220 + $0x8] sm:$0xff] %v1703
        %1712 = vst [vmem:[%s220 + $0x10] sm:$0xff] %v1704
        %1713 = vst [vmem:[%s220 + $0x18] sm:$0xff] %v1705
        %1714 = vst [vmem:[%s220 + $0x20] sm:$0xff] %v1706
        %1715 = vst [vmem:[%s220 + $0x28] sm:$0xff] %v1707
        %1716 = vst [vmem:[%s220 + $0x30] sm:$0xff] %v1708
        %1717 = vst [vmem:[%s220 + $0x38] sm:$0xff] %v1709
        %s1718 = sand.u32 %s125, 1
        %s1719 = scalar_lea.sflag [#allocation3], %s1718
        %s1720 = sand.u32 %s125, 1
        %s1721 = smul.addr %s1720, 64
        %s1722 = scalar_lea.vmem [#allocation2], %s1721
        // Predicated region
        $region37: #{encoder_ae_forward.3} parent=35 // pred_check
          %p1723 = pneg %p135
        $region38: #{encoder_ae_forward.3} parent=35 // pred_check_branch
          %1725 = sbr.rel (%p1723) target = $region40
        $region39: #{encoder_ae_forward.3} parent=35 // pred_region
          %s1727 = ssub.s32 1024, 1024
          %1728 = vsyncadd %s1719, %s1727
          %s1729 = smul.addr %s18, 8
          %s1730 = smul.addr %s1729, 128
          %s1731 = scalar_lea.hbm %s4, %s1730
          %s1732 = sshll.u32 %s1722, 4
          %s1733 = int_to_ptr.vmem [resolvable:$true] %s1732
          %1738 = dma.vmem_to_hbm [thread:$0]  %s1733, 1024, %s1731, %s1719, 128, 128, 8
        $region40: #{encoder_ae_forward.3} parent=35 // pred_fallthru
          _
      $region36: #{encoder_ae_forward.3} parent=5 // pred_fallthru
        _
      %p1739 = scmp.le.s32.totalorder 2, %s13
      // Predicated region
      $region41: #{encoder_ae_forward.3} parent=5 // pred_check
        %p1740 = pneg %p1739
      $region42: #{encoder_ae_forward.3} parent=5 // pred_check_branch
        %1742 = sbr.rel (%p1740) target = $region44
      $region43: #{encoder_ae_forward.3} parent=5 // pred_region
        %s1743 = ssub.s32 %s13, 2
        // Predicated region
        $region45: #{encoder_ae_forward.3} parent=43 // pred_check
          %p1744 = pneg %p141
        $region46: #{encoder_ae_forward.3} parent=43 // pred_check_branch
          %1746 = sbr.rel (%p1744) target = $region48
        $region47: #{encoder_ae_forward.3} parent=43 // pred_region
          %s1747 = sand.u32 %s126, 1
          %s1748 = scalar_lea.sflag [#allocation3], %s1747
          %s1749 = sand.u32 %s126, 1
          %s1750 = smul.addr %s1749, 64
          %s1751 = scalar_lea.vmem [#allocation2], %s1750
          %1752 = dma.done %s1748, 1024
        $region48: #{encoder_ae_forward.3} parent=43 // pred_fallthru
          _
      $region44: #{encoder_ae_forward.3} parent=5 // pred_fallthru
        _
    $region6: #{encoder_ae_forward.3} parent=1 // loop_footer
      %s17 = sadd.s32 1, %s13
    $region7: #{encoder_ae_forward.3} parent=1 // loop_footer_branch
      %12 = sbr.rel target = $region3
    $region8: #{encoder_ae_forward.3} parent=1 // loop_exit
      _
    %1753 = vsyncpa [#allocation3], 1
    %s1754 = scalar_lea.sflag [#allocation3], 1
    %1755 = vsyncpa %s1754, 1

</llo_original>
